<compile_context>
chip_gen: v7x
topology: tpu7x:2x2x1
jax: 0.10.0
libtpu: 0.0.40
codegen_flags: <defaults>
</compile_context>

<pallas_src>
import math
from functools import partial

import jax
import jax.numpy as jnp
from jax.experimental import pallas as pl
from jax.experimental.pallas import tpu as pltpu

LAYER_NORM_EPS = 1e-5      # Hyperparameters.Transformer.LAYER_NORM_EPS (torch default)
INITIAL_BIAS = 0.01        # Hyperparameters.INITIAL_BIAS (deterministic synthetic value)
LEAKY_SLOPE = 0.01         # torch.nn.LeakyReLU default negative_slope


# ----------------------------------------------------------------------------
# Kernel: one grid step == one encoder layer applied to one batch block.
# grid = (num_batch_blocks, num_layers); activation persists in VMEM scratch.
# ----------------------------------------------------------------------------
def encoder_stack_kernel(x_ref,
                         ln1_w_ref, ln1_b_ref,
                         wqkv_ref, bqkv_ref,
                         wo_ref, bo_ref,
                         ln2_w_ref, ln2_b_ref,
                         w1_ref, b1_ref,
                         w2_ref, b2_ref,
                         out_ref,
                         x_scr,
                         *, num_heads, batch_rows, seq_len, matmul_dtype):
    layer = pl.program_id(1)

    bb = batch_rows
    S = seq_len
    M, D = x_scr.shape                 # (bb * S, d_model)
    H = num_heads
    dh = D // H
    scale = 1.0 / math.sqrt(dh)

    # First layer of this batch block: pull the activation into VMEM scratch.
    @pl.when(layer == 0)
    def _():
        x_scr[...] = x_ref[...].astype(jnp.float32)

    x = x_scr[...]                                                  # (M, D) f32

    def mm(a, b):
        # MXU matmul, optional narrow input dtype, always f32 accumulation.
        return jnp.dot(a.astype(matmul_dtype), b.astype(matmul_dtype),
                       preferred_element_type=jnp.float32)

    def layer_norm(v, w, b):
        mu = jnp.mean(v, axis=-1, keepdims=True)
        var = jnp.mean((v - mu) ** 2, axis=-1, keepdims=True)
        return (v - mu) * jax.lax.rsqrt(var + LAYER_NORM_EPS) * w + b

    # ---- self-attention block (pre-norm) ------------------------------------
    xn = layer_norm(x, ln1_w_ref[0], ln1_b_ref[0])                  # (M, D)
    qkv = mm(xn, wqkv_ref[0]) + bqkv_ref[0]                         # (M, 3D)
    qkv3 = qkv.reshape(bb, S, 3 * D)                                # leading-dim split

    wo = wo_ref[0]                                                  # (D, D)
    attn = jnp.zeros((M, D), jnp.float32)
    for h in range(H):                                              # static unroll
        qh = qkv3[:, :, h * dh:(h + 1) * dh]                        # (bb, S, dh)
        kh = qkv3[:, :, D + h * dh:D + (h + 1) * dh]
        vh = qkv3[:, :, 2 * D + h * dh:2 * D + (h + 1) * dh]
        s = jnp.einsum('bqd,bkd->bqk',
                       qh.astype(matmul_dtype), kh.astype(matmul_dtype),
                       preferred_element_type=jnp.float32) * scale  # (bb, S, S)
        s = s - jnp.max(s, axis=-1, keepdims=True)
        e = jnp.exp(s)
        # EUP approximate reciprocal: softmax denominator off the VALU slot.
        p = e * pl.reciprocal(jnp.sum(e, axis=-1, keepdims=True), approx=True)
        oh = jnp.einsum('bqk,bkd->bqd',
                        p.astype(matmul_dtype), vh.astype(matmul_dtype),
                        preferred_element_type=jnp.float32)         # (bb, S, dh)
        # Head recombination folded into the output projection: MXU accumulate,
        # no concatenate / repacking along the 128-lane axis.
        attn = attn + mm(oh.reshape(M, dh), wo[h * dh:(h + 1) * dh, :])
    x = x + attn + bo_ref[0]                                        # residual 1

    # ---- feed-forward block (pre-norm) ---------------------------------------
    xn2 = layer_norm(x, ln2_w_ref[0], ln2_b_ref[0])
    h1 = mm(xn2, w1_ref[0]) + b1_ref[0]                             # (M, Hff)
    h1 = jnp.where(h1 > 0, h1, LEAKY_SLOPE * h1)                    # LeakyReLU
    x = x + mm(h1, w2_ref[0]) + b2_ref[0]                           # residual 2

    x_scr[...] = x

    # Last layer: single HBM writeback per batch block.
    @pl.when(layer == pl.num_programs(1) - 1)
    def _():
        out_ref[...] = x.astype(out_ref.dtype)


# ----------------------------------------------------------------------------
# Wrapper: whole encoder stack in one pallas_call.
# ----------------------------------------------------------------------------
def transformer_forward(x, stacked_params, num_heads, *,
                        batch_block=None, matmul_dtype=jnp.float32):
    B, S, D = x.shape
    assert D % num_heads == 0
    L = stacked_params["wqkv"].shape[0]
    bb = B if batch_block is None else batch_block   # whole batch per step by default
    assert B % bb == 0
    nb = B // bb

    x2 = x.reshape(B * S, D)     # fold batch into the matmul M dimension

    weight_order = ["ln1_w", "ln1_b", "wqkv", "bqkv", "wo", "bo",
                    "ln2_w", "ln2_b", "w1", "b1", "w2", "b2"]
    weights = [stacked_params[name] for name in weight_order]

    def wspec(arr):
        # Block only the stacked layer axis; the full weight tile is resident
        # per step and double-buffered across layers by the Pallas pipeline.
        # TODO(synk): at real model sizes (d_model ~1k) add a K-tiled
        # "arbitrary" grid axis so weights need not be fully VMEM-resident on
        # v7x's 64 MiB VMEM.
        return pl.BlockSpec((1,) + arr.shape[1:], lambda b, l: (l, 0, 0))

    in_specs = [pl.BlockSpec((bb * S, D), lambda b, l: (b, 0))]
    in_specs += [wspec(w) for w in weights]

    out = pl.pallas_call(
        partial(encoder_stack_kernel, num_heads=num_heads,
                batch_rows=bb, seq_len=S, matmul_dtype=matmul_dtype),
        out_shape=jax.ShapeDtypeStruct((B * S, D), x.dtype),
        grid=(nb, L),
        in_specs=in_specs,
        out_specs=pl.BlockSpec((bb * S, D), lambda b, l: (b, 0)),
        scratch_shapes=[pltpu.VMEM((bb * S, D), jnp.float32)],
        compiler_params=pltpu.CompilerParams(
            dimension_semantics=("parallel", "arbitrary"),
            vmem_limit_bytes=32 * 1024 * 1024),
    )(x2, *weights)

    return out.reshape(B, S, D)


# ----------------------------------------------------------------------------
# Deterministic parameter init (Xavier for FFN linears per _init_weights,
# Xavier for attention projections as in torch MHA, zeros / ones elsewhere).
# ----------------------------------------------------------------------------
def xavier_uniform(key, out_f, in_f):
    bound = math.sqrt(6.0 / (in_f + out_f))
    return jax.random.uniform(key, (out_f, in_f), jnp.float32, -bound, bound)


def init_layer_params(key, d_model, hidden_dim):
    k_qkv, k_o, k_1, k_2 = jax.random.split(key, 4)
    in_proj_w = xavier_uniform(k_qkv, 3 * d_model, d_model)    # torch (out, in)
    out_proj_w = xavier_uniform(k_o, d_model, d_model)
    lin1_w = xavier_uniform(k_1, hidden_dim, d_model)
    lin2_w = xavier_uniform(k_2, d_model, hidden_dim)
    return {
        "ln1_w": jnp.ones((1, d_model), jnp.float32),
        "ln1_b": jnp.zeros((1, d_model), jnp.float32),
        "wqkv": in_proj_w.T,                                   # (D, 3D)
        "bqkv": jnp.zeros((1, 3 * d_model), jnp.float32),
        "wo": out_proj_w.T,                                    # (D, D)
        "bo": jnp.zeros((1, d_model), jnp.float32),
        "ln2_w": jnp.ones((1, d_model), jnp.float32),
        "ln2_b": jnp.zeros((1, d_model), jnp.float32),
        "w1": lin1_w.T,                                        # (D, H)
        "b1": jnp.full((1, hidden_dim), INITIAL_BIAS, jnp.float32),
        "w2": lin2_w.T,                                        # (H, D)
        "b2": jnp.full((1, d_model), INITIAL_BIAS, jnp.float32),
    }


def stack_layer_params(layer_params):
    # Stack each per-layer array along a new leading layer axis -> all rank-3.
    return {k: jnp.stack([p[k] for p in layer_params], axis=0)
            for k in layer_params[0]}


# ----------------------------------------------------------------------------
# Pure-JAX reference (same math) for a sanity check.
# ----------------------------------------------------------------------------
def reference_layer(x, p, num_heads):
    D = x.shape[-1]
    dh = D // num_heads

    def ln(v, w, b):
        mu = jnp.mean(v, -1, keepdims=True)
        var = jnp.mean((v - mu) ** 2, -1, keepdims=True)
        return (v - mu) / jnp.sqrt(var + LAYER_NORM_EPS) * w[0] + b[0]

    xn = ln(x, p["ln1_w"], p["ln1_b"])
    qkv = xn @ p["wqkv"] + p["bqkv"][0]
    q, k, v = jnp.split(qkv, 3, axis=-1)
    B, S, _ = x.shape
    q = q.reshape(B, S, num_heads, dh).transpose(0, 2, 1, 3)
    k = k.reshape(B, S, num_heads, dh).transpose(0, 2, 1, 3)
    v = v.reshape(B, S, num_heads, dh).transpose(0, 2, 1, 3)
    s = jnp.einsum("bhqd,bhkd->bhqk", q, k) / math.sqrt(dh)
    pattn = jax.nn.softmax(s, axis=-1)
    o = jnp.einsum("bhqk,bhkd->bhqd", pattn, v)
    o = o.transpose(0, 2, 1, 3).reshape(B, S, D)
    x = x + (o @ p["wo"] + p["bo"][0])
    xn2 = ln(x, p["ln2_w"], p["ln2_b"])
    h1 = xn2 @ p["w1"] + p["b1"][0]
    h1 = jnp.where(h1 > 0, h1, LEAKY_SLOPE * h1)
    return x + (h1 @ p["w2"] + p["b2"][0])


if __name__ == "__main__":
    d_model = 32
    hidden_dimension = 64
    heads_number = 4
    encoder_layers = 2
    batch, seq = 2, 8

    key = jax.random.PRNGKey(0)
    k_x, *k_layers = jax.random.split(key, 1 + encoder_layers)
    x = jax.random.normal(k_x, (batch, seq, d_model), jnp.float32)
    layers_params = [init_layer_params(k, d_model, hidden_dimension)
                     for k in k_layers]
    stacked = stack_layer_params(layers_params)

    out = transformer_forward(x, stacked, heads_number)   # f32 matmuls (exact semantics)
    out = jax.block_until_ready(out)

    # Sanity check against pure-JAX reference. Tolerance covers the EUP
    # approximate-reciprocal softmax denominator (sub-1e-3 level deviation).
    ref = x
    for p in layers_params:
        ref = reference_layer(ref, p, heads_number)
    assert out.shape == (batch, seq, d_model)
    assert bool(jnp.all(jnp.isfinite(out)))
    assert bool(jnp.allclose(out, ref, atol=5e-3, rtol=5e-3)), \
        float(jnp.max(jnp.abs(out - ref)))

    print("KERNEL_OK")
</pallas_src>

<mosaic_0001>
module attributes {stable_mosaic.version = 11 : i64} {
  func.func @encoder_stack_kernel(%arg0: i32, %arg1: i32, %arg2: memref<16x32xf32, #tpu.memory_space<vmem>>, %arg3: memref<1x1x32xf32, #tpu.memory_space<vmem>>, %arg4: memref<1x1x32xf32, #tpu.memory_space<vmem>>, %arg5: memref<1x32x96xf32, #tpu.memory_space<vmem>>, %arg6: memref<1x1x96xf32, #tpu.memory_space<vmem>>, %arg7: memref<1x32x32xf32, #tpu.memory_space<vmem>>, %arg8: memref<1x1x32xf32, #tpu.memory_space<vmem>>, %arg9: memref<1x1x32xf32, #tpu.memory_space<vmem>>, %arg10: memref<1x1x32xf32, #tpu.memory_space<vmem>>, %arg11: memref<1x32x64xf32, #tpu.memory_space<vmem>>, %arg12: memref<1x1x64xf32, #tpu.memory_space<vmem>>, %arg13: memref<1x64x32xf32, #tpu.memory_space<vmem>>, %arg14: memref<1x1x32xf32, #tpu.memory_space<vmem>>, %arg15: memref<16x32xf32, #tpu.memory_space<vmem>>, %arg16: memref<16x32xf32, #tpu.memory_space<vmem>>) attributes {dimension_semantics = [#tpu.dimension_semantics<parallel>, #tpu.dimension_semantics<arbitrary>], iteration_bounds = array<i64: 1, 2>, scalar_prefetch = 0 : i64, scratch_operands = 1 : i64, tpu.core_type = #tpu.core_type<tc>, window_params = [{transform_indices = @transform_0, window_bounds = array<i64: 16, 32>}, {transform_indices = @transform_1, window_bounds = array<i64: 1, 1, 32>}, {transform_indices = @transform_2, window_bounds = array<i64: 1, 1, 32>}, {transform_indices = @transform_3, window_bounds = array<i64: 1, 32, 96>}, {transform_indices = @transform_4, window_bounds = array<i64: 1, 1, 96>}, {transform_indices = @transform_5, window_bounds = array<i64: 1, 32, 32>}, {transform_indices = @transform_6, window_bounds = array<i64: 1, 1, 32>}, {transform_indices = @transform_7, window_bounds = array<i64: 1, 1, 32>}, {transform_indices = @transform_8, window_bounds = array<i64: 1, 1, 32>}, {transform_indices = @transform_9, window_bounds = array<i64: 1, 32, 64>}, {transform_indices = @transform_10, window_bounds = array<i64: 1, 1, 64>}, {transform_indices = @transform_11, window_bounds = array<i64: 1, 64, 32>}, {transform_indices = @transform_12, window_bounds = array<i64: 1, 1, 32>}, {transform_indices = @transform_13, window_bounds = array<i64: 16, 32>}]} {
    %c0_i32 = arith.constant 0 : i32
    %0 = arith.cmpi eq, %arg1, %c0_i32 : i32
    %1 = arith.extui %0 : i1 to i32
    %c0_i32_0 = arith.constant 0 : i32
    %2 = arith.cmpi ne, %1, %c0_i32_0 : i32
    scf.if %2 {
      %c0_80 = arith.constant 0 : index
      %c0_81 = arith.constant 0 : index
      %180 = vector.load %arg2[%c0_80, %c0_81] : memref<16x32xf32, #tpu.memory_space<vmem>>, vector<16x32xf32>
      %c0_82 = arith.constant 0 : index
      %c0_83 = arith.constant 0 : index
      %181 = vector.load %arg16[%c0_82, %c0_83] : memref<16x32xf32, #tpu.memory_space<vmem>>, vector<16x32xf32>
      tpu.vector_store %arg16[%c0_82, %c0_83], %180 {strides = array<i32>} : memref<16x32xf32, #tpu.memory_space<vmem>>, vector<16x32xf32>,
    } else {
    }
    %c0 = arith.constant 0 : index
    %c0_1 = arith.constant 0 : index
    %3 = vector.load %arg16[%c0, %c0_1] : memref<16x32xf32, #tpu.memory_space<vmem>>, vector<16x32xf32>
    %c0_2 = arith.constant 0 : index
    %c0_3 = arith.constant 0 : index
    %c0_4 = arith.constant 0 : index
    %4 = vector.load %arg3[%c0_2, %c0_3, %c0_4] : memref<1x1x32xf32, #tpu.memory_space<vmem>>, vector<1x1x32xf32>
    %5 = vector.shape_cast %4 : vector<1x1x32xf32> to vector<1x32xf32>
    %c0_5 = arith.constant 0 : index
    %c0_6 = arith.constant 0 : index
    %c0_7 = arith.constant 0 : index
    %6 = vector.load %arg4[%c0_5, %c0_6, %c0_7] : memref<1x1x32xf32, #tpu.memory_space<vmem>>, vector<1x1x32xf32>
    %7 = vector.shape_cast %6 : vector<1x1x32xf32> to vector<1x32xf32>
    %cst = arith.constant dense<0.000000e+00> : vector<16xf32>
    %8 = vector.multi_reduction <add>, %3, %cst [1] : vector<16x32xf32> to vector<16xf32>
    %9 = vector.shape_cast %8 : vector<16xf32> to vector<16x1xf32>
    %cst_8 = arith.constant 3.200000e+01 : f32
    %10 = vector.broadcast %cst_8 : f32 to vector<16x1xf32>
    %11 = arith.divf %9, %10 : vector<16x1xf32>
    %12 = vector.broadcast %11 : vector<16x1xf32> to vector<16x32xf32>
    %13 = arith.subf %3, %12 : vector<16x32xf32>
    %14 = arith.mulf %13, %13 : vector<16x32xf32>
    %cst_9 = arith.constant dense<0.000000e+00> : vector<16xf32>
    %15 = vector.multi_reduction <add>, %14, %cst_9 [1] : vector<16x32xf32> to vector<16xf32>
    %16 = vector.shape_cast %15 : vector<16xf32> to vector<16x1xf32>
    %cst_10 = arith.constant 3.200000e+01 : f32
    %17 = vector.broadcast %cst_10 : f32 to vector<16x1xf32>
    %18 = arith.divf %16, %17 : vector<16x1xf32>
    %19 = vector.broadcast %11 : vector<16x1xf32> to vector<16x32xf32>
    %20 = arith.subf %3, %19 : vector<16x32xf32>
    %cst_11 = arith.constant 9.99999974E-6 : f32
    %21 = vector.broadcast %cst_11 : f32 to vector<16x1xf32>
    %22 = arith.addf %18, %21 : vector<16x1xf32>
    %23 = math.rsqrt %22 : vector<16x1xf32>
    %24 = vector.broadcast %23 : vector<16x1xf32> to vector<16x32xf32>
    %25 = arith.mulf %20, %24 : vector<16x32xf32>
    %26 = vector.broadcast %5 : vector<1x32xf32> to vector<16x32xf32>
    %27 = arith.mulf %25, %26 : vector<16x32xf32>
    %28 = vector.broadcast %7 : vector<1x32xf32> to vector<16x32xf32>
    %29 = arith.addf %27, %28 : vector<16x32xf32>
    %c0_12 = arith.constant 0 : index
    %c0_13 = arith.constant 0 : index
    %c0_14 = arith.constant 0 : index
    %30 = vector.load %arg5[%c0_12, %c0_13, %c0_14] : memref<1x32x96xf32, #tpu.memory_space<vmem>>, vector<1x32x96xf32>
    %31 = vector.shape_cast %30 : vector<1x32x96xf32> to vector<32x96xf32>
    %cst_15 = arith.constant dense<0.000000e+00> : vector<16x96xf32>
    %32 = tpu.matmul %29, %31, %cst_15 {dimension_numbers = #tpu.dot_dimension_numbers<[1], [0], [0], [1], [0, 0, 1, 1], [], []>} : vector<16x32xf32>, vector<32x96xf32>, vector<16x96xf32> -> vector<16x96xf32>
    %c0_16 = arith.constant 0 : index
    %c0_17 = arith.constant 0 : index
    %c0_18 = arith.constant 0 : index
    %33 = vector.load %arg6[%c0_16, %c0_17, %c0_18] : memref<1x1x96xf32, #tpu.memory_space<vmem>>, vector<1x1x96xf32>
    %34 = vector.shape_cast %33 : vector<1x1x96xf32> to vector<1x96xf32>
    %35 = vector.broadcast %34 : vector<1x96xf32> to vector<16x96xf32>
    %36 = arith.addf %32, %35 : vector<16x96xf32>
    %37 = vector.shape_cast %36 : vector<16x96xf32> to vector<2x8x96xf32>
    %c0_19 = arith.constant 0 : index
    %c0_20 = arith.constant 0 : index
    %c0_21 = arith.constant 0 : index
    %38 = vector.load %arg7[%c0_19, %c0_20, %c0_21] : memref<1x32x32xf32, #tpu.memory_space<vmem>>, vector<1x32x32xf32>
    %39 = vector.shape_cast %38 : vector<1x32x32xf32> to vector<32x32xf32>
    %cst_22 = arith.constant 0.000000e+00 : f32
    %40 = vector.broadcast %cst_22 : f32 to vector<16x32xf32>
    %41 = vector.extract_strided_slice %37 {offsets = [0, 0, 0], sizes = [2, 8, 8], strides = [1, 1, 1]} : vector<2x8x96xf32> to vector<2x8x8xf32>
    %42 = vector.extract_strided_slice %37 {offsets = [0, 0, 32], sizes = [2, 8, 8], strides = [1, 1, 1]} : vector<2x8x96xf32> to vector<2x8x8xf32>
    %43 = vector.extract_strided_slice %37 {offsets = [0, 0, 64], sizes = [2, 8, 8], strides = [1, 1, 1]} : vector<2x8x96xf32> to vector<2x8x8xf32>
    "tpu.trace_start"() <{level = 10 : i32, message = "bqd,bkd->bqk"}> : () -> ()
    %cst_23 = arith.constant dense<0.000000e+00> : vector<2x8x8xf32>
    %44 = tpu.matmul %41, %42, %cst_23 {dimension_numbers = #tpu.dot_dimension_numbers<[2], [2], [1], [1], [0, 0, 0, 1, 1, 1], [0], [0]>} : vector<2x8x8xf32>, vector<2x8x8xf32>, vector<2x8x8xf32> -> vector<2x8x8xf32>
    "tpu.trace_stop"() : () -> ()
    %cst_24 = arith.constant 0.353553385 : f32
    %45 = vector.broadcast %cst_24 : f32 to vector<2x8x8xf32>
    %46 = arith.mulf %44, %45 : vector<2x8x8xf32>
    %cst_25 = arith.constant dense<0xFF800000> : vector<2x8xf32>
    %47 = vector.multi_reduction <maximumf>, %46, %cst_25 [2] : vector<2x8x8xf32> to vector<2x8xf32>
    %48 = vector.shape_cast %47 : vector<2x8xf32> to vector<2x8x1xf32>
    %49 = vector.broadcast %48 : vector<2x8x1xf32> to vector<2x8x8xf32>
    %50 = arith.subf %46, %49 : vector<2x8x8xf32>
    %51 = math.exp %50 : vector<2x8x8xf32>
    %cst_26 = arith.constant dense<0.000000e+00> : vector<2x8xf32>
    %52 = vector.multi_reduction <add>, %51, %cst_26 [2] : vector<2x8x8xf32> to vector<2x8xf32>
    %53 = vector.shape_cast %52 : vector<2x8xf32> to vector<2x8x1xf32>
    %54 = tpu.reciprocal %53 {approx = true} : vector<2x8x1xf32> -> vector<2x8x1xf32>
    %55 = vector.broadcast %54 : vector<2x8x1xf32> to vector<2x8x8xf32>
    %56 = arith.mulf %51, %55 : vector<2x8x8xf32>
    "tpu.trace_start"() <{level = 10 : i32, message = "bqk,bkd->bqd"}> : () -> ()
    %cst_27 = arith.constant dense<0.000000e+00> : vector<2x8x8xf32>
    %57 = tpu.matmul %56, %43, %cst_27 {dimension_numbers = #tpu.dot_dimension_numbers<[2], [1], [1], [2], [0, 0, 0, 1, 1, 2], [0], [0]>} : vector<2x8x8xf32>, vector<2x8x8xf32>, vector<2x8x8xf32> -> vector<2x8x8xf32>
    "tpu.trace_stop"() : () -> ()
    %58 = vector.shape_cast %57 : vector<2x8x8xf32> to vector<16x8xf32>
    %59 = vector.extract_strided_slice %39 {offsets = [0, 0], sizes = [8, 32], strides = [1, 1]} : vector<32x32xf32> to vector<8x32xf32>
    %cst_28 = arith.constant dense<0.000000e+00> : vector<16x32xf32>
    %60 = tpu.matmul %58, %59, %cst_28 {dimension_numbers = #tpu.dot_dimension_numbers<[1], [0], [0], [1], [0, 0, 1, 1], [], []>} : vector<16x8xf32>, vector<8x32xf32>, vector<16x32xf32> -> vector<16x32xf32>
    %61 = arith.addf %40, %60 : vector<16x32xf32>
    %62 = vector.extract_strided_slice %37 {offsets = [0, 0, 8], sizes = [2, 8, 8], strides = [1, 1, 1]} : vector<2x8x96xf32> to vector<2x8x8xf32>
    %63 = vector.extract_strided_slice %37 {offsets = [0, 0, 40], sizes = [2, 8, 8], strides = [1, 1, 1]} : vector<2x8x96xf32> to vector<2x8x8xf32>
    %64 = vector.extract_strided_slice %37 {offsets = [0, 0, 72], sizes = [2, 8, 8], strides = [1, 1, 1]} : vector<2x8x96xf32> to vector<2x8x8xf32>
    "tpu.trace_start"() <{level = 10 : i32, message = "bqd,bkd->bqk"}> : () -> ()
    %cst_29 = arith.constant dense<0.000000e+00> : vector<2x8x8xf32>
    %65 = tpu.matmul %62, %63, %cst_29 {dimension_numbers = #tpu.dot_dimension_numbers<[2], [2], [1], [1], [0, 0, 0, 1, 1, 1], [0], [0]>} : vector<2x8x8xf32>, vector<2x8x8xf32>, vector<2x8x8xf32> -> vector<2x8x8xf32>
    "tpu.trace_stop"() : () -> ()
    %cst_30 = arith.constant 0.353553385 : f32
    %66 = vector.broadcast %cst_30 : f32 to vector<2x8x8xf32>
    %67 = arith.mulf %65, %66 : vector<2x8x8xf32>
    %cst_31 = arith.constant dense<0xFF800000> : vector<2x8xf32>
    %68 = vector.multi_reduction <maximumf>, %67, %cst_31 [2] : vector<2x8x8xf32> to vector<2x8xf32>
    %69 = vector.shape_cast %68 : vector<2x8xf32> to vector<2x8x1xf32>
    %70 = vector.broadcast %69 : vector<2x8x1xf32> to vector<2x8x8xf32>
    %71 = arith.subf %67, %70 : vector<2x8x8xf32>
    %72 = math.exp %71 : vector<2x8x8xf32>
    %cst_32 = arith.constant dense<0.000000e+00> : vector<2x8xf32>
    %73 = vector.multi_reduction <add>, %72, %cst_32 [2] : vector<2x8x8xf32> to vector<2x8xf32>
    %74 = vector.shape_cast %73 : vector<2x8xf32> to vector<2x8x1xf32>
    %75 = tpu.reciprocal %74 {approx = true} : vector<2x8x1xf32> -> vector<2x8x1xf32>
    %76 = vector.broadcast %75 : vector<2x8x1xf32> to vector<2x8x8xf32>
    %77 = arith.mulf %72, %76 : vector<2x8x8xf32>
    "tpu.trace_start"() <{level = 10 : i32, message = "bqk,bkd->bqd"}> : () -> ()
    %cst_33 = arith.constant dense<0.000000e+00> : vector<2x8x8xf32>
    %78 = tpu.matmul %77, %64, %cst_33 {dimension_numbers = #tpu.dot_dimension_numbers<[2], [1], [1], [2], [0, 0, 0, 1, 1, 2], [0], [0]>} : vector<2x8x8xf32>, vector<2x8x8xf32>, vector<2x8x8xf32> -> vector<2x8x8xf32>
    "tpu.trace_stop"() : () -> ()
    %79 = vector.shape_cast %78 : vector<2x8x8xf32> to vector<16x8xf32>
    %80 = vector.extract_strided_slice %39 {offsets = [8, 0], sizes = [8, 32], strides = [1, 1]} : vector<32x32xf32> to vector<8x32xf32>
    %cst_34 = arith.constant dense<0.000000e+00> : vector<16x32xf32>
    %81 = tpu.matmul %79, %80, %cst_34 {dimension_numbers = #tpu.dot_dimension_numbers<[1], [0], [0], [1], [0, 0, 1, 1], [], []>} : vector<16x8xf32>, vector<8x32xf32>, vector<16x32xf32> -> vector<16x32xf32>
    %82 = arith.addf %61, %81 : vector<16x32xf32>
    %83 = vector.extract_strided_slice %37 {offsets = [0, 0, 16], sizes = [2, 8, 8], strides = [1, 1, 1]} : vector<2x8x96xf32> to vector<2x8x8xf32>
    %84 = vector.extract_strided_slice %37 {offsets = [0, 0, 48], sizes = [2, 8, 8], strides = [1, 1, 1]} : vector<2x8x96xf32> to vector<2x8x8xf32>
    %85 = vector.extract_strided_slice %37 {offsets = [0, 0, 80], sizes = [2, 8, 8], strides = [1, 1, 1]} : vector<2x8x96xf32> to vector<2x8x8xf32>
    "tpu.trace_start"() <{level = 10 : i32, message = "bqd,bkd->bqk"}> : () -> ()
    %cst_35 = arith.constant dense<0.000000e+00> : vector<2x8x8xf32>
    %86 = tpu.matmul %83, %84, %cst_35 {dimension_numbers = #tpu.dot_dimension_numbers<[2], [2], [1], [1], [0, 0, 0, 1, 1, 1], [0], [0]>} : vector<2x8x8xf32>, vector<2x8x8xf32>, vector<2x8x8xf32> -> vector<2x8x8xf32>
    "tpu.trace_stop"() : () -> ()
    %cst_36 = arith.constant 0.353553385 : f32
    %87 = vector.broadcast %cst_36 : f32 to vector<2x8x8xf32>
    %88 = arith.mulf %86, %87 : vector<2x8x8xf32>
    %cst_37 = arith.constant dense<0xFF800000> : vector<2x8xf32>
    %89 = vector.multi_reduction <maximumf>, %88, %cst_37 [2] : vector<2x8x8xf32> to vector<2x8xf32>
    %90 = vector.shape_cast %89 : vector<2x8xf32> to vector<2x8x1xf32>
    %91 = vector.broadcast %90 : vector<2x8x1xf32> to vector<2x8x8xf32>
    %92 = arith.subf %88, %91 : vector<2x8x8xf32>
    %93 = math.exp %92 : vector<2x8x8xf32>
    %cst_38 = arith.constant dense<0.000000e+00> : vector<2x8xf32>
    %94 = vector.multi_reduction <add>, %93, %cst_38 [2] : vector<2x8x8xf32> to vector<2x8xf32>
    %95 = vector.shape_cast %94 : vector<2x8xf32> to vector<2x8x1xf32>
    %96 = tpu.reciprocal %95 {approx = true} : vector<2x8x1xf32> -> vector<2x8x1xf32>
    %97 = vector.broadcast %96 : vector<2x8x1xf32> to vector<2x8x8xf32>
    %98 = arith.mulf %93, %97 : vector<2x8x8xf32>
    "tpu.trace_start"() <{level = 10 : i32, message = "bqk,bkd->bqd"}> : () -> ()
    %cst_39 = arith.constant dense<0.000000e+00> : vector<2x8x8xf32>
    %99 = tpu.matmul %98, %85, %cst_39 {dimension_numbers = #tpu.dot_dimension_numbers<[2], [1], [1], [2], [0, 0, 0, 1, 1, 2], [0], [0]>} : vector<2x8x8xf32>, vector<2x8x8xf32>, vector<2x8x8xf32> -> vector<2x8x8xf32>
    "tpu.trace_stop"() : () -> ()
    %100 = vector.shape_cast %99 : vector<2x8x8xf32> to vector<16x8xf32>
    %101 = vector.extract_strided_slice %39 {offsets = [16, 0], sizes = [8, 32], strides = [1, 1]} : vector<32x32xf32> to vector<8x32xf32>
    %cst_40 = arith.constant dense<0.000000e+00> : vector<16x32xf32>
    %102 = tpu.matmul %100, %101, %cst_40 {dimension_numbers = #tpu.dot_dimension_numbers<[1], [0], [0], [1], [0, 0, 1, 1], [], []>} : vector<16x8xf32>, vector<8x32xf32>, vector<16x32xf32> -> vector<16x32xf32>
    %103 = arith.addf %82, %102 : vector<16x32xf32>
    %104 = vector.extract_strided_slice %37 {offsets = [0, 0, 24], sizes = [2, 8, 8], strides = [1, 1, 1]} : vector<2x8x96xf32> to vector<2x8x8xf32>
    %105 = vector.extract_strided_slice %37 {offsets = [0, 0, 56], sizes = [2, 8, 8], strides = [1, 1, 1]} : vector<2x8x96xf32> to vector<2x8x8xf32>
    %106 = vector.extract_strided_slice %37 {offsets = [0, 0, 88], sizes = [2, 8, 8], strides = [1, 1, 1]} : vector<2x8x96xf32> to vector<2x8x8xf32>
    "tpu.trace_start"() <{level = 10 : i32, message = "bqd,bkd->bqk"}> : () -> ()
    %cst_41 = arith.constant dense<0.000000e+00> : vector<2x8x8xf32>
    %107 = tpu.matmul %104, %105, %cst_41 {dimension_numbers = #tpu.dot_dimension_numbers<[2], [2], [1], [1], [0, 0, 0, 1, 1, 1], [0], [0]>} : vector<2x8x8xf32>, vector<2x8x8xf32>, vector<2x8x8xf32> -> vector<2x8x8xf32>
    "tpu.trace_stop"() : () -> ()
    %cst_42 = arith.constant 0.353553385 : f32
    %108 = vector.broadcast %cst_42 : f32 to vector<2x8x8xf32>
    %109 = arith.mulf %107, %108 : vector<2x8x8xf32>
    %cst_43 = arith.constant dense<0xFF800000> : vector<2x8xf32>
    %110 = vector.multi_reduction <maximumf>, %109, %cst_43 [2] : vector<2x8x8xf32> to vector<2x8xf32>
    %111 = vector.shape_cast %110 : vector<2x8xf32> to vector<2x8x1xf32>
    %112 = vector.broadcast %111 : vector<2x8x1xf32> to vector<2x8x8xf32>
    %113 = arith.subf %109, %112 : vector<2x8x8xf32>
    %114 = math.exp %113 : vector<2x8x8xf32>
    %cst_44 = arith.constant dense<0.000000e+00> : vector<2x8xf32>
    %115 = vector.multi_reduction <add>, %114, %cst_44 [2] : vector<2x8x8xf32> to vector<2x8xf32>
    %116 = vector.shape_cast %115 : vector<2x8xf32> to vector<2x8x1xf32>
    %117 = tpu.reciprocal %116 {approx = true} : vector<2x8x1xf32> -> vector<2x8x1xf32>
    %118 = vector.broadcast %117 : vector<2x8x1xf32> to vector<2x8x8xf32>
    %119 = arith.mulf %114, %118 : vector<2x8x8xf32>
    "tpu.trace_start"() <{level = 10 : i32, message = "bqk,bkd->bqd"}> : () -> ()
    %cst_45 = arith.constant dense<0.000000e+00> : vector<2x8x8xf32>
    %120 = tpu.matmul %119, %106, %cst_45 {dimension_numbers = #tpu.dot_dimension_numbers<[2], [1], [1], [2], [0, 0, 0, 1, 1, 2], [0], [0]>} : vector<2x8x8xf32>, vector<2x8x8xf32>, vector<2x8x8xf32> -> vector<2x8x8xf32>
    "tpu.trace_stop"() : () -> ()
    %121 = vector.shape_cast %120 : vector<2x8x8xf32> to vector<16x8xf32>
    %122 = vector.extract_strided_slice %39 {offsets = [24, 0], sizes = [8, 32], strides = [1, 1]} : vector<32x32xf32> to vector<8x32xf32>
    %cst_46 = arith.constant dense<0.000000e+00> : vector<16x32xf32>
    %123 = tpu.matmul %121, %122, %cst_46 {dimension_numbers = #tpu.dot_dimension_numbers<[1], [0], [0], [1], [0, 0, 1, 1], [], []>} : vector<16x8xf32>, vector<8x32xf32>, vector<16x32xf32> -> vector<16x32xf32>
    %124 = arith.addf %103, %123 : vector<16x32xf32>
    %125 = arith.addf %3, %124 : vector<16x32xf32>
    %c0_47 = arith.constant 0 : index
    %c0_48 = arith.constant 0 : index
    %c0_49 = arith.constant 0 : index
    %126 = vector.load %arg8[%c0_47, %c0_48, %c0_49] : memref<1x1x32xf32, #tpu.memory_space<vmem>>, vector<1x1x32xf32>
    %127 = vector.shape_cast %126 : vector<1x1x32xf32> to vector<1x32xf32>
    %128 = vector.broadcast %127 : vector<1x32xf32> to vector<16x32xf32>
    %129 = arith.addf %125, %128 : vector<16x32xf32>
    %c0_50 = arith.constant 0 : index
    %c0_51 = arith.constant 0 : index
    %c0_52 = arith.constant 0 : index
    %130 = vector.load %arg9[%c0_50, %c0_51, %c0_52] : memref<1x1x32xf32, #tpu.memory_space<vmem>>, vector<1x1x32xf32>
    %131 = vector.shape_cast %130 : vector<1x1x32xf32> to vector<1x32xf32>
    %c0_53 = arith.constant 0 : index
    %c0_54 = arith.constant 0 : index
    %c0_55 = arith.constant 0 : index
    %132 = vector.load %arg10[%c0_53, %c0_54, %c0_55] : memref<1x1x32xf32, #tpu.memory_space<vmem>>, vector<1x1x32xf32>
    %133 = vector.shape_cast %132 : vector<1x1x32xf32> to vector<1x32xf32>
    %cst_56 = arith.constant dense<0.000000e+00> : vector<16xf32>
    %134 = vector.multi_reduction <add>, %129, %cst_56 [1] : vector<16x32xf32> to vector<16xf32>
    %135 = vector.shape_cast %134 : vector<16xf32> to vector<16x1xf32>
    %cst_57 = arith.constant 3.200000e+01 : f32
    %136 = vector.broadcast %cst_57 : f32 to vector<16x1xf32>
    %137 = arith.divf %135, %136 : vector<16x1xf32>
    %138 = vector.broadcast %137 : vector<16x1xf32> to vector<16x32xf32>
    %139 = arith.subf %129, %138 : vector<16x32xf32>
    %140 = arith.mulf %139, %139 : vector<16x32xf32>
    %cst_58 = arith.constant dense<0.000000e+00> : vector<16xf32>
    %141 = vector.multi_reduction <add>, %140, %cst_58 [1] : vector<16x32xf32> to vector<16xf32>
    %142 = vector.shape_cast %141 : vector<16xf32> to vector<16x1xf32>
    %cst_59 = arith.constant 3.200000e+01 : f32
    %143 = vector.broadcast %cst_59 : f32 to vector<16x1xf32>
    %144 = arith.divf %142, %143 : vector<16x1xf32>
    %145 = vector.broadcast %137 : vector<16x1xf32> to vector<16x32xf32>
    %146 = arith.subf %129, %145 : vector<16x32xf32>
    %cst_60 = arith.constant 9.99999974E-6 : f32
    %147 = vector.broadcast %cst_60 : f32 to vector<16x1xf32>
    %148 = arith.addf %144, %147 : vector<16x1xf32>
    %149 = math.rsqrt %148 : vector<16x1xf32>
    %150 = vector.broadcast %149 : vector<16x1xf32> to vector<16x32xf32>
    %151 = arith.mulf %146, %150 : vector<16x32xf32>
    %152 = vector.broadcast %131 : vector<1x32xf32> to vector<16x32xf32>
    %153 = arith.mulf %151, %152 : vector<16x32xf32>
    %154 = vector.broadcast %133 : vector<1x32xf32> to vector<16x32xf32>
    %155 = arith.addf %153, %154 : vector<16x32xf32>
    %c0_61 = arith.constant 0 : index
    %c0_62 = arith.constant 0 : index
    %c0_63 = arith.constant 0 : index
    %156 = vector.load %arg11[%c0_61, %c0_62, %c0_63] : memref<1x32x64xf32, #tpu.memory_space<vmem>>, vector<1x32x64xf32>
    %157 = vector.shape_cast %156 : vector<1x32x64xf32> to vector<32x64xf32>
    %cst_64 = arith.constant dense<0.000000e+00> : vector<16x64xf32>
    %158 = tpu.matmul %155, %157, %cst_64 {dimension_numbers = #tpu.dot_dimension_numbers<[1], [0], [0], [1], [0, 0, 1, 1], [], []>} : vector<16x32xf32>, vector<32x64xf32>, vector<16x64xf32> -> vector<16x64xf32>
    %c0_65 = arith.constant 0 : index
    %c0_66 = arith.constant 0 : index
    %c0_67 = arith.constant 0 : index
    %159 = vector.load %arg12[%c0_65, %c0_66, %c0_67] : memref<1x1x64xf32, #tpu.memory_space<vmem>>, vector<1x1x64xf32>
    %160 = vector.shape_cast %159 : vector<1x1x64xf32> to vector<1x64xf32>
    %161 = vector.broadcast %160 : vector<1x64xf32> to vector<16x64xf32>
    %162 = arith.addf %158, %161 : vector<16x64xf32>
    %cst_68 = arith.constant 0.000000e+00 : f32
    %163 = vector.broadcast %cst_68 : f32 to vector<16x64xf32>
    %164 = arith.cmpf ogt, %162, %163 : vector<16x64xf32>
    %cst_69 = arith.constant 0.00999999977 : f32
    %165 = vector.broadcast %cst_69 : f32 to vector<16x64xf32>
    %166 = arith.mulf %165, %162 : vector<16x64xf32>
    %167 = arith.select %164, %162, %166 : vector<16x64xi1>, vector<16x64xf32>
    %c0_70 = arith.constant 0 : index
    %c0_71 = arith.constant 0 : index
    %c0_72 = arith.constant 0 : index
    %168 = vector.load %arg13[%c0_70, %c0_71, %c0_72] : memref<1x64x32xf32, #tpu.memory_space<vmem>>, vector<1x64x32xf32>
    %169 = vector.shape_cast %168 : vector<1x64x32xf32> to vector<64x32xf32>
    %cst_73 = arith.constant dense<0.000000e+00> : vector<16x32xf32>
    %170 = tpu.matmul %167, %169, %cst_73 {dimension_numbers = #tpu.dot_dimension_numbers<[1], [0], [0], [1], [0, 0, 1, 1], [], []>} : vector<16x64xf32>, vector<64x32xf32>, vector<16x32xf32> -> vector<16x32xf32>
    %171 = arith.addf %129, %170 : vector<16x32xf32>
    %c0_74 = arith.constant 0 : index
    %c0_75 = arith.constant 0 : index
    %c0_76 = arith.constant 0 : index
    %172 = vector.load %arg14[%c0_74, %c0_75, %c0_76] : memref<1x1x32xf32, #tpu.memory_space<vmem>>, vector<1x1x32xf32>
    %173 = vector.shape_cast %172 : vector<1x1x32xf32> to vector<1x32xf32>
    %174 = vector.broadcast %173 : vector<1x32xf32> to vector<16x32xf32>
    %175 = arith.addf %171, %174 : vector<16x32xf32>
    %c0_77 = arith.constant 0 : index
    %c0_78 = arith.constant 0 : index
    %176 = vector.load %arg16[%c0_77, %c0_78] : memref<16x32xf32, #tpu.memory_space<vmem>>, vector<16x32xf32>
    tpu.vector_store %arg16[%c0_77, %c0_78], %175 {strides = array<i32>} : memref<16x32xf32, #tpu.memory_space<vmem>>, vector<16x32xf32>,
    %c1_i32 = arith.constant 1 : i32
    %177 = arith.cmpi eq, %arg1, %c1_i32 : i32
    %178 = arith.extui %177 : i1 to i32
    %c0_i32_79 = arith.constant 0 : i32
    %179 = arith.cmpi ne, %178, %c0_i32_79 : i32
    scf.if %179 {
      %c0_80 = arith.constant 0 : index
      %c0_81 = arith.constant 0 : index
      %180 = vector.load %arg15[%c0_80, %c0_81] : memref<16x32xf32, #tpu.memory_space<vmem>>, vector<16x32xf32>
      tpu.vector_store %arg15[%c0_80, %c0_81], %175 {strides = array<i32>} : memref<16x32xf32, #tpu.memory_space<vmem>>, vector<16x32xf32>,
    } else {
    }
    return
  }
  func.func @transform_0(%arg0: i32, %arg1: i32) -> (i32, i32) {
    %c0_i32 = arith.constant 0 : i32
    %c0_i32_0 = arith.constant 0 : i32
    return %arg0, %c0_i32 : i32, i32
  }
  func.func @transform_1(%arg0: i32, %arg1: i32) -> (i32, i32, i32) {
    %c0_i32 = arith.constant 0 : i32
    %c0_i32_0 = arith.constant 0 : i32
    %c0_i32_1 = arith.constant 0 : i32
    return %arg1, %c0_i32, %c0_i32_0 : i32, i32, i32
  }
  func.func @transform_2(%arg0: i32, %arg1: i32) -> (i32, i32, i32) {
    %c0_i32 = arith.constant 0 : i32
    %c0_i32_0 = arith.constant 0 : i32
    %c0_i32_1 = arith.constant 0 : i32
    return %arg1, %c0_i32, %c0_i32_0 : i32, i32, i32
  }
  func.func @transform_3(%arg0: i32, %arg1: i32) -> (i32, i32, i32) {
    %c0_i32 = arith.constant 0 : i32
    %c0_i32_0 = arith.constant 0 : i32
    %c0_i32_1 = arith.constant 0 : i32
    return %arg1, %c0_i32, %c0_i32_0 : i32, i32, i32
  }
  func.func @transform_4(%arg0: i32, %arg1: i32) -> (i32, i32, i32) {
    %c0_i32 = arith.constant 0 : i32
    %c0_i32_0 = arith.constant 0 : i32
    %c0_i32_1 = arith.constant 0 : i32
    return %arg1, %c0_i32, %c0_i32_0 : i32, i32, i32
  }
  func.func @transform_5(%arg0: i32, %arg1: i32) -> (i32, i32, i32) {
    %c0_i32 = arith.constant 0 : i32
    %c0_i32_0 = arith.constant 0 : i32
    %c0_i32_1 = arith.constant 0 : i32
    return %arg1, %c0_i32, %c0_i32_0 : i32, i32, i32
  }
  func.func @transform_6(%arg0: i32, %arg1: i32) -> (i32, i32, i32) {
    %c0_i32 = arith.constant 0 : i32
    %c0_i32_0 = arith.constant 0 : i32
    %c0_i32_1 = arith.constant 0 : i32
    return %arg1, %c0_i32, %c0_i32_0 : i32, i32, i32
  }
  func.func @transform_7(%arg0: i32, %arg1: i32) -> (i32, i32, i32) {
    %c0_i32 = arith.constant 0 : i32
    %c0_i32_0 = arith.constant 0 : i32
    %c0_i32_1 = arith.constant 0 : i32
    return %arg1, %c0_i32, %c0_i32_0 : i32, i32, i32
  }
  func.func @transform_8(%arg0: i32, %arg1: i32) -> (i32, i32, i32) {
    %c0_i32 = arith.constant 0 : i32
    %c0_i32_0 = arith.constant 0 : i32
    %c0_i32_1 = arith.constant 0 : i32
    return %arg1, %c0_i32, %c0_i32_0 : i32, i32, i32
  }
  func.func @transform_9(%arg0: i32, %arg1: i32) -> (i32, i32, i32) {
    %c0_i32 = arith.constant 0 : i32
    %c0_i32_0 = arith.constant 0 : i32
    %c0_i32_1 = arith.constant 0 : i32
    return %arg1, %c0_i32, %c0_i32_0 : i32, i32, i32
  }
  func.func @transform_10(%arg0: i32, %arg1: i32) -> (i32, i32, i32) {
    %c0_i32 = arith.constant 0 : i32
    %c0_i32_0 = arith.constant 0 : i32
    %c0_i32_1 = arith.constant 0 : i32
    return %arg1, %c0_i32, %c0_i32_0 : i32, i32, i32
  }
  func.func @transform_11(%arg0: i32, %arg1: i32) -> (i32, i32, i32) {
    %c0_i32 = arith.constant 0 : i32
    %c0_i32_0 = arith.constant 0 : i32
    %c0_i32_1 = arith.constant 0 : i32
    return %arg1, %c0_i32, %c0_i32_0 : i32, i32, i32
  }
  func.func @transform_12(%arg0: i32, %arg1: i32) -> (i32, i32, i32) {
    %c0_i32 = arith.constant 0 : i32
    %c0_i32_0 = arith.constant 0 : i32
    %c0_i32_1 = arith.constant 0 : i32
    return %arg1, %c0_i32, %c0_i32_0 : i32, i32, i32
  }
  func.func @transform_13(%arg0: i32, %arg1: i32) -> (i32, i32) {
    %c0_i32 = arith.constant 0 : i32
    %c0_i32_0 = arith.constant 0 : i32
    return %arg0, %c0_i32 : i32, i32
  }
}

</mosaic_0001>

<llo_original>
// kernel: tpu_custom_call.1
$region0: #{tpu_custom_call.1}
  #allocation0 [shape = 'u32[]', space=smem, size = 0x4, offset = 0x4, fixed_abs, tag = 'smem constant byte address 0x4 - core index']
  #allocation1 [shape = 'u32[144,128]{1,0:T(1,128)}', space=vmem, size = 0x12000, scoped, tag = 'internal scratch']
  #allocation2 [shape = 'f32[16,32]{1,0:T(8,128)}', space=vmem, size = 0x2000, scoped, tag = 'scratch operand']
  %s0 = inlined_call_operand.hbm [shape: f32[16,32], index: 0, kind: input, shape index: {}]
  %s1 = inlined_call_operand.vmem [shape: f32[2,1,32], index: 1, kind: input, shape index: {}]
  %s2 = inlined_call_operand.vmem [shape: f32[2,1,32], index: 2, kind: input, shape index: {}]
  %s3 = inlined_call_operand.vmem [shape: f32[2,32,96], index: 3, kind: input, shape index: {}]
  %s4 = inlined_call_operand.vmem [shape: f32[2,1,96], index: 4, kind: input, shape index: {}]
  %s5 = inlined_call_operand.vmem [shape: f32[2,32,32], index: 5, kind: input, shape index: {}]
  %s6 = inlined_call_operand.vmem [shape: f32[2,1,32], index: 6, kind: input, shape index: {}]
  %s7 = inlined_call_operand.vmem [shape: f32[2,1,32], index: 7, kind: input, shape index: {}]
  %s8 = inlined_call_operand.vmem [shape: f32[2,1,32], index: 8, kind: input, shape index: {}]
  %s9 = inlined_call_operand.vmem [shape: f32[2,32,64], index: 9, kind: input, shape index: {}]
  %s10 = inlined_call_operand.vmem [shape: f32[2,1,64], index: 10, kind: input, shape index: {}]
  %s11 = inlined_call_operand.vmem [shape: f32[2,64,32], index: 11, kind: input, shape index: {}]
  %s12 = inlined_call_operand.vmem [shape: f32[2,1,32], index: 12, kind: input, shape index: {}]
  %s13 = inlined_call_operand.hbm [shape: f32[16,32], index: 13, kind: output, shape index: {}]
  %s14 = sld [smem:[#allocation0]]
  $region97: #{tpu_custom_call.1} parent=0
    _
  %s16 = ssub.s32 1, %s14
  %s17 = scalar_select 0, %s16, %s14
  $region1: #{tpu_custom_call.1} parent=0
    #allocation3 [shape = 'u8[8192]{0}', space=vmem, size = 0x2000, scoped, tag = 'input window, operand 0, single buffered']
    #allocation4 [shape = 's32[2]{0}', space=sflag, size = 0x8, scoped, tag = 'scoped memory for tpu_custom_call.1']
    #allocation5 [shape = 's32[2]{0}', space=sflag, size = 0x8, scoped, tag = 'scoped memory for tpu_custom_call.1']
    #allocation6 [shape = 'u8[8192]{0}', space=vmem, size = 0x2000, scoped, tag = 'output window, operand 0, single buffered']
    %18 = vsyncpa [#allocation4], 0
    %19 = vsyncpa [#allocation5], 0
    loop: start=0, step=1, limit=4
    $region2: #{tpu_custom_call.1} parent=1 // loop_pre_header
      _
    $region3: #{tpu_custom_call.1} parent=1 // loop_header
      %s21 = sphi 0, %s25
      %p22 = scmp.ge.s32.totalorder %s21, 4
      %s28 = sphi 0, %s40
      %s29 = sphi 0, %s36
      %s30 = sphi 0, %s28
      %s31 = sphi 0, %s29
      %s32 = sphi 0, %s30
      %s33 = sphi 0, %s31
      %s43 = sphi 0, %s45
      %s46 = sphi 0, %s43
      %s47 = sphi 0, %s46
      %s63 = sphi 0, %s47
      %s69 = sphi 0, %s71
      %s72 = sphi 0, %s69
      %s73 = sphi 0, %s72
      %s89 = sphi 0, %s73
      %s95 = sphi 0, %s97
      %s98 = sphi 0, %s95
      %s99 = sphi 0, %s98
      %s115 = sphi 0, %s99
      %s121 = sphi 0, %s123
      %s124 = sphi 0, %s121
      %s125 = sphi 0, %s124
      %s141 = sphi 0, %s125
      %s147 = sphi 0, %s149
      %s150 = sphi 0, %s147
      %s151 = sphi 0, %s150
      %s167 = sphi 0, %s151
      %s173 = sphi 0, %s175
      %s176 = sphi 0, %s173
      %s177 = sphi 0, %s176
      %s193 = sphi 0, %s177
      %s199 = sphi 0, %s201
      %s202 = sphi 0, %s199
      %s203 = sphi 0, %s202
      %s219 = sphi 0, %s203
      %s225 = sphi 0, %s227
      %s228 = sphi 0, %s225
      %s229 = sphi 0, %s228
      %s245 = sphi 0, %s229
      %s251 = sphi 0, %s253
      %s254 = sphi 0, %s251
      %s255 = sphi 0, %s254
      %s271 = sphi 0, %s255
      %s277 = sphi 0, %s279
      %s280 = sphi 0, %s277
      %s281 = sphi 0, %s280
      %s297 = sphi 0, %s281
      %s303 = sphi 0, %s305
      %s306 = sphi 0, %s303
      %s307 = sphi 0, %s306
      %s323 = sphi 0, %s307
      %s329 = sphi 0, %s331
      %s332 = sphi 0, %s329
      %s333 = sphi 0, %s332
      %s349 = sphi 0, %s333
      %s355 = sphi 0, %s357
      %s358 = sphi 0, %s355
      %s359 = sphi 0, %s358
      %s375 = sphi 0, %s359
      %s381 = sphi 0, %s383
      %s384 = sphi 0, %s381
      %s385 = sphi 0, %s384
      %s401 = sphi 0, %s385
    $region4: #{tpu_custom_call.1} parent=1 // loop_header_branch
      %24 = sbr.rel (%p22) target = $region8
    $region5: #{tpu_custom_call.1} parent=1 // loop_body
      %s26 = ssub.s32 %s21, 1
      %s27 = ssub.s32 %s21, 2
      %s34 = sadd.s32 1, %s29
      %p35 = scmp.ge.s32.totalorder %s34, 2
      %s36 = scalar_select %p35, 0, %s34
      %s37 = sadd.s32 1, %s28
      %s38 = scalar_select %p35, %s37, %s28
      %p39 = scmp.ge.s32.totalorder %s38, 1
      %s40 = scalar_select %p39, 0, %s38
      %s41 = ssub.s32 %s28, %s40
      %p42 = scmp.eq.s32.totalorder %s41, 0
      %s44 = sadd.s32 %s43, 1
      %s45 = scalar_select %p42, %s43, %s44
      %p48 = pneg %p42
      %p49 = scmp.eq.s32.totalorder %s21, 1
      %p50 = por %p48, %p49
      %p51 = scmp.ne.s32.totalorder %s43, %s46
      %p52 = scmp.eq.s32.totalorder %s21, 0
      %p53 = por %p51, %p52
      %p54 = scmp.ne.s32.totalorder %s43, %s46
      %p55 = scmp.eq.s32.totalorder %s26, 1
      %p56 = por %p54, %p55
      %p57 = scmp.ne.s32.totalorder %s46, %s47
      %p58 = scmp.eq.s32.totalorder %s26, 0
      %p59 = por %p57, %p58
      %p60 = scmp.ne.s32.totalorder %s46, %s47
      %p61 = scmp.eq.s32.totalorder %s27, 1
      %p62 = por %p60, %p61
      %p64 = scmp.ne.s32.totalorder %s47, %s63
      %p65 = scmp.eq.s32.totalorder %s27, 0
      %p66 = por %p64, %p65
      %s67 = ssub.s32 %s29, %s36
      %p68 = scmp.eq.s32.totalorder %s67, 0
      %s70 = sadd.s32 %s69, 1
      %s71 = scalar_select %p68, %s69, %s70
      %p74 = pneg %p68
      %p75 = scmp.eq.s32.totalorder %s21, 1
      %p76 = por %p74, %p75
      %p77 = scmp.ne.s32.totalorder %s69, %s72
      %p78 = scmp.eq.s32.totalorder %s21, 0
      %p79 = por %p77, %p78
      %p80 = scmp.ne.s32.totalorder %s69, %s72
      %p81 = scmp.eq.s32.totalorder %s26, 1
      %p82 = por %p80, %p81
      %p83 = scmp.ne.s32.totalorder %s72, %s73
      %p84 = scmp.eq.s32.totalorder %s26, 0
      %p85 = por %p83, %p84
      %p86 = scmp.ne.s32.totalorder %s72, %s73
      %p87 = scmp.eq.s32.totalorder %s27, 1
      %p88 = por %p86, %p87
      %p90 = scmp.ne.s32.totalorder %s73, %s89
      %p91 = scmp.eq.s32.totalorder %s27, 0
      %p92 = por %p90, %p91
      %s93 = ssub.s32 %s29, %s36
      %p94 = scmp.eq.s32.totalorder %s93, 0
      %s96 = sadd.s32 %s95, 1
      %s97 = scalar_select %p94, %s95, %s96
      %p100 = pneg %p94
      %p101 = scmp.eq.s32.totalorder %s21, 1
      %p102 = por %p100, %p101
      %p103 = scmp.ne.s32.totalorder %s95, %s98
      %p104 = scmp.eq.s32.totalorder %s21, 0
      %p105 = por %p103, %p104
      %p106 = scmp.ne.s32.totalorder %s95, %s98
      %p107 = scmp.eq.s32.totalorder %s26, 1
      %p108 = por %p106, %p107
      %p109 = scmp.ne.s32.totalorder %s98, %s99
      %p110 = scmp.eq.s32.totalorder %s26, 0
      %p111 = por %p109, %p110
      %p112 = scmp.ne.s32.totalorder %s98, %s99
      %p113 = scmp.eq.s32.totalorder %s27, 1
      %p114 = por %p112, %p113
      %p116 = scmp.ne.s32.totalorder %s99, %s115
      %p117 = scmp.eq.s32.totalorder %s27, 0
      %p118 = por %p116, %p117
      %s119 = ssub.s32 %s29, %s36
      %p120 = scmp.eq.s32.totalorder %s119, 0
      %s122 = sadd.s32 %s121, 1
      %s123 = scalar_select %p120, %s121, %s122
      %p126 = pneg %p120
      %p127 = scmp.eq.s32.totalorder %s21, 1
      %p128 = por %p126, %p127
      %p129 = scmp.ne.s32.totalorder %s121, %s124
      %p130 = scmp.eq.s32.totalorder %s21, 0
      %p131 = por %p129, %p130
      %p132 = scmp.ne.s32.totalorder %s121, %s124
      %p133 = scmp.eq.s32.totalorder %s26, 1
      %p134 = por %p132, %p133
      %p135 = scmp.ne.s32.totalorder %s124, %s125
      %p136 = scmp.eq.s32.totalorder %s26, 0
      %p137 = por %p135, %p136
      %p138 = scmp.ne.s32.totalorder %s124, %s125
      %p139 = scmp.eq.s32.totalorder %s27, 1
      %p140 = por %p138, %p139
      %p142 = scmp.ne.s32.totalorder %s125, %s141
      %p143 = scmp.eq.s32.totalorder %s27, 0
      %p144 = por %p142, %p143
      %s145 = ssub.s32 %s29, %s36
      %p146 = scmp.eq.s32.totalorder %s145, 0
      %s148 = sadd.s32 %s147, 1
      %s149 = scalar_select %p146, %s147, %s148
      %p152 = pneg %p146
      %p153 = scmp.eq.s32.totalorder %s21, 1
      %p154 = por %p152, %p153
      %p155 = scmp.ne.s32.totalorder %s147, %s150
      %p156 = scmp.eq.s32.totalorder %s21, 0
      %p157 = por %p155, %p156
      %p158 = scmp.ne.s32.totalorder %s147, %s150
      %p159 = scmp.eq.s32.totalorder %s26, 1
      %p160 = por %p158, %p159
      %p161 = scmp.ne.s32.totalorder %s150, %s151
      %p162 = scmp.eq.s32.totalorder %s26, 0
      %p163 = por %p161, %p162
      %p164 = scmp.ne.s32.totalorder %s150, %s151
      %p165 = scmp.eq.s32.totalorder %s27, 1
      %p166 = por %p164, %p165
      %p168 = scmp.ne.s32.totalorder %s151, %s167
      %p169 = scmp.eq.s32.totalorder %s27, 0
      %p170 = por %p168, %p169
      %s171 = ssub.s32 %s29, %s36
      %p172 = scmp.eq.s32.totalorder %s171, 0
      %s174 = sadd.s32 %s173, 1
      %s175 = scalar_select %p172, %s173, %s174
      %p178 = pneg %p172
      %p179 = scmp.eq.s32.totalorder %s21, 1
      %p180 = por %p178, %p179
      %p181 = scmp.ne.s32.totalorder %s173, %s176
      %p182 = scmp.eq.s32.totalorder %s21, 0
      %p183 = por %p181, %p182
      %p184 = scmp.ne.s32.totalorder %s173, %s176
      %p185 = scmp.eq.s32.totalorder %s26, 1
      %p186 = por %p184, %p185
      %p187 = scmp.ne.s32.totalorder %s176, %s177
      %p188 = scmp.eq.s32.totalorder %s26, 0
      %p189 = por %p187, %p188
      %p190 = scmp.ne.s32.totalorder %s176, %s177
      %p191 = scmp.eq.s32.totalorder %s27, 1
      %p192 = por %p190, %p191
      %p194 = scmp.ne.s32.totalorder %s177, %s193
      %p195 = scmp.eq.s32.totalorder %s27, 0
      %p196 = por %p194, %p195
      %s197 = ssub.s32 %s29, %s36
      %p198 = scmp.eq.s32.totalorder %s197, 0
      %s200 = sadd.s32 %s199, 1
      %s201 = scalar_select %p198, %s199, %s200
      %p204 = pneg %p198
      %p205 = scmp.eq.s32.totalorder %s21, 1
      %p206 = por %p204, %p205
      %p207 = scmp.ne.s32.totalorder %s199, %s202
      %p208 = scmp.eq.s32.totalorder %s21, 0
      %p209 = por %p207, %p208
      %p210 = scmp.ne.s32.totalorder %s199, %s202
      %p211 = scmp.eq.s32.totalorder %s26, 1
      %p212 = por %p210, %p211
      %p213 = scmp.ne.s32.totalorder %s202, %s203
      %p214 = scmp.eq.s32.totalorder %s26, 0
      %p215 = por %p213, %p214
      %p216 = scmp.ne.s32.totalorder %s202, %s203
      %p217 = scmp.eq.s32.totalorder %s27, 1
      %p218 = por %p216, %p217
      %p220 = scmp.ne.s32.totalorder %s203, %s219
      %p221 = scmp.eq.s32.totalorder %s27, 0
      %p222 = por %p220, %p221
      %s223 = ssub.s32 %s29, %s36
      %p224 = scmp.eq.s32.totalorder %s223, 0
      %s226 = sadd.s32 %s225, 1
      %s227 = scalar_select %p224, %s225, %s226
      %p230 = pneg %p224
      %p231 = scmp.eq.s32.totalorder %s21, 1
      %p232 = por %p230, %p231
      %p233 = scmp.ne.s32.totalorder %s225, %s228
      %p234 = scmp.eq.s32.totalorder %s21, 0
      %p235 = por %p233, %p234
      %p236 = scmp.ne.s32.totalorder %s225, %s228
      %p237 = scmp.eq.s32.totalorder %s26, 1
      %p238 = por %p236, %p237
      %p239 = scmp.ne.s32.totalorder %s228, %s229
      %p240 = scmp.eq.s32.totalorder %s26, 0
      %p241 = por %p239, %p240
      %p242 = scmp.ne.s32.totalorder %s228, %s229
      %p243 = scmp.eq.s32.totalorder %s27, 1
      %p244 = por %p242, %p243
      %p246 = scmp.ne.s32.totalorder %s229, %s245
      %p247 = scmp.eq.s32.totalorder %s27, 0
      %p248 = por %p246, %p247
      %s249 = ssub.s32 %s29, %s36
      %p250 = scmp.eq.s32.totalorder %s249, 0
      %s252 = sadd.s32 %s251, 1
      %s253 = scalar_select %p250, %s251, %s252
      %p256 = pneg %p250
      %p257 = scmp.eq.s32.totalorder %s21, 1
      %p258 = por %p256, %p257
      %p259 = scmp.ne.s32.totalorder %s251, %s254
      %p260 = scmp.eq.s32.totalorder %s21, 0
      %p261 = por %p259, %p260
      %p262 = scmp.ne.s32.totalorder %s251, %s254
      %p263 = scmp.eq.s32.totalorder %s26, 1
      %p264 = por %p262, %p263
      %p265 = scmp.ne.s32.totalorder %s254, %s255
      %p266 = scmp.eq.s32.totalorder %s26, 0
      %p267 = por %p265, %p266
      %p268 = scmp.ne.s32.totalorder %s254, %s255
      %p269 = scmp.eq.s32.totalorder %s27, 1
      %p270 = por %p268, %p269
      %p272 = scmp.ne.s32.totalorder %s255, %s271
      %p273 = scmp.eq.s32.totalorder %s27, 0
      %p274 = por %p272, %p273
      %s275 = ssub.s32 %s29, %s36
      %p276 = scmp.eq.s32.totalorder %s275, 0
      %s278 = sadd.s32 %s277, 1
      %s279 = scalar_select %p276, %s277, %s278
      %p282 = pneg %p276
      %p283 = scmp.eq.s32.totalorder %s21, 1
      %p284 = por %p282, %p283
      %p285 = scmp.ne.s32.totalorder %s277, %s280
      %p286 = scmp.eq.s32.totalorder %s21, 0
      %p287 = por %p285, %p286
      %p288 = scmp.ne.s32.totalorder %s277, %s280
      %p289 = scmp.eq.s32.totalorder %s26, 1
      %p290 = por %p288, %p289
      %p291 = scmp.ne.s32.totalorder %s280, %s281
      %p292 = scmp.eq.s32.totalorder %s26, 0
      %p293 = por %p291, %p292
      %p294 = scmp.ne.s32.totalorder %s280, %s281
      %p295 = scmp.eq.s32.totalorder %s27, 1
      %p296 = por %p294, %p295
      %p298 = scmp.ne.s32.totalorder %s281, %s297
      %p299 = scmp.eq.s32.totalorder %s27, 0
      %p300 = por %p298, %p299
      %s301 = ssub.s32 %s29, %s36
      %p302 = scmp.eq.s32.totalorder %s301, 0
      %s304 = sadd.s32 %s303, 1
      %s305 = scalar_select %p302, %s303, %s304
      %p308 = pneg %p302
      %p309 = scmp.eq.s32.totalorder %s21, 1
      %p310 = por %p308, %p309
      %p311 = scmp.ne.s32.totalorder %s303, %s306
      %p312 = scmp.eq.s32.totalorder %s21, 0
      %p313 = por %p311, %p312
      %p314 = scmp.ne.s32.totalorder %s303, %s306
      %p315 = scmp.eq.s32.totalorder %s26, 1
      %p316 = por %p314, %p315
      %p317 = scmp.ne.s32.totalorder %s306, %s307
      %p318 = scmp.eq.s32.totalorder %s26, 0
      %p319 = por %p317, %p318
      %p320 = scmp.ne.s32.totalorder %s306, %s307
      %p321 = scmp.eq.s32.totalorder %s27, 1
      %p322 = por %p320, %p321
      %p324 = scmp.ne.s32.totalorder %s307, %s323
      %p325 = scmp.eq.s32.totalorder %s27, 0
      %p326 = por %p324, %p325
      %s327 = ssub.s32 %s29, %s36
      %p328 = scmp.eq.s32.totalorder %s327, 0
      %s330 = sadd.s32 %s329, 1
      %s331 = scalar_select %p328, %s329, %s330
      %p334 = pneg %p328
      %p335 = scmp.eq.s32.totalorder %s21, 1
      %p336 = por %p334, %p335
      %p337 = scmp.ne.s32.totalorder %s329, %s332
      %p338 = scmp.eq.s32.totalorder %s21, 0
      %p339 = por %p337, %p338
      %p340 = scmp.ne.s32.totalorder %s329, %s332
      %p341 = scmp.eq.s32.totalorder %s26, 1
      %p342 = por %p340, %p341
      %p343 = scmp.ne.s32.totalorder %s332, %s333
      %p344 = scmp.eq.s32.totalorder %s26, 0
      %p345 = por %p343, %p344
      %p346 = scmp.ne.s32.totalorder %s332, %s333
      %p347 = scmp.eq.s32.totalorder %s27, 1
      %p348 = por %p346, %p347
      %p350 = scmp.ne.s32.totalorder %s333, %s349
      %p351 = scmp.eq.s32.totalorder %s27, 0
      %p352 = por %p350, %p351
      %s353 = ssub.s32 %s29, %s36
      %p354 = scmp.eq.s32.totalorder %s353, 0
      %s356 = sadd.s32 %s355, 1
      %s357 = scalar_select %p354, %s355, %s356
      %p360 = pneg %p354
      %p361 = scmp.eq.s32.totalorder %s21, 1
      %p362 = por %p360, %p361
      %p363 = scmp.ne.s32.totalorder %s355, %s358
      %p364 = scmp.eq.s32.totalorder %s21, 0
      %p365 = por %p363, %p364
      %p366 = scmp.ne.s32.totalorder %s355, %s358
      %p367 = scmp.eq.s32.totalorder %s26, 1
      %p368 = por %p366, %p367
      %p369 = scmp.ne.s32.totalorder %s358, %s359
      %p370 = scmp.eq.s32.totalorder %s26, 0
      %p371 = por %p369, %p370
      %p372 = scmp.ne.s32.totalorder %s358, %s359
      %p373 = scmp.eq.s32.totalorder %s27, 1
      %p374 = por %p372, %p373
      %p376 = scmp.ne.s32.totalorder %s359, %s375
      %p377 = scmp.eq.s32.totalorder %s27, 0
      %p378 = por %p376, %p377
      %s379 = ssub.s32 %s28, %s40
      %p380 = scmp.eq.s32.totalorder %s379, 0
      %s382 = sadd.s32 %s381, 1
      %s383 = scalar_select %p380, %s381, %s382
      %p386 = pneg %p380
      %p387 = scmp.eq.s32.totalorder %s21, 1
      %p388 = por %p386, %p387
      %p389 = scmp.ne.s32.totalorder %s381, %s384
      %p390 = scmp.eq.s32.totalorder %s21, 0
      %p391 = por %p389, %p390
      %p392 = scmp.ne.s32.totalorder %s381, %s384
      %p393 = scmp.eq.s32.totalorder %s26, 1
      %p394 = por %p392, %p393
      %p395 = scmp.ne.s32.totalorder %s384, %s385
      %p396 = scmp.eq.s32.totalorder %s26, 0
      %p397 = por %p395, %p396
      %p398 = scmp.ne.s32.totalorder %s384, %s385
      %p399 = scmp.eq.s32.totalorder %s27, 1
      %p400 = por %p398, %p399
      %p402 = scmp.ne.s32.totalorder %s385, %s401
      %p403 = scmp.eq.s32.totalorder %s27, 0
      %p404 = por %p402, %p403
      %p405 = scmp.le.s32.totalorder 1, %s21
      %p406 = scmp.lt.s32.totalorder %s21, 3
      %p407 = pnand %p405, %p406
      %p408 = pneg %p407
      // Predicated region
      $region9: #{tpu_custom_call.1} parent=5 // pred_check
        _
      $region10: #{tpu_custom_call.1} parent=5 // pred_check_branch
        %410 = sbr.rel (%p407) target = $region12
      $region11: #{tpu_custom_call.1} parent=5 // pred_region
        %s411 = ssub.s32 %s21, 1
        // Predicated region
        $region13: #{tpu_custom_call.1} parent=11 // pred_check
          %p412 = pneg %p59
        $region14: #{tpu_custom_call.1} parent=11 // pred_check_branch
          %414 = sbr.rel (%p412) target = $region16
        $region15: #{tpu_custom_call.1} parent=11 // pred_region
          %s415 = smul.u32 2, %s30
          %s417 = ssub.s32 256, 256
          %418 = vsyncadd [#allocation4], %s417
          %s419 = smul.addr %s415, 128
          %s420 = scalar_lea.hbm %s0, %s419
          %s421 = sshll.u32 [#allocation3], 4
          %s422 = int_to_ptr.vmem [resolvable:$true] %s421
          %427 = dma.hbm_to_vmem [thread:$0]  %s420, 256, %s422, [#allocation4], 128, 128, 8
        $region16: #{tpu_custom_call.1} parent=11 // pred_fallthru
          _
      $region12: #{tpu_custom_call.1} parent=5 // pred_fallthru
        _
      %p428 = scmp.lt.s32.totalorder %s21, 2
      // Predicated region
      $region17: #{tpu_custom_call.1} parent=5 // pred_check
        %p429 = pneg %p428
      $region18: #{tpu_custom_call.1} parent=5 // pred_check_branch
        %431 = sbr.rel (%p429) target = $region20
      $region19: #{tpu_custom_call.1} parent=5 // pred_region
        // Predicated region
        $region21: #{tpu_custom_call.1} parent=19 // pred_check
          %p432 = pneg %p79
        $region22: #{tpu_custom_call.1} parent=19 // pred_check_branch
          %434 = sbr.rel (%p432) target = $region24
        $region23: #{tpu_custom_call.1} parent=19 // pred_region
          %p435 = scmp.lt.s32.totalorder %s29, 1
          %s436 = scalar_select %p435, %s29, 1
          %s437 = scalar_lea.vmem %s1, %s436
        $region24: #{tpu_custom_call.1} parent=19 // pred_fallthru
          _
        // Predicated region
        $region25: #{tpu_custom_call.1} parent=19 // pred_check
          %p438 = pneg %p105
        $region26: #{tpu_custom_call.1} parent=19 // pred_check_branch
          %440 = sbr.rel (%p438) target = $region28
        $region27: #{tpu_custom_call.1} parent=19 // pred_region
          %p441 = scmp.lt.s32.totalorder %s29, 1
          %s442 = scalar_select %p441, %s29, 1
          %s443 = scalar_lea.vmem %s2, %s442
        $region28: #{tpu_custom_call.1} parent=19 // pred_fallthru
          _
        // Predicated region
        $region29: #{tpu_custom_call.1} parent=19 // pred_check
          %p444 = pneg %p131
        $region30: #{tpu_custom_call.1} parent=19 // pred_check_branch
          %446 = sbr.rel (%p444) target = $region32
        $region31: #{tpu_custom_call.1} parent=19 // pred_region
          %p447 = scmp.lt.s32.totalorder %s29, 1
          %s448 = scalar_select %p447, %s29, 1
          %s449 = smul.addr %s448, 4
          %s450 = smul.addr %s449, 8
          %s451 = scalar_lea.vmem %s3, %s450
        $region32: #{tpu_custom_call.1} parent=19 // pred_fallthru
          _
        // Predicated region
        $region33: #{tpu_custom_call.1} parent=19 // pred_check
          %p452 = pneg %p157
        $region34: #{tpu_custom_call.1} parent=19 // pred_check_branch
          %454 = sbr.rel (%p452) target = $region36
        $region35: #{tpu_custom_call.1} parent=19 // pred_region
          %p455 = scmp.lt.s32.totalorder %s29, 1
          %s456 = scalar_select %p455, %s29, 1
          %s457 = scalar_lea.vmem %s4, %s456
        $region36: #{tpu_custom_call.1} parent=19 // pred_fallthru
          _
        // Predicated region
        $region37: #{tpu_custom_call.1} parent=19 // pred_check
          %p458 = pneg %p183
        $region38: #{tpu_custom_call.1} parent=19 // pred_check_branch
          %460 = sbr.rel (%p458) target = $region40
        $region39: #{tpu_custom_call.1} parent=19 // pred_region
          %p461 = scmp.lt.s32.totalorder %s29, 1
          %s462 = scalar_select %p461, %s29, 1
          %s463 = smul.addr %s462, 4
          %s464 = smul.addr %s463, 8
          %s465 = scalar_lea.vmem %s5, %s464
        $region40: #{tpu_custom_call.1} parent=19 // pred_fallthru
          _
        // Predicated region
        $region41: #{tpu_custom_call.1} parent=19 // pred_check
          %p466 = pneg %p209
        $region42: #{tpu_custom_call.1} parent=19 // pred_check_branch
          %468 = sbr.rel (%p466) target = $region44
        $region43: #{tpu_custom_call.1} parent=19 // pred_region
          %p469 = scmp.lt.s32.totalorder %s29, 1
          %s470 = scalar_select %p469, %s29, 1
          %s471 = scalar_lea.vmem %s6, %s470
        $region44: #{tpu_custom_call.1} parent=19 // pred_fallthru
          _
        // Predicated region
        $region45: #{tpu_custom_call.1} parent=19 // pred_check
          %p472 = pneg %p235
        $region46: #{tpu_custom_call.1} parent=19 // pred_check_branch
          %474 = sbr.rel (%p472) target = $region48
        $region47: #{tpu_custom_call.1} parent=19 // pred_region
          %p475 = scmp.lt.s32.totalorder %s29, 1
          %s476 = scalar_select %p475, %s29, 1
          %s477 = scalar_lea.vmem %s7, %s476
        $region48: #{tpu_custom_call.1} parent=19 // pred_fallthru
          _
        // Predicated region
        $region49: #{tpu_custom_call.1} parent=19 // pred_check
          %p478 = pneg %p261
        $region50: #{tpu_custom_call.1} parent=19 // pred_check_branch
          %480 = sbr.rel (%p478) target = $region52
        $region51: #{tpu_custom_call.1} parent=19 // pred_region
          %p481 = scmp.lt.s32.totalorder %s29, 1
          %s482 = scalar_select %p481, %s29, 1
          %s483 = scalar_lea.vmem %s8, %s482
        $region52: #{tpu_custom_call.1} parent=19 // pred_fallthru
          _
        // Predicated region
        $region53: #{tpu_custom_call.1} parent=19 // pred_check
          %p484 = pneg %p287
        $region54: #{tpu_custom_call.1} parent=19 // pred_check_branch
          %486 = sbr.rel (%p484) target = $region56
        $region55: #{tpu_custom_call.1} parent=19 // pred_region
          %p487 = scmp.lt.s32.totalorder %s29, 1
          %s488 = scalar_select %p487, %s29, 1
          %s489 = smul.addr %s488, 4
          %s490 = smul.addr %s489, 8
          %s491 = scalar_lea.vmem %s9, %s490
        $region56: #{tpu_custom_call.1} parent=19 // pred_fallthru
          _
        // Predicated region
        $region57: #{tpu_custom_call.1} parent=19 // pred_check
          %p492 = pneg %p313
        $region58: #{tpu_custom_call.1} parent=19 // pred_check_branch
          %494 = sbr.rel (%p492) target = $region60
        $region59: #{tpu_custom_call.1} parent=19 // pred_region
          %p495 = scmp.lt.s32.totalorder %s29, 1
          %s496 = scalar_select %p495, %s29, 1
          %s497 = scalar_lea.vmem %s10, %s496
        $region60: #{tpu_custom_call.1} parent=19 // pred_fallthru
          _
        // Predicated region
        $region61: #{tpu_custom_call.1} parent=19 // pred_check
          %p498 = pneg %p339
        $region62: #{tpu_custom_call.1} parent=19 // pred_check_branch
          %500 = sbr.rel (%p498) target = $region64
        $region63: #{tpu_custom_call.1} parent=19 // pred_region
          %p501 = scmp.lt.s32.totalorder %s29, 1
          %s502 = scalar_select %p501, %s29, 1
          %s503 = smul.addr %s502, 8
          %s504 = smul.addr %s503, 8
          %s505 = scalar_lea.vmem %s11, %s504
        $region64: #{tpu_custom_call.1} parent=19 // pred_fallthru
          _
        // Predicated region
        $region65: #{tpu_custom_call.1} parent=19 // pred_check
          %p506 = pneg %p365
        $region66: #{tpu_custom_call.1} parent=19 // pred_check_branch
          %508 = sbr.rel (%p506) target = $region68
        $region67: #{tpu_custom_call.1} parent=19 // pred_region
          %p509 = scmp.lt.s32.totalorder %s29, 1
          %s510 = scalar_select %p509, %s29, 1
          %s511 = scalar_lea.vmem %s12, %s510
        $region68: #{tpu_custom_call.1} parent=19 // pred_fallthru
          _
      $region20: #{tpu_custom_call.1} parent=5 // pred_fallthru
        _
      %p512 = scmp.le.s32.totalorder 1, %s21
      %p513 = scmp.lt.s32.totalorder %s21, 3
      %p514 = pnand %p512, %p513
      %p515 = pneg %p514
      // Predicated region
      $region69: #{tpu_custom_call.1} parent=5 // pred_check
        _
      $region70: #{tpu_custom_call.1} parent=5 // pred_check_branch
        %517 = sbr.rel (%p514) target = $region72
      $region71: #{tpu_custom_call.1} parent=5 // pred_region
        %s518 = ssub.s32 %s21, 1
        // Predicated region
        $region73: #{tpu_custom_call.1} parent=71 // pred_check
          %p519 = pneg %p59
        $region74: #{tpu_custom_call.1} parent=71 // pred_check_branch
          %521 = sbr.rel (%p519) target = $region76
        $region75: #{tpu_custom_call.1} parent=71 // pred_region
          %522 = dma.done [#allocation4], 256
        $region76: #{tpu_custom_call.1} parent=71 // pred_fallthru
          _
        %p523 = pneg %p59
        %p524 = pneg %p56
        %p525 = scmp.lt.s32.totalorder %s31, 1
        %s526 = scalar_select %p525, %s31, 1
        %s527 = scalar_lea.vmem %s1, %s526
        %p528 = pneg %p85
        %p529 = pneg %p82
        %p530 = scmp.lt.s32.totalorder %s31, 1
        %s531 = scalar_select %p530, %s31, 1
        %s532 = scalar_lea.vmem %s2, %s531
        %p533 = pneg %p111
        %p534 = pneg %p108
        %p535 = scmp.lt.s32.totalorder %s31, 1
        %s536 = scalar_select %p535, %s31, 1
        %s537 = smul.addr %s536, 4
        %s538 = smul.addr %s537, 8
        %s539 = scalar_lea.vmem %s3, %s538
        %p540 = pneg %p137
        %p541 = pneg %p134
        %p542 = scmp.lt.s32.totalorder %s31, 1
        %s543 = scalar_select %p542, %s31, 1
        %s544 = scalar_lea.vmem %s4, %s543
        %p545 = pneg %p163
        %p546 = pneg %p160
        %p547 = scmp.lt.s32.totalorder %s31, 1
        %s548 = scalar_select %p547, %s31, 1
        %s549 = smul.addr %s548, 4
        %s550 = smul.addr %s549, 8
        %s551 = scalar_lea.vmem %s5, %s550
        %p552 = pneg %p189
        %p553 = pneg %p186
        %p554 = scmp.lt.s32.totalorder %s31, 1
        %s555 = scalar_select %p554, %s31, 1
        %s556 = scalar_lea.vmem %s6, %s555
        %p557 = pneg %p215
        %p558 = pneg %p212
        %p559 = scmp.lt.s32.totalorder %s31, 1
        %s560 = scalar_select %p559, %s31, 1
        %s561 = scalar_lea.vmem %s7, %s560
        %p562 = pneg %p241
        %p563 = pneg %p238
        %p564 = scmp.lt.s32.totalorder %s31, 1
        %s565 = scalar_select %p564, %s31, 1
        %s566 = scalar_lea.vmem %s8, %s565
        %p567 = pneg %p267
        %p568 = pneg %p264
        %p569 = scmp.lt.s32.totalorder %s31, 1
        %s570 = scalar_select %p569, %s31, 1
        %s571 = smul.addr %s570, 4
        %s572 = smul.addr %s571, 8
        %s573 = scalar_lea.vmem %s9, %s572
        %p574 = pneg %p293
        %p575 = pneg %p290
        %p576 = scmp.lt.s32.totalorder %s31, 1
        %s577 = scalar_select %p576, %s31, 1
        %s578 = scalar_lea.vmem %s10, %s577
        %p579 = pneg %p319
        %p580 = pneg %p316
        %p581 = scmp.lt.s32.totalorder %s31, 1
        %s582 = scalar_select %p581, %s31, 1
        %s583 = smul.addr %s582, 8
        %s584 = smul.addr %s583, 8
        %s585 = scalar_lea.vmem %s11, %s584
        %p586 = pneg %p345
        %p587 = pneg %p342
        %p588 = scmp.lt.s32.totalorder %s31, 1
        %s589 = scalar_select %p588, %s31, 1
        %s590 = scalar_lea.vmem %s12, %s589
        %p591 = pneg %p371
        %p592 = pneg %p368
        %p593 = pneg %p397
        %p594 = pneg %p394
        %s595 = smul.u32 2, %s30
        %p596 = scmp.lt.s32.totalorder %s31, 1
        %s597 = scalar_select %p596, %s31, 1
        %s598 = scalar_lea.vmem %s1, %s597
        %p599 = scmp.lt.s32.totalorder %s31, 1
        %s600 = scalar_select %p599, %s31, 1
        %s601 = scalar_lea.vmem %s2, %s600
        %p602 = scmp.lt.s32.totalorder %s31, 1
        %s603 = scalar_select %p602, %s31, 1
        %s604 = smul.addr %s603, 4
        %s605 = smul.addr %s604, 8
        %s606 = scalar_lea.vmem %s3, %s605
        %p607 = scmp.lt.s32.totalorder %s31, 1
        %s608 = scalar_select %p607, %s31, 1
        %s609 = scalar_lea.vmem %s4, %s608
        %p610 = scmp.lt.s32.totalorder %s31, 1
        %s611 = scalar_select %p610, %s31, 1
        %s612 = smul.addr %s611, 4
        %s613 = smul.addr %s612, 8
        %s614 = scalar_lea.vmem %s5, %s613
        %p615 = scmp.lt.s32.totalorder %s31, 1
        %s616 = scalar_select %p615, %s31, 1
        %s617 = scalar_lea.vmem %s6, %s616
        %p618 = scmp.lt.s32.totalorder %s31, 1
        %s619 = scalar_select %p618, %s31, 1
        %s620 = scalar_lea.vmem %s7, %s619
        %p621 = scmp.lt.s32.totalorder %s31, 1
        %s622 = scalar_select %p621, %s31, 1
        %s623 = scalar_lea.vmem %s8, %s622
        %p624 = scmp.lt.s32.totalorder %s31, 1
        %s625 = scalar_select %p624, %s31, 1
        %s626 = smul.addr %s625, 4
        %s627 = smul.addr %s626, 8
        %s628 = scalar_lea.vmem %s9, %s627
        %p629 = scmp.lt.s32.totalorder %s31, 1
        %s630 = scalar_select %p629, %s31, 1
        %s631 = scalar_lea.vmem %s10, %s630
        %p632 = scmp.lt.s32.totalorder %s31, 1
        %s633 = scalar_select %p632, %s31, 1
        %s634 = smul.addr %s633, 8
        %s635 = smul.addr %s634, 8
        %s636 = scalar_lea.vmem %s11, %s635
        %p637 = scmp.lt.s32.totalorder %s31, 1
        %s638 = scalar_select %p637, %s31, 1
        %s639 = scalar_lea.vmem %s12, %s638
        %s640 = smul.u32 2, %s30
        %p641 = scmp.eq.s32.totalorder %s31, 0
        // Predicated region
        $region77: #{tpu_custom_call.1} parent=71 // pred_check
          %p642 = pneg %p641
        $region78: #{tpu_custom_call.1} parent=71 // pred_check_branch
          %644 = sbr.rel (%p642) target = $region80
        $region79: #{tpu_custom_call.1} parent=71 // pred_region
          %v645 = vld [vmem:[#allocation3] sm:$0xff]
          %v646 = vld [vmem:[#allocation3 + $0x8] sm:$0xff]
          %vm647 = vcmask 261120
          %648 = vst.msk [vmem:[#allocation2] sm:$0xff] %vm647, %v645
          %649 = vst.msk [vmem:[#allocation2 + $0x8] sm:$0xff] %vm647, %v646
        $region80: #{tpu_custom_call.1} parent=71 // pred_fallthru
          _
        %v650 = vld [vmem:[#allocation2] sm:$0xff]
        %v651 = vld [vmem:[#allocation2 + $0x8] sm:$0xff]
        %v652 = vld [vmem:[%s598] sm:$0x1]
        %v653 = vld [vmem:[%s601] sm:$0x1]
        %vm654 = vcmask 261120
        %v655 = vsel %vm654, %v650, 0.0
        %656 = vadd.xlane.f32.xlu0 %v655
        %v657 = vpop.xlane.xlu0 %656
        %v658 = vsel %vm654, %v651, 0.0
        %659 = vadd.xlane.f32.xlu0 %v658
        %v660 = vpop.xlane.xlu0 %659
        %v661 = vrcp.pop 32.0
        %v662 = vmul.f32 %v657, %v661
        %v663 = vmul.f32 %v660, %v661
        %v664 = vsub.f32 %v650, %v662
        %v665 = vsub.f32 %v651, %v663
        %v666 = vmul.f32 %v664, %v664
        %v667 = vmul.f32 %v665, %v665
        %v668 = vsel %vm654, %v666, 0.0
        %669 = vadd.xlane.f32.xlu0 %v668
        %v670 = vpop.xlane.xlu0 %669
        %v671 = vsel %vm654, %v667, 0.0
        %672 = vadd.xlane.f32.xlu0 %v671
        %v673 = vpop.xlane.xlu0 %672
        %v674 = vmul.f32 %v670, %v661
        %v675 = vmul.f32 %v673, %v661
        %v676 = vadd.f32 %v674, 1e-05
        %v677 = vadd.f32 %v675, 1e-05
        %v678 = vrsqrt.pop %v676
        %v679 = vrsqrt.pop %v677
        %v680 = vmul.f32 %v664, %v678
        %v681 = vmul.f32 %v665, %v679
        %v683 = vlaneseq
        %v684 = vshrl.u32 %v683, 7
        %v685 = vsub.s32 0, %v684
        %v686 = vrot.slane %v652, %v685
        %v688 = vmul.f32 %v680, %v686
        %v689 = vmul.f32 %v681, %v686
        %v691 = vlaneseq
        %v692 = vshrl.u32 %v691, 7
        %v693 = vsub.s32 0, %v692
        %v694 = vrot.slane %v653, %v693
        %v696 = vadd.f32 %v688, %v694
        %v697 = vadd.f32 %v689, %v694
        %v698 = vld [vmem:[%s606] sm:$0xff]
        %v699 = vld [vmem:[%s606 + $0x8] sm:$0xff]
        %v700 = vld [vmem:[%s606 + $0x10] sm:$0xff]
        %v701 = vld [vmem:[%s606 + $0x18] sm:$0xff]
        %v702 = vld [vmem:[%s609] sm:$0x1]
        %v704 = vlaneseq
        %v705 = vshrl.u32 %v704, 7
        %v706 = vsub.s32 0, %v705
        %v707 = vrot.slane %v702, %v706
        %v710 = vsel %vm654, %v696, 0
        %v713 = vsel %vm654, %v697, 0
        %715 = vmatprep.subr.mxu0 0.0
        %716 = vmatpush1.msra.mxu0 %v698
        %717 = vmatprep.subr.mxu0 0.0
        %718 = vmatpush1.msra.mxu0 %v699
        %719 = vmatprep.subr.mxu0 0.0
        %720 = vmatpush1.msra.mxu0 %v700
        %721 = vmatprep.subr.mxu0 0.0
        %722 = vmatpush1.msra.mxu0 %v701
        %723 = vmatprep.subr.mxu0 0.0
        %724 = vmatpush1.msra.mxu0 0.0
        %725 = vmatprep.subr.mxu0 0.0
        %726 = vmatpush1.msra.mxu0 0.0
        %727 = vmatprep.subr.mxu0 0.0
        %728 = vmatpush1.msra.mxu0 0.0
        %729 = vmatprep.subr.mxu0 0.0
        %730 = vmatpush1.msra.mxu0 0.0
        %731 = vmatprep.subr.mxu0 0.0
        %732 = vmatpush1.msra.mxu0 0.0
        %733 = vmatprep.subr.mxu0 0.0
        %734 = vmatpush1.msra.mxu0 0.0
        %735 = vmatprep.subr.mxu0 0.0
        %736 = vmatpush1.msra.mxu0 0.0
        %737 = vmatprep.subr.mxu0 0.0
        %738 = vmatpush1.msra.mxu0 0.0
        %739 = vmatprep.subr.mxu0 0.0
        %740 = vmatpush1.msra.mxu0 0.0
        %741 = vmatprep.subr.mxu0 0.0
        %742 = vmatpush1.msra.mxu0 0.0
        %743 = vmatprep.subr.mxu0 0.0
        %744 = vmatpush1.msra.mxu0 0.0
        %745 = vmatprep.subr.mxu0 0.0
        %746 = vmatpush1.msra.mxu0 0.0
        %747 = vmatprep.subr.mxu0 0.0
        %748 = vmatpush1.msra.mxu0 0.0
        %749 = vmatprep.subr.mxu0 0.0
        %750 = vmatpush1.msra.mxu0 0.0
        %751 = vmatprep.subr.mxu0 0.0
        %752 = vmatpush1.msra.mxu0 0.0
        %753 = vmatprep.subr.mxu0 0.0
        %754 = vmatpush1.msra.mxu0 0.0
        %755 = vmatprep.subr.mxu0 0.0
        %756 = vmatpush1.msra.mxu0 0.0
        %757 = vmatprep.subr.mxu0 0.0
        %758 = vmatpush1.msra.mxu0 0.0
        %759 = vmatprep.subr.mxu0 0.0
        %760 = vmatpush1.msra.mxu0 0.0
        %761 = vmatprep.subr.mxu0 0.0
        %762 = vmatpush1.msra.mxu0 0.0
        %763 = vmatprep.subr.mxu0 0.0
        %764 = vmatpush1.msra.mxu0 0.0
        %765 = vmatprep.subr.mxu0 0.0
        %766 = vmatpush1.msra.mxu0 0.0
        %767 = vmatprep.subr.mxu0 0.0
        %768 = vmatpush1.msra.mxu0 0.0
        %769 = vmatprep.subr.mxu0 0.0
        %770 = vmatpush1.msra.mxu0 0.0
        %771 = vmatprep.subr.mxu0 0.0
        %772 = vmatpush1.msra.mxu0 0.0
        %773 = vmatprep.subr.mxu0 0.0
        %774 = vmatpush1.msra.mxu0 0.0
        %775 = vmatprep.subr.mxu0 0.0
        %776 = vmatpush1.msra.mxu0 0.0
        %777 = vmatprep.subr.mxu0 0.0
        %778 = vmatpush1.msra.mxu0 0.0
        %779 = vmatprep.mubr.f32.mxu0 0.0
        %780 = vmatmul.mubr.f32.gmra.mrb[0].mxu0 %v710
        %v781 = vpop.f32.mrb[0].mxu0
        %v782 = vadd.f32 %v707, %v781
        %v783 = vpop.f32.mrb[0].mxu0
        %784 = vmatprep.mubr.f32.mxu0 0.0
        %785 = vmatmul.mubr.f32.gmra.mrb[0].mxu0 %v713
        %v786 = vpop.f32.mrb[0].mxu0
        %v787 = vadd.f32 %v707, %v786
        %v788 = vpop.f32.mrb[0].mxu0
        %789 = vdwg.mxu0
        %v790 = vld [vmem:[%s614] sm:$0xff]
        %v791 = vld [vmem:[%s614 + $0x8] sm:$0xff]
        %v792 = vld [vmem:[%s614 + $0x10] sm:$0xff]
        %v793 = vld [vmem:[%s614 + $0x18] sm:$0xff]
        %795 = vrot.lane.b32.xlu0 %v782, 96
        %v796 = vpop.permute.xlu0 %795
        %vm797 = vcmask 64512
        %v798 = vsel %vm797, %v782, 0
        %v800 = vsel %vm797, %v796, 0
        %802 = vmatprep.subr.mxu0 0.0
        %803 = vmatpush1.xpose.msra.mxu0 %v800
        %804 = vmatprep.subr.mxu0 0.0
        %805 = vmatpush1.xpose.msra.mxu0 0.0
        %806 = vmatprep.subr.mxu0 0.0
        %807 = vmatpush1.xpose.msra.mxu0 0.0
        %808 = vmatprep.subr.mxu0 0.0
        %809 = vmatpush1.xpose.msra.mxu0 0.0
        %810 = vmatprep.subr.mxu0 0.0
        %811 = vmatpush1.xpose.msra.mxu0 0.0
        %812 = vmatprep.subr.mxu0 0.0
        %813 = vmatpush1.xpose.msra.mxu0 0.0
        %814 = vmatprep.subr.mxu0 0.0
        %815 = vmatpush1.xpose.msra.mxu0 0.0
        %816 = vmatprep.subr.mxu0 0.0
        %817 = vmatpush1.xpose.msra.mxu0 0.0
        %818 = vmatprep.subr.mxu0 0.0
        %819 = vmatpush1.xpose.msra.mxu0 0.0
        %820 = vmatprep.subr.mxu0 0.0
        %821 = vmatpush1.xpose.msra.mxu0 0.0
        %822 = vmatprep.subr.mxu0 0.0
        %823 = vmatpush1.xpose.msra.mxu0 0.0
        %824 = vmatprep.subr.mxu0 0.0
        %825 = vmatpush1.xpose.msra.mxu0 0.0
        %826 = vmatprep.subr.mxu0 0.0
        %827 = vmatpush1.xpose.msra.mxu0 0.0
        %828 = vmatprep.subr.mxu0 0.0
        %829 = vmatpush1.xpose.msra.mxu0 0.0
        %830 = vmatprep.subr.mxu0 0.0
        %831 = vmatpush1.xpose.msra.mxu0 0.0
        %832 = vmatprep.subr.mxu0 0.0
        %833 = vmatpush1.xpose.msra.mxu0 0.0
        %834 = vmatprep.subr.mxu0 0.0
        %835 = vmatpush1.xpose.msra.mxu0 0.0
        %836 = vmatprep.subr.mxu0 0.0
        %837 = vmatpush1.xpose.msra.mxu0 0.0
        %838 = vmatprep.subr.mxu0 0.0
        %839 = vmatpush1.xpose.msra.mxu0 0.0
        %840 = vmatprep.subr.mxu0 0.0
        %841 = vmatpush1.xpose.msra.mxu0 0.0
        %842 = vmatprep.subr.mxu0 0.0
        %843 = vmatpush1.xpose.msra.mxu0 0.0
        %844 = vmatprep.subr.mxu0 0.0
        %845 = vmatpush1.xpose.msra.mxu0 0.0
        %846 = vmatprep.subr.mxu0 0.0
        %847 = vmatpush1.xpose.msra.mxu0 0.0
        %848 = vmatprep.subr.mxu0 0.0
        %849 = vmatpush1.xpose.msra.mxu0 0.0
        %850 = vmatprep.subr.mxu0 0.0
        %851 = vmatpush1.xpose.msra.mxu0 0.0
        %852 = vmatprep.subr.mxu0 0.0
        %853 = vmatpush1.xpose.msra.mxu0 0.0
        %854 = vmatprep.subr.mxu0 0.0
        %855 = vmatpush1.xpose.msra.mxu0 0.0
        %856 = vmatprep.subr.mxu0 0.0
        %857 = vmatpush1.xpose.msra.mxu0 0.0
        %858 = vmatprep.subr.mxu0 0.0
        %859 = vmatpush1.xpose.msra.mxu0 0.0
        %860 = vmatprep.subr.mxu0 0.0
        %861 = vmatpush1.xpose.msra.mxu0 0.0
        %862 = vmatprep.subr.mxu0 0.0
        %863 = vmatpush1.xpose.msra.mxu0 0.0
        %864 = vmatprep.subr.mxu0 0.0
        %865 = vmatpush1.xpose.msra.mxu0 0.0
        %866 = vmatprep.mubr.f32.mxu0 0.0
        %867 = vmatmul.mubr.f32.gmra.mrb[0].mxu0 %v798
        %v868 = vpop.f32.mrb[0].mxu0
        %v869 = vadd.f32 0.0, %v868
        %v870 = vpop.f32.mrb[0].mxu0
        %871 = vdwg.mxu0
        %873 = vrot.lane.b32.xlu0 %v787, 96
        %v874 = vpop.permute.xlu0 %873
        %v875 = vsel %vm797, %v787, 0
        %v877 = vsel %vm797, %v874, 0
        %879 = vmatprep.subr.mxu0 0.0
        %880 = vmatpush1.xpose.msra.mxu0 %v877
        %881 = vmatprep.subr.mxu0 0.0
        %882 = vmatpush1.xpose.msra.mxu0 0.0
        %883 = vmatprep.subr.mxu0 0.0
        %884 = vmatpush1.xpose.msra.mxu0 0.0
        %885 = vmatprep.subr.mxu0 0.0
        %886 = vmatpush1.xpose.msra.mxu0 0.0
        %887 = vmatprep.subr.mxu0 0.0
        %888 = vmatpush1.xpose.msra.mxu0 0.0
        %889 = vmatprep.subr.mxu0 0.0
        %890 = vmatpush1.xpose.msra.mxu0 0.0
        %891 = vmatprep.subr.mxu0 0.0
        %892 = vmatpush1.xpose.msra.mxu0 0.0
        %893 = vmatprep.subr.mxu0 0.0
        %894 = vmatpush1.xpose.msra.mxu0 0.0
        %895 = vmatprep.subr.mxu0 0.0
        %896 = vmatpush1.xpose.msra.mxu0 0.0
        %897 = vmatprep.subr.mxu0 0.0
        %898 = vmatpush1.xpose.msra.mxu0 0.0
        %899 = vmatprep.subr.mxu0 0.0
        %900 = vmatpush1.xpose.msra.mxu0 0.0
        %901 = vmatprep.subr.mxu0 0.0
        %902 = vmatpush1.xpose.msra.mxu0 0.0
        %903 = vmatprep.subr.mxu0 0.0
        %904 = vmatpush1.xpose.msra.mxu0 0.0
        %905 = vmatprep.subr.mxu0 0.0
        %906 = vmatpush1.xpose.msra.mxu0 0.0
        %907 = vmatprep.subr.mxu0 0.0
        %908 = vmatpush1.xpose.msra.mxu0 0.0
        %909 = vmatprep.subr.mxu0 0.0
        %910 = vmatpush1.xpose.msra.mxu0 0.0
        %911 = vmatprep.subr.mxu0 0.0
        %912 = vmatpush1.xpose.msra.mxu0 0.0
        %913 = vmatprep.subr.mxu0 0.0
        %914 = vmatpush1.xpose.msra.mxu0 0.0
        %915 = vmatprep.subr.mxu0 0.0
        %916 = vmatpush1.xpose.msra.mxu0 0.0
        %917 = vmatprep.subr.mxu0 0.0
        %918 = vmatpush1.xpose.msra.mxu0 0.0
        %919 = vmatprep.subr.mxu0 0.0
        %920 = vmatpush1.xpose.msra.mxu0 0.0
        %921 = vmatprep.subr.mxu0 0.0
        %922 = vmatpush1.xpose.msra.mxu0 0.0
        %923 = vmatprep.subr.mxu0 0.0
        %924 = vmatpush1.xpose.msra.mxu0 0.0
        %925 = vmatprep.subr.mxu0 0.0
        %926 = vmatpush1.xpose.msra.mxu0 0.0
        %927 = vmatprep.subr.mxu0 0.0
        %928 = vmatpush1.xpose.msra.mxu0 0.0
        %929 = vmatprep.subr.mxu0 0.0
        %930 = vmatpush1.xpose.msra.mxu0 0.0
        %931 = vmatprep.subr.mxu0 0.0
        %932 = vmatpush1.xpose.msra.mxu0 0.0
        %933 = vmatprep.subr.mxu0 0.0
        %934 = vmatpush1.xpose.msra.mxu0 0.0
        %935 = vmatprep.subr.mxu0 0.0
        %936 = vmatpush1.xpose.msra.mxu0 0.0
        %937 = vmatprep.subr.mxu0 0.0
        %938 = vmatpush1.xpose.msra.mxu0 0.0
        %939 = vmatprep.subr.mxu0 0.0
        %940 = vmatpush1.xpose.msra.mxu0 0.0
        %941 = vmatprep.subr.mxu0 0.0
        %942 = vmatpush1.xpose.msra.mxu0 0.0
        %943 = vmatprep.mubr.f32.mxu0 0.0
        %944 = vmatmul.mubr.f32.gmra.mrb[0].mxu0 %v875
        %v945 = vpop.f32.mrb[0].mxu0
        %v946 = vadd.f32 0.0, %v945
        %v947 = vpop.f32.mrb[0].mxu0
        %948 = vdwg.mxu0
        %v949 = vmul.f32 %v869, 0.35355338
        %v950 = vmul.f32 %v946, 0.35355338
        %v951 = vsel %vm797, %v949, -inf
        %952 = vmax.xlane.f32.xlu0 %v951
        %v953 = vpop.xlane.xlu0 %952
        %v954 = vsel %vm797, %v950, -inf
        %955 = vmax.xlane.f32.xlu0 %v954
        %v956 = vpop.xlane.xlu0 %955
        %v957 = vsub.f32 %v949, %v953
        %v958 = vsub.f32 %v950, %v956
        %v959 = vmul.f32 %v957, 1.442695
        %v960 = vpow.pop %v959
        %v961 = vmul.f32 %v958, 1.442695
        %v962 = vpow.pop %v961
        %v963 = vsel %vm797, %v960, 0.0
        %964 = vadd.xlane.f32.xlu0 %v963
        %v965 = vpop.xlane.xlu0 %964
        %v966 = vsel %vm797, %v962, 0.0
        %967 = vadd.xlane.f32.xlu0 %v966
        %v968 = vpop.xlane.xlu0 %967
        %v969 = vrcp.pop %v965
        %v970 = vrcp.pop %v968
        %v971 = vmul.f32 %v960, %v969
        %v972 = vmul.f32 %v962, %v970
        %973 = vrot.lane.b32.xlu0 %v782, 64
        %v974 = vpop.permute.xlu0 %973
        %v977 = vsel %vm797, %v971, 0
        %979 = vmatprep.subr.mxu0 0.0
        %980 = vmatpush1.msra.mxu0 %v974
        %981 = vmatprep.subr.mxu0 0.0
        %982 = vmatpush1.msra.mxu0 0.0
        %983 = vmatprep.subr.mxu0 0.0
        %984 = vmatpush1.msra.mxu0 0.0
        %985 = vmatprep.subr.mxu0 0.0
        %986 = vmatpush1.msra.mxu0 0.0
        %987 = vmatprep.subr.mxu0 0.0
        %988 = vmatpush1.msra.mxu0 0.0
        %989 = vmatprep.subr.mxu0 0.0
        %990 = vmatpush1.msra.mxu0 0.0
        %991 = vmatprep.subr.mxu0 0.0
        %992 = vmatpush1.msra.mxu0 0.0
        %993 = vmatprep.subr.mxu0 0.0
        %994 = vmatpush1.msra.mxu0 0.0
        %995 = vmatprep.subr.mxu0 0.0
        %996 = vmatpush1.msra.mxu0 0.0
        %997 = vmatprep.subr.mxu0 0.0
        %998 = vmatpush1.msra.mxu0 0.0
        %999 = vmatprep.subr.mxu0 0.0
        %1000 = vmatpush1.msra.mxu0 0.0
        %1001 = vmatprep.subr.mxu0 0.0
        %1002 = vmatpush1.msra.mxu0 0.0
        %1003 = vmatprep.subr.mxu0 0.0
        %1004 = vmatpush1.msra.mxu0 0.0
        %1005 = vmatprep.subr.mxu0 0.0
        %1006 = vmatpush1.msra.mxu0 0.0
        %1007 = vmatprep.subr.mxu0 0.0
        %1008 = vmatpush1.msra.mxu0 0.0
        %1009 = vmatprep.subr.mxu0 0.0
        %1010 = vmatpush1.msra.mxu0 0.0
        %1011 = vmatprep.subr.mxu0 0.0
        %1012 = vmatpush1.msra.mxu0 0.0
        %1013 = vmatprep.subr.mxu0 0.0
        %1014 = vmatpush1.msra.mxu0 0.0
        %1015 = vmatprep.subr.mxu0 0.0
        %1016 = vmatpush1.msra.mxu0 0.0
        %1017 = vmatprep.subr.mxu0 0.0
        %1018 = vmatpush1.msra.mxu0 0.0
        %1019 = vmatprep.subr.mxu0 0.0
        %1020 = vmatpush1.msra.mxu0 0.0
        %1021 = vmatprep.subr.mxu0 0.0
        %1022 = vmatpush1.msra.mxu0 0.0
        %1023 = vmatprep.subr.mxu0 0.0
        %1024 = vmatpush1.msra.mxu0 0.0
        %1025 = vmatprep.subr.mxu0 0.0
        %1026 = vmatpush1.msra.mxu0 0.0
        %1027 = vmatprep.subr.mxu0 0.0
        %1028 = vmatpush1.msra.mxu0 0.0
        %1029 = vmatprep.subr.mxu0 0.0
        %1030 = vmatpush1.msra.mxu0 0.0
        %1031 = vmatprep.subr.mxu0 0.0
        %1032 = vmatpush1.msra.mxu0 0.0
        %1033 = vmatprep.subr.mxu0 0.0
        %1034 = vmatpush1.msra.mxu0 0.0
        %1035 = vmatprep.subr.mxu0 0.0
        %1036 = vmatpush1.msra.mxu0 0.0
        %1037 = vmatprep.subr.mxu0 0.0
        %1038 = vmatpush1.msra.mxu0 0.0
        %1039 = vmatprep.subr.mxu0 0.0
        %1040 = vmatpush1.msra.mxu0 0.0
        %1041 = vmatprep.subr.mxu0 0.0
        %1042 = vmatpush1.msra.mxu0 0.0
        %1043 = vmatprep.mubr.f32.mxu0 0.0
        %1044 = vmatmul.mubr.f32.gmra.mrb[0].mxu0 %v977
        %v1045 = vpop.f32.mrb[0].mxu0
        %v1046 = vadd.f32 0.0, %v1045
        %v1047 = vpop.f32.mrb[0].mxu0
        %1048 = vdwg.mxu0
        %1049 = vrot.lane.b32.xlu0 %v787, 64
        %v1050 = vpop.permute.xlu0 %1049
        %v1053 = vsel %vm797, %v972, 0
        %1055 = vmatprep.subr.mxu0 0.0
        %1056 = vmatpush1.msra.mxu0 %v1050
        %1057 = vmatprep.subr.mxu0 0.0
        %1058 = vmatpush1.msra.mxu0 0.0
        %1059 = vmatprep.subr.mxu0 0.0
        %1060 = vmatpush1.msra.mxu0 0.0
        %1061 = vmatprep.subr.mxu0 0.0
        %1062 = vmatpush1.msra.mxu0 0.0
        %1063 = vmatprep.subr.mxu0 0.0
        %1064 = vmatpush1.msra.mxu0 0.0
        %1065 = vmatprep.subr.mxu0 0.0
        %1066 = vmatpush1.msra.mxu0 0.0
        %1067 = vmatprep.subr.mxu0 0.0
        %1068 = vmatpush1.msra.mxu0 0.0
        %1069 = vmatprep.subr.mxu0 0.0
        %1070 = vmatpush1.msra.mxu0 0.0
        %1071 = vmatprep.subr.mxu0 0.0
        %1072 = vmatpush1.msra.mxu0 0.0
        %1073 = vmatprep.subr.mxu0 0.0
        %1074 = vmatpush1.msra.mxu0 0.0
        %1075 = vmatprep.subr.mxu0 0.0
        %1076 = vmatpush1.msra.mxu0 0.0
        %1077 = vmatprep.subr.mxu0 0.0
        %1078 = vmatpush1.msra.mxu0 0.0
        %1079 = vmatprep.subr.mxu0 0.0
        %1080 = vmatpush1.msra.mxu0 0.0
        %1081 = vmatprep.subr.mxu0 0.0
        %1082 = vmatpush1.msra.mxu0 0.0
        %1083 = vmatprep.subr.mxu0 0.0
        %1084 = vmatpush1.msra.mxu0 0.0
        %1085 = vmatprep.subr.mxu0 0.0
        %1086 = vmatpush1.msra.mxu0 0.0
        %1087 = vmatprep.subr.mxu0 0.0
        %1088 = vmatpush1.msra.mxu0 0.0
        %1089 = vmatprep.subr.mxu0 0.0
        %1090 = vmatpush1.msra.mxu0 0.0
        %1091 = vmatprep.subr.mxu0 0.0
        %1092 = vmatpush1.msra.mxu0 0.0
        %1093 = vmatprep.subr.mxu0 0.0
        %1094 = vmatpush1.msra.mxu0 0.0
        %1095 = vmatprep.subr.mxu0 0.0
        %1096 = vmatpush1.msra.mxu0 0.0
        %1097 = vmatprep.subr.mxu0 0.0
        %1098 = vmatpush1.msra.mxu0 0.0
        %1099 = vmatprep.subr.mxu0 0.0
        %1100 = vmatpush1.msra.mxu0 0.0
        %1101 = vmatprep.subr.mxu0 0.0
        %1102 = vmatpush1.msra.mxu0 0.0
        %1103 = vmatprep.subr.mxu0 0.0
        %1104 = vmatpush1.msra.mxu0 0.0
        %1105 = vmatprep.subr.mxu0 0.0
        %1106 = vmatpush1.msra.mxu0 0.0
        %1107 = vmatprep.subr.mxu0 0.0
        %1108 = vmatpush1.msra.mxu0 0.0
        %1109 = vmatprep.subr.mxu0 0.0
        %1110 = vmatpush1.msra.mxu0 0.0
        %1111 = vmatprep.subr.mxu0 0.0
        %1112 = vmatpush1.msra.mxu0 0.0
        %1113 = vmatprep.subr.mxu0 0.0
        %1114 = vmatpush1.msra.mxu0 0.0
        %1115 = vmatprep.subr.mxu0 0.0
        %1116 = vmatpush1.msra.mxu0 0.0
        %1117 = vmatprep.subr.mxu0 0.0
        %1118 = vmatpush1.msra.mxu0 0.0
        %1119 = vmatprep.mubr.f32.mxu0 0.0
        %1120 = vmatmul.mubr.f32.gmra.mrb[0].mxu0 %v1053
        %v1121 = vpop.f32.mrb[0].mxu0
        %v1122 = vadd.f32 0.0, %v1121
        %v1123 = vpop.f32.mrb[0].mxu0
        %1124 = vdwg.mxu0
        %1125 = vrot.lane.b32.xlu0 %v782, 120
        %v1126 = vpop.permute.xlu0 %1125
        %1127 = vrot.lane.b32.xlu0 %v782, 88
        %v1128 = vpop.permute.xlu0 %1127
        %v1129 = vsel %vm797, %v1126, 0
        %v1131 = vsel %vm797, %v1128, 0
        %1133 = vmatprep.subr.mxu0 0.0
        %1134 = vmatpush1.xpose.msra.mxu0 %v1131
        %1135 = vmatprep.subr.mxu0 0.0
        %1136 = vmatpush1.xpose.msra.mxu0 0.0
        %1137 = vmatprep.subr.mxu0 0.0
        %1138 = vmatpush1.xpose.msra.mxu0 0.0
        %1139 = vmatprep.subr.mxu0 0.0
        %1140 = vmatpush1.xpose.msra.mxu0 0.0
        %1141 = vmatprep.subr.mxu0 0.0
        %1142 = vmatpush1.xpose.msra.mxu0 0.0
        %1143 = vmatprep.subr.mxu0 0.0
        %1144 = vmatpush1.xpose.msra.mxu0 0.0
        %1145 = vmatprep.subr.mxu0 0.0
        %1146 = vmatpush1.xpose.msra.mxu0 0.0
        %1147 = vmatprep.subr.mxu0 0.0
        %1148 = vmatpush1.xpose.msra.mxu0 0.0
        %1149 = vmatprep.subr.mxu0 0.0
        %1150 = vmatpush1.xpose.msra.mxu0 0.0
        %1151 = vmatprep.subr.mxu0 0.0
        %1152 = vmatpush1.xpose.msra.mxu0 0.0
        %1153 = vmatprep.subr.mxu0 0.0
        %1154 = vmatpush1.xpose.msra.mxu0 0.0
        %1155 = vmatprep.subr.mxu0 0.0
        %1156 = vmatpush1.xpose.msra.mxu0 0.0
        %1157 = vmatprep.subr.mxu0 0.0
        %1158 = vmatpush1.xpose.msra.mxu0 0.0
        %1159 = vmatprep.subr.mxu0 0.0
        %1160 = vmatpush1.xpose.msra.mxu0 0.0
        %1161 = vmatprep.subr.mxu0 0.0
        %1162 = vmatpush1.xpose.msra.mxu0 0.0
        %1163 = vmatprep.subr.mxu0 0.0
        %1164 = vmatpush1.xpose.msra.mxu0 0.0
        %1165 = vmatprep.subr.mxu0 0.0
        %1166 = vmatpush1.xpose.msra.mxu0 0.0
        %1167 = vmatprep.subr.mxu0 0.0
        %1168 = vmatpush1.xpose.msra.mxu0 0.0
        %1169 = vmatprep.subr.mxu0 0.0
        %1170 = vmatpush1.xpose.msra.mxu0 0.0
        %1171 = vmatprep.subr.mxu0 0.0
        %1172 = vmatpush1.xpose.msra.mxu0 0.0
        %1173 = vmatprep.subr.mxu0 0.0
        %1174 = vmatpush1.xpose.msra.mxu0 0.0
        %1175 = vmatprep.subr.mxu0 0.0
        %1176 = vmatpush1.xpose.msra.mxu0 0.0
        %1177 = vmatprep.subr.mxu0 0.0
        %1178 = vmatpush1.xpose.msra.mxu0 0.0
        %1179 = vmatprep.subr.mxu0 0.0
        %1180 = vmatpush1.xpose.msra.mxu0 0.0
        %1181 = vmatprep.subr.mxu0 0.0
        %1182 = vmatpush1.xpose.msra.mxu0 0.0
        %1183 = vmatprep.subr.mxu0 0.0
        %1184 = vmatpush1.xpose.msra.mxu0 0.0
        %1185 = vmatprep.subr.mxu0 0.0
        %1186 = vmatpush1.xpose.msra.mxu0 0.0
        %1187 = vmatprep.subr.mxu0 0.0
        %1188 = vmatpush1.xpose.msra.mxu0 0.0
        %1189 = vmatprep.subr.mxu0 0.0
        %1190 = vmatpush1.xpose.msra.mxu0 0.0
        %1191 = vmatprep.subr.mxu0 0.0
        %1192 = vmatpush1.xpose.msra.mxu0 0.0
        %1193 = vmatprep.subr.mxu0 0.0
        %1194 = vmatpush1.xpose.msra.mxu0 0.0
        %1195 = vmatprep.subr.mxu0 0.0
        %1196 = vmatpush1.xpose.msra.mxu0 0.0
        %1197 = vmatprep.mubr.f32.mxu0 0.0
        %1198 = vmatmul.mubr.f32.gmra.mrb[0].mxu0 %v1129
        %v1199 = vpop.f32.mrb[0].mxu0
        %v1200 = vadd.f32 0.0, %v1199
        %v1201 = vpop.f32.mrb[0].mxu0
        %1202 = vdwg.mxu0
        %1203 = vrot.lane.b32.xlu0 %v787, 120
        %v1204 = vpop.permute.xlu0 %1203
        %1205 = vrot.lane.b32.xlu0 %v787, 88
        %v1206 = vpop.permute.xlu0 %1205
        %v1207 = vsel %vm797, %v1204, 0
        %v1209 = vsel %vm797, %v1206, 0
        %1211 = vmatprep.subr.mxu0 0.0
        %1212 = vmatpush1.xpose.msra.mxu0 %v1209
        %1213 = vmatprep.subr.mxu0 0.0
        %1214 = vmatpush1.xpose.msra.mxu0 0.0
        %1215 = vmatprep.subr.mxu0 0.0
        %1216 = vmatpush1.xpose.msra.mxu0 0.0
        %1217 = vmatprep.subr.mxu0 0.0
        %1218 = vmatpush1.xpose.msra.mxu0 0.0
        %1219 = vmatprep.subr.mxu0 0.0
        %1220 = vmatpush1.xpose.msra.mxu0 0.0
        %1221 = vmatprep.subr.mxu0 0.0
        %1222 = vmatpush1.xpose.msra.mxu0 0.0
        %1223 = vmatprep.subr.mxu0 0.0
        %1224 = vmatpush1.xpose.msra.mxu0 0.0
        %1225 = vmatprep.subr.mxu0 0.0
        %1226 = vmatpush1.xpose.msra.mxu0 0.0
        %1227 = vmatprep.subr.mxu0 0.0
        %1228 = vmatpush1.xpose.msra.mxu0 0.0
        %1229 = vmatprep.subr.mxu0 0.0
        %1230 = vmatpush1.xpose.msra.mxu0 0.0
        %1231 = vmatprep.subr.mxu0 0.0
        %1232 = vmatpush1.xpose.msra.mxu0 0.0
        %1233 = vmatprep.subr.mxu0 0.0
        %1234 = vmatpush1.xpose.msra.mxu0 0.0
        %1235 = vmatprep.subr.mxu0 0.0
        %1236 = vmatpush1.xpose.msra.mxu0 0.0
        %1237 = vmatprep.subr.mxu0 0.0
        %1238 = vmatpush1.xpose.msra.mxu0 0.0
        %1239 = vmatprep.subr.mxu0 0.0
        %1240 = vmatpush1.xpose.msra.mxu0 0.0
        %1241 = vmatprep.subr.mxu0 0.0
        %1242 = vmatpush1.xpose.msra.mxu0 0.0
        %1243 = vmatprep.subr.mxu0 0.0
        %1244 = vmatpush1.xpose.msra.mxu0 0.0
        %1245 = vmatprep.subr.mxu0 0.0
        %1246 = vmatpush1.xpose.msra.mxu0 0.0
        %1247 = vmatprep.subr.mxu0 0.0
        %1248 = vmatpush1.xpose.msra.mxu0 0.0
        %1249 = vmatprep.subr.mxu0 0.0
        %1250 = vmatpush1.xpose.msra.mxu0 0.0
        %1251 = vmatprep.subr.mxu0 0.0
        %1252 = vmatpush1.xpose.msra.mxu0 0.0
        %1253 = vmatprep.subr.mxu0 0.0
        %1254 = vmatpush1.xpose.msra.mxu0 0.0
        %1255 = vmatprep.subr.mxu0 0.0
        %1256 = vmatpush1.xpose.msra.mxu0 0.0
        %1257 = vmatprep.subr.mxu0 0.0
        %1258 = vmatpush1.xpose.msra.mxu0 0.0
        %1259 = vmatprep.subr.mxu0 0.0
        %1260 = vmatpush1.xpose.msra.mxu0 0.0
        %1261 = vmatprep.subr.mxu0 0.0
        %1262 = vmatpush1.xpose.msra.mxu0 0.0
        %1263 = vmatprep.subr.mxu0 0.0
        %1264 = vmatpush1.xpose.msra.mxu0 0.0
        %1265 = vmatprep.subr.mxu0 0.0
        %1266 = vmatpush1.xpose.msra.mxu0 0.0
        %1267 = vmatprep.subr.mxu0 0.0
        %1268 = vmatpush1.xpose.msra.mxu0 0.0
        %1269 = vmatprep.subr.mxu0 0.0
        %1270 = vmatpush1.xpose.msra.mxu0 0.0
        %1271 = vmatprep.subr.mxu0 0.0
        %1272 = vmatpush1.xpose.msra.mxu0 0.0
        %1273 = vmatprep.subr.mxu0 0.0
        %1274 = vmatpush1.xpose.msra.mxu0 0.0
        %1275 = vmatprep.mubr.f32.mxu0 0.0
        %1276 = vmatmul.mubr.f32.gmra.mrb[0].mxu0 %v1207
        %v1277 = vpop.f32.mrb[0].mxu0
        %v1278 = vadd.f32 0.0, %v1277
        %v1279 = vpop.f32.mrb[0].mxu0
        %1280 = vdwg.mxu0
        %v1281 = vmul.f32 %v1200, 0.35355338
        %v1282 = vmul.f32 %v1278, 0.35355338
        %v1283 = vsel %vm797, %v1281, -inf
        %1284 = vmax.xlane.f32.xlu0 %v1283
        %v1285 = vpop.xlane.xlu0 %1284
        %v1286 = vsel %vm797, %v1282, -inf
        %1287 = vmax.xlane.f32.xlu0 %v1286
        %v1288 = vpop.xlane.xlu0 %1287
        %v1289 = vsub.f32 %v1281, %v1285
        %v1290 = vsub.f32 %v1282, %v1288
        %v1291 = vmul.f32 %v1289, 1.442695
        %v1292 = vpow.pop %v1291
        %v1293 = vmul.f32 %v1290, 1.442695
        %v1294 = vpow.pop %v1293
        %v1295 = vsel %vm797, %v1292, 0.0
        %1296 = vadd.xlane.f32.xlu0 %v1295
        %v1297 = vpop.xlane.xlu0 %1296
        %v1298 = vsel %vm797, %v1294, 0.0
        %1299 = vadd.xlane.f32.xlu0 %v1298
        %v1300 = vpop.xlane.xlu0 %1299
        %v1301 = vrcp.pop %v1297
        %v1302 = vrcp.pop %v1300
        %v1303 = vmul.f32 %v1292, %v1301
        %v1304 = vmul.f32 %v1294, %v1302
        %1305 = vrot.lane.b32.xlu0 %v782, 56
        %v1306 = vpop.permute.xlu0 %1305
        %v1309 = vsel %vm797, %v1303, 0
        %1311 = vmatprep.subr.mxu0 0.0
        %1312 = vmatpush1.msra.mxu0 %v1306
        %1313 = vmatprep.subr.mxu0 0.0
        %1314 = vmatpush1.msra.mxu0 0.0
        %1315 = vmatprep.subr.mxu0 0.0
        %1316 = vmatpush1.msra.mxu0 0.0
        %1317 = vmatprep.subr.mxu0 0.0
        %1318 = vmatpush1.msra.mxu0 0.0
        %1319 = vmatprep.subr.mxu0 0.0
        %1320 = vmatpush1.msra.mxu0 0.0
        %1321 = vmatprep.subr.mxu0 0.0
        %1322 = vmatpush1.msra.mxu0 0.0
        %1323 = vmatprep.subr.mxu0 0.0
        %1324 = vmatpush1.msra.mxu0 0.0
        %1325 = vmatprep.subr.mxu0 0.0
        %1326 = vmatpush1.msra.mxu0 0.0
        %1327 = vmatprep.subr.mxu0 0.0
        %1328 = vmatpush1.msra.mxu0 0.0
        %1329 = vmatprep.subr.mxu0 0.0
        %1330 = vmatpush1.msra.mxu0 0.0
        %1331 = vmatprep.subr.mxu0 0.0
        %1332 = vmatpush1.msra.mxu0 0.0
        %1333 = vmatprep.subr.mxu0 0.0
        %1334 = vmatpush1.msra.mxu0 0.0
        %1335 = vmatprep.subr.mxu0 0.0
        %1336 = vmatpush1.msra.mxu0 0.0
        %1337 = vmatprep.subr.mxu0 0.0
        %1338 = vmatpush1.msra.mxu0 0.0
        %1339 = vmatprep.subr.mxu0 0.0
        %1340 = vmatpush1.msra.mxu0 0.0
        %1341 = vmatprep.subr.mxu0 0.0
        %1342 = vmatpush1.msra.mxu0 0.0
        %1343 = vmatprep.subr.mxu0 0.0
        %1344 = vmatpush1.msra.mxu0 0.0
        %1345 = vmatprep.subr.mxu0 0.0
        %1346 = vmatpush1.msra.mxu0 0.0
        %1347 = vmatprep.subr.mxu0 0.0
        %1348 = vmatpush1.msra.mxu0 0.0
        %1349 = vmatprep.subr.mxu0 0.0
        %1350 = vmatpush1.msra.mxu0 0.0
        %1351 = vmatprep.subr.mxu0 0.0
        %1352 = vmatpush1.msra.mxu0 0.0
        %1353 = vmatprep.subr.mxu0 0.0
        %1354 = vmatpush1.msra.mxu0 0.0
        %1355 = vmatprep.subr.mxu0 0.0
        %1356 = vmatpush1.msra.mxu0 0.0
        %1357 = vmatprep.subr.mxu0 0.0
        %1358 = vmatpush1.msra.mxu0 0.0
        %1359 = vmatprep.subr.mxu0 0.0
        %1360 = vmatpush1.msra.mxu0 0.0
        %1361 = vmatprep.subr.mxu0 0.0
        %1362 = vmatpush1.msra.mxu0 0.0
        %1363 = vmatprep.subr.mxu0 0.0
        %1364 = vmatpush1.msra.mxu0 0.0
        %1365 = vmatprep.subr.mxu0 0.0
        %1366 = vmatpush1.msra.mxu0 0.0
        %1367 = vmatprep.subr.mxu0 0.0
        %1368 = vmatpush1.msra.mxu0 0.0
        %1369 = vmatprep.subr.mxu0 0.0
        %1370 = vmatpush1.msra.mxu0 0.0
        %1371 = vmatprep.subr.mxu0 0.0
        %1372 = vmatpush1.msra.mxu0 0.0
        %1373 = vmatprep.subr.mxu0 0.0
        %1374 = vmatpush1.msra.mxu0 0.0
        %1375 = vmatprep.mubr.f32.mxu0 0.0
        %1376 = vmatmul.mubr.f32.gmra.mrb[0].mxu0 %v1309
        %v1377 = vpop.f32.mrb[0].mxu0
        %v1378 = vadd.f32 0.0, %v1377
        %v1379 = vpop.f32.mrb[0].mxu0
        %1380 = vdwg.mxu0
        %1381 = vrot.lane.b32.xlu0 %v787, 56
        %v1382 = vpop.permute.xlu0 %1381
        %v1385 = vsel %vm797, %v1304, 0
        %1387 = vmatprep.subr.mxu0 0.0
        %1388 = vmatpush1.msra.mxu0 %v1382
        %1389 = vmatprep.subr.mxu0 0.0
        %1390 = vmatpush1.msra.mxu0 0.0
        %1391 = vmatprep.subr.mxu0 0.0
        %1392 = vmatpush1.msra.mxu0 0.0
        %1393 = vmatprep.subr.mxu0 0.0
        %1394 = vmatpush1.msra.mxu0 0.0
        %1395 = vmatprep.subr.mxu0 0.0
        %1396 = vmatpush1.msra.mxu0 0.0
        %1397 = vmatprep.subr.mxu0 0.0
        %1398 = vmatpush1.msra.mxu0 0.0
        %1399 = vmatprep.subr.mxu0 0.0
        %1400 = vmatpush1.msra.mxu0 0.0
        %1401 = vmatprep.subr.mxu0 0.0
        %1402 = vmatpush1.msra.mxu0 0.0
        %1403 = vmatprep.subr.mxu0 0.0
        %1404 = vmatpush1.msra.mxu0 0.0
        %1405 = vmatprep.subr.mxu0 0.0
        %1406 = vmatpush1.msra.mxu0 0.0
        %1407 = vmatprep.subr.mxu0 0.0
        %1408 = vmatpush1.msra.mxu0 0.0
        %1409 = vmatprep.subr.mxu0 0.0
        %1410 = vmatpush1.msra.mxu0 0.0
        %1411 = vmatprep.subr.mxu0 0.0
        %1412 = vmatpush1.msra.mxu0 0.0
        %1413 = vmatprep.subr.mxu0 0.0
        %1414 = vmatpush1.msra.mxu0 0.0
        %1415 = vmatprep.subr.mxu0 0.0
        %1416 = vmatpush1.msra.mxu0 0.0
        %1417 = vmatprep.subr.mxu0 0.0
        %1418 = vmatpush1.msra.mxu0 0.0
        %1419 = vmatprep.subr.mxu0 0.0
        %1420 = vmatpush1.msra.mxu0 0.0
        %1421 = vmatprep.subr.mxu0 0.0
        %1422 = vmatpush1.msra.mxu0 0.0
        %1423 = vmatprep.subr.mxu0 0.0
        %1424 = vmatpush1.msra.mxu0 0.0
        %1425 = vmatprep.subr.mxu0 0.0
        %1426 = vmatpush1.msra.mxu0 0.0
        %1427 = vmatprep.subr.mxu0 0.0
        %1428 = vmatpush1.msra.mxu0 0.0
        %1429 = vmatprep.subr.mxu0 0.0
        %1430 = vmatpush1.msra.mxu0 0.0
        %1431 = vmatprep.subr.mxu0 0.0
        %1432 = vmatpush1.msra.mxu0 0.0
        %1433 = vmatprep.subr.mxu0 0.0
        %1434 = vmatpush1.msra.mxu0 0.0
        %1435 = vmatprep.subr.mxu0 0.0
        %1436 = vmatpush1.msra.mxu0 0.0
        %1437 = vmatprep.subr.mxu0 0.0
        %1438 = vmatpush1.msra.mxu0 0.0
        %1439 = vmatprep.subr.mxu0 0.0
        %1440 = vmatpush1.msra.mxu0 0.0
        %1441 = vmatprep.subr.mxu0 0.0
        %1442 = vmatpush1.msra.mxu0 0.0
        %1443 = vmatprep.subr.mxu0 0.0
        %1444 = vmatpush1.msra.mxu0 0.0
        %1445 = vmatprep.subr.mxu0 0.0
        %1446 = vmatpush1.msra.mxu0 0.0
        %1447 = vmatprep.subr.mxu0 0.0
        %1448 = vmatpush1.msra.mxu0 0.0
        %1449 = vmatprep.subr.mxu0 0.0
        %1450 = vmatpush1.msra.mxu0 0.0
        %1451 = vmatprep.mubr.f32.mxu0 0.0
        %1452 = vmatmul.mubr.f32.gmra.mrb[0].mxu0 %v1385
        %v1453 = vpop.f32.mrb[0].mxu0
        %v1454 = vadd.f32 0.0, %v1453
        %v1455 = vpop.f32.mrb[0].mxu0
        %1456 = vdwg.mxu0
        %v1458 = vsel %vm797, %v1378, 0
        %v1461 = vsel %vm797, %v1454, 0
        %1463 = vmatprep.subr.mxu0 0.0
        %1464 = vmatpush1.msra.mxu0 %v791
        %1465 = vmatprep.subr.mxu0 0.0
        %1466 = vmatpush1.msra.mxu0 0.0
        %1467 = vmatprep.subr.mxu0 0.0
        %1468 = vmatpush1.msra.mxu0 0.0
        %1469 = vmatprep.subr.mxu0 0.0
        %1470 = vmatpush1.msra.mxu0 0.0
        %1471 = vmatprep.subr.mxu0 0.0
        %1472 = vmatpush1.msra.mxu0 0.0
        %1473 = vmatprep.subr.mxu0 0.0
        %1474 = vmatpush1.msra.mxu0 0.0
        %1475 = vmatprep.subr.mxu0 0.0
        %1476 = vmatpush1.msra.mxu0 0.0
        %1477 = vmatprep.subr.mxu0 0.0
        %1478 = vmatpush1.msra.mxu0 0.0
        %1479 = vmatprep.subr.mxu0 0.0
        %1480 = vmatpush1.msra.mxu0 0.0
        %1481 = vmatprep.subr.mxu0 0.0
        %1482 = vmatpush1.msra.mxu0 0.0
        %1483 = vmatprep.subr.mxu0 0.0
        %1484 = vmatpush1.msra.mxu0 0.0
        %1485 = vmatprep.subr.mxu0 0.0
        %1486 = vmatpush1.msra.mxu0 0.0
        %1487 = vmatprep.subr.mxu0 0.0
        %1488 = vmatpush1.msra.mxu0 0.0
        %1489 = vmatprep.subr.mxu0 0.0
        %1490 = vmatpush1.msra.mxu0 0.0
        %1491 = vmatprep.subr.mxu0 0.0
        %1492 = vmatpush1.msra.mxu0 0.0
        %1493 = vmatprep.subr.mxu0 0.0
        %1494 = vmatpush1.msra.mxu0 0.0
        %1495 = vmatprep.subr.mxu0 0.0
        %1496 = vmatpush1.msra.mxu0 0.0
        %1497 = vmatprep.subr.mxu0 0.0
        %1498 = vmatpush1.msra.mxu0 0.0
        %1499 = vmatprep.subr.mxu0 0.0
        %1500 = vmatpush1.msra.mxu0 0.0
        %1501 = vmatprep.subr.mxu0 0.0
        %1502 = vmatpush1.msra.mxu0 0.0
        %1503 = vmatprep.subr.mxu0 0.0
        %1504 = vmatpush1.msra.mxu0 0.0
        %1505 = vmatprep.subr.mxu0 0.0
        %1506 = vmatpush1.msra.mxu0 0.0
        %1507 = vmatprep.subr.mxu0 0.0
        %1508 = vmatpush1.msra.mxu0 0.0
        %1509 = vmatprep.subr.mxu0 0.0
        %1510 = vmatpush1.msra.mxu0 0.0
        %1511 = vmatprep.subr.mxu0 0.0
        %1512 = vmatpush1.msra.mxu0 0.0
        %1513 = vmatprep.subr.mxu0 0.0
        %1514 = vmatpush1.msra.mxu0 0.0
        %1515 = vmatprep.subr.mxu0 0.0
        %1516 = vmatpush1.msra.mxu0 0.0
        %1517 = vmatprep.subr.mxu0 0.0
        %1518 = vmatpush1.msra.mxu0 0.0
        %1519 = vmatprep.subr.mxu0 0.0
        %1520 = vmatpush1.msra.mxu0 0.0
        %1521 = vmatprep.subr.mxu0 0.0
        %1522 = vmatpush1.msra.mxu0 0.0
        %1523 = vmatprep.subr.mxu0 0.0
        %1524 = vmatpush1.msra.mxu0 0.0
        %1525 = vmatprep.subr.mxu0 0.0
        %1526 = vmatpush1.msra.mxu0 0.0
        %1527 = vmatprep.mubr.f32.mxu0 0.0
        %1528 = vmatmul.mubr.f32.gmra.mrb[0].mxu0 %v1458
        %v1529 = vpop.f32.mrb[0].mxu0
        %v1530 = vadd.f32 0.0, %v1529
        %v1531 = vpop.f32.mrb[0].mxu0
        %1532 = vmatprep.mubr.f32.mxu0 0.0
        %1533 = vmatmul.mubr.f32.gmra.mrb[0].mxu0 %v1461
        %v1534 = vpop.f32.mrb[0].mxu0
        %v1535 = vadd.f32 0.0, %v1534
        %v1536 = vpop.f32.mrb[0].mxu0
        %1537 = vdwg.mxu0
        %v1539 = vsel %vm797, %v1046, 0
        %v1542 = vsel %vm797, %v1122, 0
        %1544 = vmatprep.subr.mxu0 0.0
        %1545 = vmatpush1.msra.mxu0 %v790
        %1546 = vmatprep.subr.mxu0 0.0
        %1547 = vmatpush1.msra.mxu0 0.0
        %1548 = vmatprep.subr.mxu0 0.0
        %1549 = vmatpush1.msra.mxu0 0.0
        %1550 = vmatprep.subr.mxu0 0.0
        %1551 = vmatpush1.msra.mxu0 0.0
        %1552 = vmatprep.subr.mxu0 0.0
        %1553 = vmatpush1.msra.mxu0 0.0
        %1554 = vmatprep.subr.mxu0 0.0
        %1555 = vmatpush1.msra.mxu0 0.0
        %1556 = vmatprep.subr.mxu0 0.0
        %1557 = vmatpush1.msra.mxu0 0.0
        %1558 = vmatprep.subr.mxu0 0.0
        %1559 = vmatpush1.msra.mxu0 0.0
        %1560 = vmatprep.subr.mxu0 0.0
        %1561 = vmatpush1.msra.mxu0 0.0
        %1562 = vmatprep.subr.mxu0 0.0
        %1563 = vmatpush1.msra.mxu0 0.0
        %1564 = vmatprep.subr.mxu0 0.0
        %1565 = vmatpush1.msra.mxu0 0.0
        %1566 = vmatprep.subr.mxu0 0.0
        %1567 = vmatpush1.msra.mxu0 0.0
        %1568 = vmatprep.subr.mxu0 0.0
        %1569 = vmatpush1.msra.mxu0 0.0
        %1570 = vmatprep.subr.mxu0 0.0
        %1571 = vmatpush1.msra.mxu0 0.0
        %1572 = vmatprep.subr.mxu0 0.0
        %1573 = vmatpush1.msra.mxu0 0.0
        %1574 = vmatprep.subr.mxu0 0.0
        %1575 = vmatpush1.msra.mxu0 0.0
        %1576 = vmatprep.subr.mxu0 0.0
        %1577 = vmatpush1.msra.mxu0 0.0
        %1578 = vmatprep.subr.mxu0 0.0
        %1579 = vmatpush1.msra.mxu0 0.0
        %1580 = vmatprep.subr.mxu0 0.0
        %1581 = vmatpush1.msra.mxu0 0.0
        %1582 = vmatprep.subr.mxu0 0.0
        %1583 = vmatpush1.msra.mxu0 0.0
        %1584 = vmatprep.subr.mxu0 0.0
        %1585 = vmatpush1.msra.mxu0 0.0
        %1586 = vmatprep.subr.mxu0 0.0
        %1587 = vmatpush1.msra.mxu0 0.0
        %1588 = vmatprep.subr.mxu0 0.0
        %1589 = vmatpush1.msra.mxu0 0.0
        %1590 = vmatprep.subr.mxu0 0.0
        %1591 = vmatpush1.msra.mxu0 0.0
        %1592 = vmatprep.subr.mxu0 0.0
        %1593 = vmatpush1.msra.mxu0 0.0
        %1594 = vmatprep.subr.mxu0 0.0
        %1595 = vmatpush1.msra.mxu0 0.0
        %1596 = vmatprep.subr.mxu0 0.0
        %1597 = vmatpush1.msra.mxu0 0.0
        %1598 = vmatprep.subr.mxu0 0.0
        %1599 = vmatpush1.msra.mxu0 0.0
        %1600 = vmatprep.subr.mxu0 0.0
        %1601 = vmatpush1.msra.mxu0 0.0
        %1602 = vmatprep.subr.mxu0 0.0
        %1603 = vmatpush1.msra.mxu0 0.0
        %1604 = vmatprep.subr.mxu0 0.0
        %1605 = vmatpush1.msra.mxu0 0.0
        %1606 = vmatprep.subr.mxu0 0.0
        %1607 = vmatpush1.msra.mxu0 0.0
        %1608 = vmatprep.mubr.f32.mxu0 0.0
        %1609 = vmatmul.mubr.f32.gmra.mrb[0].mxu0 %v1539
        %v1610 = vpop.f32.mrb[0].mxu0
        %v1611 = vadd.f32 %v1530, %v1610
        %v1612 = vpop.f32.mrb[0].mxu0
        %1613 = vmatprep.mubr.f32.mxu0 0.0
        %1614 = vmatmul.mubr.f32.gmra.mrb[0].mxu0 %v1542
        %v1615 = vpop.f32.mrb[0].mxu0
        %v1616 = vadd.f32 %v1535, %v1615
        %v1617 = vpop.f32.mrb[0].mxu0
        %1618 = vdwg.mxu0
        %1619 = vrot.lane.b32.xlu0 %v782, 112
        %v1620 = vpop.permute.xlu0 %1619
        %1621 = vrot.lane.b32.xlu0 %v782, 80
        %v1622 = vpop.permute.xlu0 %1621
        %v1623 = vsel %vm797, %v1620, 0
        %v1625 = vsel %vm797, %v1622, 0
        %1627 = vmatprep.subr.mxu0 0.0
        %1628 = vmatpush1.xpose.msra.mxu0 %v1625
        %1629 = vmatprep.subr.mxu0 0.0
        %1630 = vmatpush1.xpose.msra.mxu0 0.0
        %1631 = vmatprep.subr.mxu0 0.0
        %1632 = vmatpush1.xpose.msra.mxu0 0.0
        %1633 = vmatprep.subr.mxu0 0.0
        %1634 = vmatpush1.xpose.msra.mxu0 0.0
        %1635 = vmatprep.subr.mxu0 0.0
        %1636 = vmatpush1.xpose.msra.mxu0 0.0
        %1637 = vmatprep.subr.mxu0 0.0
        %1638 = vmatpush1.xpose.msra.mxu0 0.0
        %1639 = vmatprep.subr.mxu0 0.0
        %1640 = vmatpush1.xpose.msra.mxu0 0.0
        %1641 = vmatprep.subr.mxu0 0.0
        %1642 = vmatpush1.xpose.msra.mxu0 0.0
        %1643 = vmatprep.subr.mxu0 0.0
        %1644 = vmatpush1.xpose.msra.mxu0 0.0
        %1645 = vmatprep.subr.mxu0 0.0
        %1646 = vmatpush1.xpose.msra.mxu0 0.0
        %1647 = vmatprep.subr.mxu0 0.0
        %1648 = vmatpush1.xpose.msra.mxu0 0.0
        %1649 = vmatprep.subr.mxu0 0.0
        %1650 = vmatpush1.xpose.msra.mxu0 0.0
        %1651 = vmatprep.subr.mxu0 0.0
        %1652 = vmatpush1.xpose.msra.mxu0 0.0
        %1653 = vmatprep.subr.mxu0 0.0
        %1654 = vmatpush1.xpose.msra.mxu0 0.0
        %1655 = vmatprep.subr.mxu0 0.0
        %1656 = vmatpush1.xpose.msra.mxu0 0.0
        %1657 = vmatprep.subr.mxu0 0.0
        %1658 = vmatpush1.xpose.msra.mxu0 0.0
        %1659 = vmatprep.subr.mxu0 0.0
        %1660 = vmatpush1.xpose.msra.mxu0 0.0
        %1661 = vmatprep.subr.mxu0 0.0
        %1662 = vmatpush1.xpose.msra.mxu0 0.0
        %1663 = vmatprep.subr.mxu0 0.0
        %1664 = vmatpush1.xpose.msra.mxu0 0.0
        %1665 = vmatprep.subr.mxu0 0.0
        %1666 = vmatpush1.xpose.msra.mxu0 0.0
        %1667 = vmatprep.subr.mxu0 0.0
        %1668 = vmatpush1.xpose.msra.mxu0 0.0
        %1669 = vmatprep.subr.mxu0 0.0
        %1670 = vmatpush1.xpose.msra.mxu0 0.0
        %1671 = vmatprep.subr.mxu0 0.0
        %1672 = vmatpush1.xpose.msra.mxu0 0.0
        %1673 = vmatprep.subr.mxu0 0.0
        %1674 = vmatpush1.xpose.msra.mxu0 0.0
        %1675 = vmatprep.subr.mxu0 0.0
        %1676 = vmatpush1.xpose.msra.mxu0 0.0
        %1677 = vmatprep.subr.mxu0 0.0
        %1678 = vmatpush1.xpose.msra.mxu0 0.0
        %1679 = vmatprep.subr.mxu0 0.0
        %1680 = vmatpush1.xpose.msra.mxu0 0.0
        %1681 = vmatprep.subr.mxu0 0.0
        %1682 = vmatpush1.xpose.msra.mxu0 0.0
        %1683 = vmatprep.subr.mxu0 0.0
        %1684 = vmatpush1.xpose.msra.mxu0 0.0
        %1685 = vmatprep.subr.mxu0 0.0
        %1686 = vmatpush1.xpose.msra.mxu0 0.0
        %1687 = vmatprep.subr.mxu0 0.0
        %1688 = vmatpush1.xpose.msra.mxu0 0.0
        %1689 = vmatprep.subr.mxu0 0.0
        %1690 = vmatpush1.xpose.msra.mxu0 0.0
        %1691 = vmatprep.mubr.f32.mxu0 0.0
        %1692 = vmatmul.mubr.f32.gmra.mrb[0].mxu0 %v1623
        %v1693 = vpop.f32.mrb[0].mxu0
        %v1694 = vadd.f32 0.0, %v1693
        %v1695 = vpop.f32.mrb[0].mxu0
        %1696 = vdwg.mxu0
        %1697 = vrot.lane.b32.xlu0 %v787, 112
        %v1698 = vpop.permute.xlu0 %1697
        %1699 = vrot.lane.b32.xlu0 %v787, 80
        %v1700 = vpop.permute.xlu0 %1699
        %v1701 = vsel %vm797, %v1698, 0
        %v1703 = vsel %vm797, %v1700, 0
        %1705 = vmatprep.subr.mxu0 0.0
        %1706 = vmatpush1.xpose.msra.mxu0 %v1703
        %1707 = vmatprep.subr.mxu0 0.0
        %1708 = vmatpush1.xpose.msra.mxu0 0.0
        %1709 = vmatprep.subr.mxu0 0.0
        %1710 = vmatpush1.xpose.msra.mxu0 0.0
        %1711 = vmatprep.subr.mxu0 0.0
        %1712 = vmatpush1.xpose.msra.mxu0 0.0
        %1713 = vmatprep.subr.mxu0 0.0
        %1714 = vmatpush1.xpose.msra.mxu0 0.0
        %1715 = vmatprep.subr.mxu0 0.0
        %1716 = vmatpush1.xpose.msra.mxu0 0.0
        %1717 = vmatprep.subr.mxu0 0.0
        %1718 = vmatpush1.xpose.msra.mxu0 0.0
        %1719 = vmatprep.subr.mxu0 0.0
        %1720 = vmatpush1.xpose.msra.mxu0 0.0
        %1721 = vmatprep.subr.mxu0 0.0
        %1722 = vmatpush1.xpose.msra.mxu0 0.0
        %1723 = vmatprep.subr.mxu0 0.0
        %1724 = vmatpush1.xpose.msra.mxu0 0.0
        %1725 = vmatprep.subr.mxu0 0.0
        %1726 = vmatpush1.xpose.msra.mxu0 0.0
        %1727 = vmatprep.subr.mxu0 0.0
        %1728 = vmatpush1.xpose.msra.mxu0 0.0
        %1729 = vmatprep.subr.mxu0 0.0
        %1730 = vmatpush1.xpose.msra.mxu0 0.0
        %1731 = vmatprep.subr.mxu0 0.0
        %1732 = vmatpush1.xpose.msra.mxu0 0.0
        %1733 = vmatprep.subr.mxu0 0.0
        %1734 = vmatpush1.xpose.msra.mxu0 0.0
        %1735 = vmatprep.subr.mxu0 0.0
        %1736 = vmatpush1.xpose.msra.mxu0 0.0
        %1737 = vmatprep.subr.mxu0 0.0
        %1738 = vmatpush1.xpose.msra.mxu0 0.0
        %1739 = vmatprep.subr.mxu0 0.0
        %1740 = vmatpush1.xpose.msra.mxu0 0.0
        %1741 = vmatprep.subr.mxu0 0.0
        %1742 = vmatpush1.xpose.msra.mxu0 0.0
        %1743 = vmatprep.subr.mxu0 0.0
        %1744 = vmatpush1.xpose.msra.mxu0 0.0
        %1745 = vmatprep.subr.mxu0 0.0
        %1746 = vmatpush1.xpose.msra.mxu0 0.0
        %1747 = vmatprep.subr.mxu0 0.0
        %1748 = vmatpush1.xpose.msra.mxu0 0.0
        %1749 = vmatprep.subr.mxu0 0.0
        %1750 = vmatpush1.xpose.msra.mxu0 0.0
        %1751 = vmatprep.subr.mxu0 0.0
        %1752 = vmatpush1.xpose.msra.mxu0 0.0
        %1753 = vmatprep.subr.mxu0 0.0
        %1754 = vmatpush1.xpose.msra.mxu0 0.0
        %1755 = vmatprep.subr.mxu0 0.0
        %1756 = vmatpush1.xpose.msra.mxu0 0.0
        %1757 = vmatprep.subr.mxu0 0.0
        %1758 = vmatpush1.xpose.msra.mxu0 0.0
        %1759 = vmatprep.subr.mxu0 0.0
        %1760 = vmatpush1.xpose.msra.mxu0 0.0
        %1761 = vmatprep.subr.mxu0 0.0
        %1762 = vmatpush1.xpose.msra.mxu0 0.0
        %1763 = vmatprep.subr.mxu0 0.0
        %1764 = vmatpush1.xpose.msra.mxu0 0.0
        %1765 = vmatprep.subr.mxu0 0.0
        %1766 = vmatpush1.xpose.msra.mxu0 0.0
        %1767 = vmatprep.subr.mxu0 0.0
        %1768 = vmatpush1.xpose.msra.mxu0 0.0
        %1769 = vmatprep.mubr.f32.mxu0 0.0
        %1770 = vmatmul.mubr.f32.gmra.mrb[0].mxu0 %v1701
        %v1771 = vpop.f32.mrb[0].mxu0
        %v1772 = vadd.f32 0.0, %v1771
        %v1773 = vpop.f32.mrb[0].mxu0
        %1774 = vdwg.mxu0
        %v1775 = vmul.f32 %v1694, 0.35355338
        %v1776 = vmul.f32 %v1772, 0.35355338
        %v1777 = vsel %vm797, %v1775, -inf
        %1778 = vmax.xlane.f32.xlu0 %v1777
        %v1779 = vpop.xlane.xlu0 %1778
        %v1780 = vsel %vm797, %v1776, -inf
        %1781 = vmax.xlane.f32.xlu0 %v1780
        %v1782 = vpop.xlane.xlu0 %1781
        %v1783 = vsub.f32 %v1775, %v1779
        %v1784 = vsub.f32 %v1776, %v1782
        %v1785 = vmul.f32 %v1783, 1.442695
        %v1786 = vpow.pop %v1785
        %v1787 = vmul.f32 %v1784, 1.442695
        %v1788 = vpow.pop %v1787
        %v1789 = vsel %vm797, %v1786, 0.0
        %1790 = vadd.xlane.f32.xlu0 %v1789
        %v1791 = vpop.xlane.xlu0 %1790
        %v1792 = vsel %vm797, %v1788, 0.0
        %1793 = vadd.xlane.f32.xlu0 %v1792
        %v1794 = vpop.xlane.xlu0 %1793
        %v1795 = vrcp.pop %v1791
        %v1796 = vrcp.pop %v1794
        %v1797 = vmul.f32 %v1786, %v1795
        %v1798 = vmul.f32 %v1788, %v1796
        %1799 = vrot.lane.b32.xlu0 %v782, 48
        %v1800 = vpop.permute.xlu0 %1799
        %v1803 = vsel %vm797, %v1797, 0
        %1805 = vmatprep.subr.mxu0 0.0
        %1806 = vmatpush1.msra.mxu0 %v1800
        %1807 = vmatprep.subr.mxu0 0.0
        %1808 = vmatpush1.msra.mxu0 0.0
        %1809 = vmatprep.subr.mxu0 0.0
        %1810 = vmatpush1.msra.mxu0 0.0
        %1811 = vmatprep.subr.mxu0 0.0
        %1812 = vmatpush1.msra.mxu0 0.0
        %1813 = vmatprep.subr.mxu0 0.0
        %1814 = vmatpush1.msra.mxu0 0.0
        %1815 = vmatprep.subr.mxu0 0.0
        %1816 = vmatpush1.msra.mxu0 0.0
        %1817 = vmatprep.subr.mxu0 0.0
        %1818 = vmatpush1.msra.mxu0 0.0
        %1819 = vmatprep.subr.mxu0 0.0
        %1820 = vmatpush1.msra.mxu0 0.0
        %1821 = vmatprep.subr.mxu0 0.0
        %1822 = vmatpush1.msra.mxu0 0.0
        %1823 = vmatprep.subr.mxu0 0.0
        %1824 = vmatpush1.msra.mxu0 0.0
        %1825 = vmatprep.subr.mxu0 0.0
        %1826 = vmatpush1.msra.mxu0 0.0
        %1827 = vmatprep.subr.mxu0 0.0
        %1828 = vmatpush1.msra.mxu0 0.0
        %1829 = vmatprep.subr.mxu0 0.0
        %1830 = vmatpush1.msra.mxu0 0.0
        %1831 = vmatprep.subr.mxu0 0.0
        %1832 = vmatpush1.msra.mxu0 0.0
        %1833 = vmatprep.subr.mxu0 0.0
        %1834 = vmatpush1.msra.mxu0 0.0
        %1835 = vmatprep.subr.mxu0 0.0
        %1836 = vmatpush1.msra.mxu0 0.0
        %1837 = vmatprep.subr.mxu0 0.0
        %1838 = vmatpush1.msra.mxu0 0.0
        %1839 = vmatprep.subr.mxu0 0.0
        %1840 = vmatpush1.msra.mxu0 0.0
        %1841 = vmatprep.subr.mxu0 0.0
        %1842 = vmatpush1.msra.mxu0 0.0
        %1843 = vmatprep.subr.mxu0 0.0
        %1844 = vmatpush1.msra.mxu0 0.0
        %1845 = vmatprep.subr.mxu0 0.0
        %1846 = vmatpush1.msra.mxu0 0.0
        %1847 = vmatprep.subr.mxu0 0.0
        %1848 = vmatpush1.msra.mxu0 0.0
        %1849 = vmatprep.subr.mxu0 0.0
        %1850 = vmatpush1.msra.mxu0 0.0
        %1851 = vmatprep.subr.mxu0 0.0
        %1852 = vmatpush1.msra.mxu0 0.0
        %1853 = vmatprep.subr.mxu0 0.0
        %1854 = vmatpush1.msra.mxu0 0.0
        %1855 = vmatprep.subr.mxu0 0.0
        %1856 = vmatpush1.msra.mxu0 0.0
        %1857 = vmatprep.subr.mxu0 0.0
        %1858 = vmatpush1.msra.mxu0 0.0
        %1859 = vmatprep.subr.mxu0 0.0
        %1860 = vmatpush1.msra.mxu0 0.0
        %1861 = vmatprep.subr.mxu0 0.0
        %1862 = vmatpush1.msra.mxu0 0.0
        %1863 = vmatprep.subr.mxu0 0.0
        %1864 = vmatpush1.msra.mxu0 0.0
        %1865 = vmatprep.subr.mxu0 0.0
        %1866 = vmatpush1.msra.mxu0 0.0
        %1867 = vmatprep.subr.mxu0 0.0
        %1868 = vmatpush1.msra.mxu0 0.0
        %1869 = vmatprep.mubr.f32.mxu0 0.0
        %1870 = vmatmul.mubr.f32.gmra.mrb[0].mxu0 %v1803
        %v1871 = vpop.f32.mrb[0].mxu0
        %v1872 = vadd.f32 0.0, %v1871
        %v1873 = vpop.f32.mrb[0].mxu0
        %1874 = vdwg.mxu0
        %1875 = vrot.lane.b32.xlu0 %v787, 48
        %v1876 = vpop.permute.xlu0 %1875
        %v1879 = vsel %vm797, %v1798, 0
        %1881 = vmatprep.subr.mxu0 0.0
        %1882 = vmatpush1.msra.mxu0 %v1876
        %1883 = vmatprep.subr.mxu0 0.0
        %1884 = vmatpush1.msra.mxu0 0.0
        %1885 = vmatprep.subr.mxu0 0.0
        %1886 = vmatpush1.msra.mxu0 0.0
        %1887 = vmatprep.subr.mxu0 0.0
        %1888 = vmatpush1.msra.mxu0 0.0
        %1889 = vmatprep.subr.mxu0 0.0
        %1890 = vmatpush1.msra.mxu0 0.0
        %1891 = vmatprep.subr.mxu0 0.0
        %1892 = vmatpush1.msra.mxu0 0.0
        %1893 = vmatprep.subr.mxu0 0.0
        %1894 = vmatpush1.msra.mxu0 0.0
        %1895 = vmatprep.subr.mxu0 0.0
        %1896 = vmatpush1.msra.mxu0 0.0
        %1897 = vmatprep.subr.mxu0 0.0
        %1898 = vmatpush1.msra.mxu0 0.0
        %1899 = vmatprep.subr.mxu0 0.0
        %1900 = vmatpush1.msra.mxu0 0.0
        %1901 = vmatprep.subr.mxu0 0.0
        %1902 = vmatpush1.msra.mxu0 0.0
        %1903 = vmatprep.subr.mxu0 0.0
        %1904 = vmatpush1.msra.mxu0 0.0
        %1905 = vmatprep.subr.mxu0 0.0
        %1906 = vmatpush1.msra.mxu0 0.0
        %1907 = vmatprep.subr.mxu0 0.0
        %1908 = vmatpush1.msra.mxu0 0.0
        %1909 = vmatprep.subr.mxu0 0.0
        %1910 = vmatpush1.msra.mxu0 0.0
        %1911 = vmatprep.subr.mxu0 0.0
        %1912 = vmatpush1.msra.mxu0 0.0
        %1913 = vmatprep.subr.mxu0 0.0
        %1914 = vmatpush1.msra.mxu0 0.0
        %1915 = vmatprep.subr.mxu0 0.0
        %1916 = vmatpush1.msra.mxu0 0.0
        %1917 = vmatprep.subr.mxu0 0.0
        %1918 = vmatpush1.msra.mxu0 0.0
        %1919 = vmatprep.subr.mxu0 0.0
        %1920 = vmatpush1.msra.mxu0 0.0
        %1921 = vmatprep.subr.mxu0 0.0
        %1922 = vmatpush1.msra.mxu0 0.0
        %1923 = vmatprep.subr.mxu0 0.0
        %1924 = vmatpush1.msra.mxu0 0.0
        %1925 = vmatprep.subr.mxu0 0.0
        %1926 = vmatpush1.msra.mxu0 0.0
        %1927 = vmatprep.subr.mxu0 0.0
        %1928 = vmatpush1.msra.mxu0 0.0
        %1929 = vmatprep.subr.mxu0 0.0
        %1930 = vmatpush1.msra.mxu0 0.0
        %1931 = vmatprep.subr.mxu0 0.0
        %1932 = vmatpush1.msra.mxu0 0.0
        %1933 = vmatprep.subr.mxu0 0.0
        %1934 = vmatpush1.msra.mxu0 0.0
        %1935 = vmatprep.subr.mxu0 0.0
        %1936 = vmatpush1.msra.mxu0 0.0
        %1937 = vmatprep.subr.mxu0 0.0
        %1938 = vmatpush1.msra.mxu0 0.0
        %1939 = vmatprep.subr.mxu0 0.0
        %1940 = vmatpush1.msra.mxu0 0.0
        %1941 = vmatprep.subr.mxu0 0.0
        %1942 = vmatpush1.msra.mxu0 0.0
        %1943 = vmatprep.subr.mxu0 0.0
        %1944 = vmatpush1.msra.mxu0 0.0
        %1945 = vmatprep.mubr.f32.mxu0 0.0
        %1946 = vmatmul.mubr.f32.gmra.mrb[0].mxu0 %v1879
        %v1947 = vpop.f32.mrb[0].mxu0
        %v1948 = vadd.f32 0.0, %v1947
        %v1949 = vpop.f32.mrb[0].mxu0
        %1950 = vdwg.mxu0
        %v1952 = vsel %vm797, %v1872, 0
        %v1955 = vsel %vm797, %v1948, 0
        %1957 = vmatprep.subr.mxu0 0.0
        %1958 = vmatpush1.msra.mxu0 %v792
        %1959 = vmatprep.subr.mxu0 0.0
        %1960 = vmatpush1.msra.mxu0 0.0
        %1961 = vmatprep.subr.mxu0 0.0
        %1962 = vmatpush1.msra.mxu0 0.0
        %1963 = vmatprep.subr.mxu0 0.0
        %1964 = vmatpush1.msra.mxu0 0.0
        %1965 = vmatprep.subr.mxu0 0.0
        %1966 = vmatpush1.msra.mxu0 0.0
        %1967 = vmatprep.subr.mxu0 0.0
        %1968 = vmatpush1.msra.mxu0 0.0
        %1969 = vmatprep.subr.mxu0 0.0
        %1970 = vmatpush1.msra.mxu0 0.0
        %1971 = vmatprep.subr.mxu0 0.0
        %1972 = vmatpush1.msra.mxu0 0.0
        %1973 = vmatprep.subr.mxu0 0.0
        %1974 = vmatpush1.msra.mxu0 0.0
        %1975 = vmatprep.subr.mxu0 0.0
        %1976 = vmatpush1.msra.mxu0 0.0
        %1977 = vmatprep.subr.mxu0 0.0
        %1978 = vmatpush1.msra.mxu0 0.0
        %1979 = vmatprep.subr.mxu0 0.0
        %1980 = vmatpush1.msra.mxu0 0.0
        %1981 = vmatprep.subr.mxu0 0.0
        %1982 = vmatpush1.msra.mxu0 0.0
        %1983 = vmatprep.subr.mxu0 0.0
        %1984 = vmatpush1.msra.mxu0 0.0
        %1985 = vmatprep.subr.mxu0 0.0
        %1986 = vmatpush1.msra.mxu0 0.0
        %1987 = vmatprep.subr.mxu0 0.0
        %1988 = vmatpush1.msra.mxu0 0.0
        %1989 = vmatprep.subr.mxu0 0.0
        %1990 = vmatpush1.msra.mxu0 0.0
        %1991 = vmatprep.subr.mxu0 0.0
        %1992 = vmatpush1.msra.mxu0 0.0
        %1993 = vmatprep.subr.mxu0 0.0
        %1994 = vmatpush1.msra.mxu0 0.0
        %1995 = vmatprep.subr.mxu0 0.0
        %1996 = vmatpush1.msra.mxu0 0.0
        %1997 = vmatprep.subr.mxu0 0.0
        %1998 = vmatpush1.msra.mxu0 0.0
        %1999 = vmatprep.subr.mxu0 0.0
        %2000 = vmatpush1.msra.mxu0 0.0
        %2001 = vmatprep.subr.mxu0 0.0
        %2002 = vmatpush1.msra.mxu0 0.0
        %2003 = vmatprep.subr.mxu0 0.0
        %2004 = vmatpush1.msra.mxu0 0.0
        %2005 = vmatprep.subr.mxu0 0.0
        %2006 = vmatpush1.msra.mxu0 0.0
        %2007 = vmatprep.subr.mxu0 0.0
        %2008 = vmatpush1.msra.mxu0 0.0
        %2009 = vmatprep.subr.mxu0 0.0
        %2010 = vmatpush1.msra.mxu0 0.0
        %2011 = vmatprep.subr.mxu0 0.0
        %2012 = vmatpush1.msra.mxu0 0.0
        %2013 = vmatprep.subr.mxu0 0.0
        %2014 = vmatpush1.msra.mxu0 0.0
        %2015 = vmatprep.subr.mxu0 0.0
        %2016 = vmatpush1.msra.mxu0 0.0
        %2017 = vmatprep.subr.mxu0 0.0
        %2018 = vmatpush1.msra.mxu0 0.0
        %2019 = vmatprep.subr.mxu0 0.0
        %2020 = vmatpush1.msra.mxu0 0.0
        %2021 = vmatprep.mubr.f32.mxu0 0.0
        %2022 = vmatmul.mubr.f32.gmra.mrb[0].mxu0 %v1952
        %v2023 = vpop.f32.mrb[0].mxu0
        %v2024 = vadd.f32 0.0, %v2023
        %v2025 = vpop.f32.mrb[0].mxu0
        %2026 = vmatprep.mubr.f32.mxu0 0.0
        %2027 = vmatmul.mubr.f32.gmra.mrb[0].mxu0 %v1955
        %v2028 = vpop.f32.mrb[0].mxu0
        %v2029 = vadd.f32 0.0, %v2028
        %v2030 = vpop.f32.mrb[0].mxu0
        %2031 = vdwg.mxu0
        %v2032 = vadd.f32 %v1611, %v2024
        %v2033 = vadd.f32 %v1616, %v2029
        %2034 = vrot.lane.b32.xlu0 %v782, 104
        %v2035 = vpop.permute.xlu0 %2034
        %2036 = vrot.lane.b32.xlu0 %v782, 72
        %v2037 = vpop.permute.xlu0 %2036
        %v2038 = vsel %vm797, %v2035, 0
        %v2040 = vsel %vm797, %v2037, 0
        %2042 = vmatprep.subr.mxu0 0.0
        %2043 = vmatpush1.xpose.msra.mxu0 %v2040
        %2044 = vmatprep.subr.mxu0 0.0
        %2045 = vmatpush1.xpose.msra.mxu0 0.0
        %2046 = vmatprep.subr.mxu0 0.0
        %2047 = vmatpush1.xpose.msra.mxu0 0.0
        %2048 = vmatprep.subr.mxu0 0.0
        %2049 = vmatpush1.xpose.msra.mxu0 0.0
        %2050 = vmatprep.subr.mxu0 0.0
        %2051 = vmatpush1.xpose.msra.mxu0 0.0
        %2052 = vmatprep.subr.mxu0 0.0
        %2053 = vmatpush1.xpose.msra.mxu0 0.0
        %2054 = vmatprep.subr.mxu0 0.0
        %2055 = vmatpush1.xpose.msra.mxu0 0.0
        %2056 = vmatprep.subr.mxu0 0.0
        %2057 = vmatpush1.xpose.msra.mxu0 0.0
        %2058 = vmatprep.subr.mxu0 0.0
        %2059 = vmatpush1.xpose.msra.mxu0 0.0
        %2060 = vmatprep.subr.mxu0 0.0
        %2061 = vmatpush1.xpose.msra.mxu0 0.0
        %2062 = vmatprep.subr.mxu0 0.0
        %2063 = vmatpush1.xpose.msra.mxu0 0.0
        %2064 = vmatprep.subr.mxu0 0.0
        %2065 = vmatpush1.xpose.msra.mxu0 0.0
        %2066 = vmatprep.subr.mxu0 0.0
        %2067 = vmatpush1.xpose.msra.mxu0 0.0
        %2068 = vmatprep.subr.mxu0 0.0
        %2069 = vmatpush1.xpose.msra.mxu0 0.0
        %2070 = vmatprep.subr.mxu0 0.0
        %2071 = vmatpush1.xpose.msra.mxu0 0.0
        %2072 = vmatprep.subr.mxu0 0.0
        %2073 = vmatpush1.xpose.msra.mxu0 0.0
        %2074 = vmatprep.subr.mxu0 0.0
        %2075 = vmatpush1.xpose.msra.mxu0 0.0
        %2076 = vmatprep.subr.mxu0 0.0
        %2077 = vmatpush1.xpose.msra.mxu0 0.0
        %2078 = vmatprep.subr.mxu0 0.0
        %2079 = vmatpush1.xpose.msra.mxu0 0.0
        %2080 = vmatprep.subr.mxu0 0.0
        %2081 = vmatpush1.xpose.msra.mxu0 0.0
        %2082 = vmatprep.subr.mxu0 0.0
        %2083 = vmatpush1.xpose.msra.mxu0 0.0
        %2084 = vmatprep.subr.mxu0 0.0
        %2085 = vmatpush1.xpose.msra.mxu0 0.0
        %2086 = vmatprep.subr.mxu0 0.0
        %2087 = vmatpush1.xpose.msra.mxu0 0.0
        %2088 = vmatprep.subr.mxu0 0.0
        %2089 = vmatpush1.xpose.msra.mxu0 0.0
        %2090 = vmatprep.subr.mxu0 0.0
        %2091 = vmatpush1.xpose.msra.mxu0 0.0
        %2092 = vmatprep.subr.mxu0 0.0
        %2093 = vmatpush1.xpose.msra.mxu0 0.0
        %2094 = vmatprep.subr.mxu0 0.0
        %2095 = vmatpush1.xpose.msra.mxu0 0.0
        %2096 = vmatprep.subr.mxu0 0.0
        %2097 = vmatpush1.xpose.msra.mxu0 0.0
        %2098 = vmatprep.subr.mxu0 0.0
        %2099 = vmatpush1.xpose.msra.mxu0 0.0
        %2100 = vmatprep.subr.mxu0 0.0
        %2101 = vmatpush1.xpose.msra.mxu0 0.0
        %2102 = vmatprep.subr.mxu0 0.0
        %2103 = vmatpush1.xpose.msra.mxu0 0.0
        %2104 = vmatprep.subr.mxu0 0.0
        %2105 = vmatpush1.xpose.msra.mxu0 0.0
        %2106 = vmatprep.mubr.f32.mxu0 0.0
        %2107 = vmatmul.mubr.f32.gmra.mrb[0].mxu0 %v2038
        %v2108 = vpop.f32.mrb[0].mxu0
        %v2109 = vadd.f32 0.0, %v2108
        %v2110 = vpop.f32.mrb[0].mxu0
        %2111 = vdwg.mxu0
        %2112 = vrot.lane.b32.xlu0 %v787, 104
        %v2113 = vpop.permute.xlu0 %2112
        %2114 = vrot.lane.b32.xlu0 %v787, 72
        %v2115 = vpop.permute.xlu0 %2114
        %v2116 = vsel %vm797, %v2113, 0
        %v2118 = vsel %vm797, %v2115, 0
        %2120 = vmatprep.subr.mxu0 0.0
        %2121 = vmatpush1.xpose.msra.mxu0 %v2118
        %2122 = vmatprep.subr.mxu0 0.0
        %2123 = vmatpush1.xpose.msra.mxu0 0.0
        %2124 = vmatprep.subr.mxu0 0.0
        %2125 = vmatpush1.xpose.msra.mxu0 0.0
        %2126 = vmatprep.subr.mxu0 0.0
        %2127 = vmatpush1.xpose.msra.mxu0 0.0
        %2128 = vmatprep.subr.mxu0 0.0
        %2129 = vmatpush1.xpose.msra.mxu0 0.0
        %2130 = vmatprep.subr.mxu0 0.0
        %2131 = vmatpush1.xpose.msra.mxu0 0.0
        %2132 = vmatprep.subr.mxu0 0.0
        %2133 = vmatpush1.xpose.msra.mxu0 0.0
        %2134 = vmatprep.subr.mxu0 0.0
        %2135 = vmatpush1.xpose.msra.mxu0 0.0
        %2136 = vmatprep.subr.mxu0 0.0
        %2137 = vmatpush1.xpose.msra.mxu0 0.0
        %2138 = vmatprep.subr.mxu0 0.0
        %2139 = vmatpush1.xpose.msra.mxu0 0.0
        %2140 = vmatprep.subr.mxu0 0.0
        %2141 = vmatpush1.xpose.msra.mxu0 0.0
        %2142 = vmatprep.subr.mxu0 0.0
        %2143 = vmatpush1.xpose.msra.mxu0 0.0
        %2144 = vmatprep.subr.mxu0 0.0
        %2145 = vmatpush1.xpose.msra.mxu0 0.0
        %2146 = vmatprep.subr.mxu0 0.0
        %2147 = vmatpush1.xpose.msra.mxu0 0.0
        %2148 = vmatprep.subr.mxu0 0.0
        %2149 = vmatpush1.xpose.msra.mxu0 0.0
        %2150 = vmatprep.subr.mxu0 0.0
        %2151 = vmatpush1.xpose.msra.mxu0 0.0
        %2152 = vmatprep.subr.mxu0 0.0
        %2153 = vmatpush1.xpose.msra.mxu0 0.0
        %2154 = vmatprep.subr.mxu0 0.0
        %2155 = vmatpush1.xpose.msra.mxu0 0.0
        %2156 = vmatprep.subr.mxu0 0.0
        %2157 = vmatpush1.xpose.msra.mxu0 0.0
        %2158 = vmatprep.subr.mxu0 0.0
        %2159 = vmatpush1.xpose.msra.mxu0 0.0
        %2160 = vmatprep.subr.mxu0 0.0
        %2161 = vmatpush1.xpose.msra.mxu0 0.0
        %2162 = vmatprep.subr.mxu0 0.0
        %2163 = vmatpush1.xpose.msra.mxu0 0.0
        %2164 = vmatprep.subr.mxu0 0.0
        %2165 = vmatpush1.xpose.msra.mxu0 0.0
        %2166 = vmatprep.subr.mxu0 0.0
        %2167 = vmatpush1.xpose.msra.mxu0 0.0
        %2168 = vmatprep.subr.mxu0 0.0
        %2169 = vmatpush1.xpose.msra.mxu0 0.0
        %2170 = vmatprep.subr.mxu0 0.0
        %2171 = vmatpush1.xpose.msra.mxu0 0.0
        %2172 = vmatprep.subr.mxu0 0.0
        %2173 = vmatpush1.xpose.msra.mxu0 0.0
        %2174 = vmatprep.subr.mxu0 0.0
        %2175 = vmatpush1.xpose.msra.mxu0 0.0
        %2176 = vmatprep.subr.mxu0 0.0
        %2177 = vmatpush1.xpose.msra.mxu0 0.0
        %2178 = vmatprep.subr.mxu0 0.0
        %2179 = vmatpush1.xpose.msra.mxu0 0.0
        %2180 = vmatprep.subr.mxu0 0.0
        %2181 = vmatpush1.xpose.msra.mxu0 0.0
        %2182 = vmatprep.subr.mxu0 0.0
        %2183 = vmatpush1.xpose.msra.mxu0 0.0
        %2184 = vmatprep.mubr.f32.mxu0 0.0
        %2185 = vmatmul.mubr.f32.gmra.mrb[0].mxu0 %v2116
        %v2186 = vpop.f32.mrb[0].mxu0
        %v2187 = vadd.f32 0.0, %v2186
        %v2188 = vpop.f32.mrb[0].mxu0
        %2189 = vdwg.mxu0
        %v2190 = vmul.f32 %v2109, 0.35355338
        %v2191 = vmul.f32 %v2187, 0.35355338
        %v2192 = vsel %vm797, %v2190, -inf
        %2193 = vmax.xlane.f32.xlu0 %v2192
        %v2194 = vpop.xlane.xlu0 %2193
        %v2195 = vsel %vm797, %v2191, -inf
        %2196 = vmax.xlane.f32.xlu0 %v2195
        %v2197 = vpop.xlane.xlu0 %2196
        %v2198 = vsub.f32 %v2190, %v2194
        %v2199 = vsub.f32 %v2191, %v2197
        %v2200 = vmul.f32 %v2198, 1.442695
        %v2201 = vpow.pop %v2200
        %v2202 = vmul.f32 %v2199, 1.442695
        %v2203 = vpow.pop %v2202
        %v2204 = vsel %vm797, %v2201, 0.0
        %2205 = vadd.xlane.f32.xlu0 %v2204
        %v2206 = vpop.xlane.xlu0 %2205
        %v2207 = vsel %vm797, %v2203, 0.0
        %2208 = vadd.xlane.f32.xlu0 %v2207
        %v2209 = vpop.xlane.xlu0 %2208
        %v2210 = vrcp.pop %v2206
        %v2211 = vrcp.pop %v2209
        %v2212 = vmul.f32 %v2201, %v2210
        %v2213 = vmul.f32 %v2203, %v2211
        %2214 = vrot.lane.b32.xlu0 %v782, 40
        %v2215 = vpop.permute.xlu0 %2214
        %v2218 = vsel %vm797, %v2212, 0
        %2220 = vmatprep.subr.mxu0 0.0
        %2221 = vmatpush1.msra.mxu0 %v2215
        %2222 = vmatprep.subr.mxu0 0.0
        %2223 = vmatpush1.msra.mxu0 0.0
        %2224 = vmatprep.subr.mxu0 0.0
        %2225 = vmatpush1.msra.mxu0 0.0
        %2226 = vmatprep.subr.mxu0 0.0
        %2227 = vmatpush1.msra.mxu0 0.0
        %2228 = vmatprep.subr.mxu0 0.0
        %2229 = vmatpush1.msra.mxu0 0.0
        %2230 = vmatprep.subr.mxu0 0.0
        %2231 = vmatpush1.msra.mxu0 0.0
        %2232 = vmatprep.subr.mxu0 0.0
        %2233 = vmatpush1.msra.mxu0 0.0
        %2234 = vmatprep.subr.mxu0 0.0
        %2235 = vmatpush1.msra.mxu0 0.0
        %2236 = vmatprep.subr.mxu0 0.0
        %2237 = vmatpush1.msra.mxu0 0.0
        %2238 = vmatprep.subr.mxu0 0.0
        %2239 = vmatpush1.msra.mxu0 0.0
        %2240 = vmatprep.subr.mxu0 0.0
        %2241 = vmatpush1.msra.mxu0 0.0
        %2242 = vmatprep.subr.mxu0 0.0
        %2243 = vmatpush1.msra.mxu0 0.0
        %2244 = vmatprep.subr.mxu0 0.0
        %2245 = vmatpush1.msra.mxu0 0.0
        %2246 = vmatprep.subr.mxu0 0.0
        %2247 = vmatpush1.msra.mxu0 0.0
        %2248 = vmatprep.subr.mxu0 0.0
        %2249 = vmatpush1.msra.mxu0 0.0
        %2250 = vmatprep.subr.mxu0 0.0
        %2251 = vmatpush1.msra.mxu0 0.0
        %2252 = vmatprep.subr.mxu0 0.0
        %2253 = vmatpush1.msra.mxu0 0.0
        %2254 = vmatprep.subr.mxu0 0.0
        %2255 = vmatpush1.msra.mxu0 0.0
        %2256 = vmatprep.subr.mxu0 0.0
        %2257 = vmatpush1.msra.mxu0 0.0
        %2258 = vmatprep.subr.mxu0 0.0
        %2259 = vmatpush1.msra.mxu0 0.0
        %2260 = vmatprep.subr.mxu0 0.0
        %2261 = vmatpush1.msra.mxu0 0.0
        %2262 = vmatprep.subr.mxu0 0.0
        %2263 = vmatpush1.msra.mxu0 0.0
        %2264 = vmatprep.subr.mxu0 0.0
        %2265 = vmatpush1.msra.mxu0 0.0
        %2266 = vmatprep.subr.mxu0 0.0
        %2267 = vmatpush1.msra.mxu0 0.0
        %2268 = vmatprep.subr.mxu0 0.0
        %2269 = vmatpush1.msra.mxu0 0.0
        %2270 = vmatprep.subr.mxu0 0.0
        %2271 = vmatpush1.msra.mxu0 0.0
        %2272 = vmatprep.subr.mxu0 0.0
        %2273 = vmatpush1.msra.mxu0 0.0
        %2274 = vmatprep.subr.mxu0 0.0
        %2275 = vmatpush1.msra.mxu0 0.0
        %2276 = vmatprep.subr.mxu0 0.0
        %2277 = vmatpush1.msra.mxu0 0.0
        %2278 = vmatprep.subr.mxu0 0.0
        %2279 = vmatpush1.msra.mxu0 0.0
        %2280 = vmatprep.subr.mxu0 0.0
        %2281 = vmatpush1.msra.mxu0 0.0
        %2282 = vmatprep.subr.mxu0 0.0
        %2283 = vmatpush1.msra.mxu0 0.0
        %2284 = vmatprep.mubr.f32.mxu0 0.0
        %2285 = vmatmul.mubr.f32.gmra.mrb[0].mxu0 %v2218
        %v2286 = vpop.f32.mrb[0].mxu0
        %v2287 = vadd.f32 0.0, %v2286
        %v2288 = vpop.f32.mrb[0].mxu0
        %2289 = vdwg.mxu0
        %2290 = vrot.lane.b32.xlu0 %v787, 40
        %v2291 = vpop.permute.xlu0 %2290
        %v2294 = vsel %vm797, %v2213, 0
        %2296 = vmatprep.subr.mxu0 0.0
        %2297 = vmatpush1.msra.mxu0 %v2291
        %2298 = vmatprep.subr.mxu0 0.0
        %2299 = vmatpush1.msra.mxu0 0.0
        %2300 = vmatprep.subr.mxu0 0.0
        %2301 = vmatpush1.msra.mxu0 0.0
        %2302 = vmatprep.subr.mxu0 0.0
        %2303 = vmatpush1.msra.mxu0 0.0
        %2304 = vmatprep.subr.mxu0 0.0
        %2305 = vmatpush1.msra.mxu0 0.0
        %2306 = vmatprep.subr.mxu0 0.0
        %2307 = vmatpush1.msra.mxu0 0.0
        %2308 = vmatprep.subr.mxu0 0.0
        %2309 = vmatpush1.msra.mxu0 0.0
        %2310 = vmatprep.subr.mxu0 0.0
        %2311 = vmatpush1.msra.mxu0 0.0
        %2312 = vmatprep.subr.mxu0 0.0
        %2313 = vmatpush1.msra.mxu0 0.0
        %2314 = vmatprep.subr.mxu0 0.0
        %2315 = vmatpush1.msra.mxu0 0.0
        %2316 = vmatprep.subr.mxu0 0.0
        %2317 = vmatpush1.msra.mxu0 0.0
        %2318 = vmatprep.subr.mxu0 0.0
        %2319 = vmatpush1.msra.mxu0 0.0
        %2320 = vmatprep.subr.mxu0 0.0
        %2321 = vmatpush1.msra.mxu0 0.0
        %2322 = vmatprep.subr.mxu0 0.0
        %2323 = vmatpush1.msra.mxu0 0.0
        %2324 = vmatprep.subr.mxu0 0.0
        %2325 = vmatpush1.msra.mxu0 0.0
        %2326 = vmatprep.subr.mxu0 0.0
        %2327 = vmatpush1.msra.mxu0 0.0
        %2328 = vmatprep.subr.mxu0 0.0
        %2329 = vmatpush1.msra.mxu0 0.0
        %2330 = vmatprep.subr.mxu0 0.0
        %2331 = vmatpush1.msra.mxu0 0.0
        %2332 = vmatprep.subr.mxu0 0.0
        %2333 = vmatpush1.msra.mxu0 0.0
        %2334 = vmatprep.subr.mxu0 0.0
        %2335 = vmatpush1.msra.mxu0 0.0
        %2336 = vmatprep.subr.mxu0 0.0
        %2337 = vmatpush1.msra.mxu0 0.0
        %2338 = vmatprep.subr.mxu0 0.0
        %2339 = vmatpush1.msra.mxu0 0.0
        %2340 = vmatprep.subr.mxu0 0.0
        %2341 = vmatpush1.msra.mxu0 0.0
        %2342 = vmatprep.subr.mxu0 0.0
        %2343 = vmatpush1.msra.mxu0 0.0
        %2344 = vmatprep.subr.mxu0 0.0
        %2345 = vmatpush1.msra.mxu0 0.0
        %2346 = vmatprep.subr.mxu0 0.0
        %2347 = vmatpush1.msra.mxu0 0.0
        %2348 = vmatprep.subr.mxu0 0.0
        %2349 = vmatpush1.msra.mxu0 0.0
        %2350 = vmatprep.subr.mxu0 0.0
        %2351 = vmatpush1.msra.mxu0 0.0
        %2352 = vmatprep.subr.mxu0 0.0
        %2353 = vmatpush1.msra.mxu0 0.0
        %2354 = vmatprep.subr.mxu0 0.0
        %2355 = vmatpush1.msra.mxu0 0.0
        %2356 = vmatprep.subr.mxu0 0.0
        %2357 = vmatpush1.msra.mxu0 0.0
        %2358 = vmatprep.subr.mxu0 0.0
        %2359 = vmatpush1.msra.mxu0 0.0
        %2360 = vmatprep.mubr.f32.mxu0 0.0
        %2361 = vmatmul.mubr.f32.gmra.mrb[0].mxu0 %v2294
        %v2362 = vpop.f32.mrb[0].mxu0
        %v2363 = vadd.f32 0.0, %v2362
        %v2364 = vpop.f32.mrb[0].mxu0
        %2365 = vdwg.mxu0
        %v2367 = vsel %vm797, %v2287, 0
        %v2370 = vsel %vm797, %v2363, 0
        %2372 = vmatprep.subr.mxu0 0.0
        %2373 = vmatpush1.msra.mxu0 %v793
        %2374 = vmatprep.subr.mxu0 0.0
        %2375 = vmatpush1.msra.mxu0 0.0
        %2376 = vmatprep.subr.mxu0 0.0
        %2377 = vmatpush1.msra.mxu0 0.0
        %2378 = vmatprep.subr.mxu0 0.0
        %2379 = vmatpush1.msra.mxu0 0.0
        %2380 = vmatprep.subr.mxu0 0.0
        %2381 = vmatpush1.msra.mxu0 0.0
        %2382 = vmatprep.subr.mxu0 0.0
        %2383 = vmatpush1.msra.mxu0 0.0
        %2384 = vmatprep.subr.mxu0 0.0
        %2385 = vmatpush1.msra.mxu0 0.0
        %2386 = vmatprep.subr.mxu0 0.0
        %2387 = vmatpush1.msra.mxu0 0.0
        %2388 = vmatprep.subr.mxu0 0.0
        %2389 = vmatpush1.msra.mxu0 0.0
        %2390 = vmatprep.subr.mxu0 0.0
        %2391 = vmatpush1.msra.mxu0 0.0
        %2392 = vmatprep.subr.mxu0 0.0
        %2393 = vmatpush1.msra.mxu0 0.0
        %2394 = vmatprep.subr.mxu0 0.0
        %2395 = vmatpush1.msra.mxu0 0.0
        %2396 = vmatprep.subr.mxu0 0.0
        %2397 = vmatpush1.msra.mxu0 0.0
        %2398 = vmatprep.subr.mxu0 0.0
        %2399 = vmatpush1.msra.mxu0 0.0
        %2400 = vmatprep.subr.mxu0 0.0
        %2401 = vmatpush1.msra.mxu0 0.0
        %2402 = vmatprep.subr.mxu0 0.0
        %2403 = vmatpush1.msra.mxu0 0.0
        %2404 = vmatprep.subr.mxu0 0.0
        %2405 = vmatpush1.msra.mxu0 0.0
        %2406 = vmatprep.subr.mxu0 0.0
        %2407 = vmatpush1.msra.mxu0 0.0
        %2408 = vmatprep.subr.mxu0 0.0
        %2409 = vmatpush1.msra.mxu0 0.0
        %2410 = vmatprep.subr.mxu0 0.0
        %2411 = vmatpush1.msra.mxu0 0.0
        %2412 = vmatprep.subr.mxu0 0.0
        %2413 = vmatpush1.msra.mxu0 0.0
        %2414 = vmatprep.subr.mxu0 0.0
        %2415 = vmatpush1.msra.mxu0 0.0
        %2416 = vmatprep.subr.mxu0 0.0
        %2417 = vmatpush1.msra.mxu0 0.0
        %2418 = vmatprep.subr.mxu0 0.0
        %2419 = vmatpush1.msra.mxu0 0.0
        %2420 = vmatprep.subr.mxu0 0.0
        %2421 = vmatpush1.msra.mxu0 0.0
        %2422 = vmatprep.subr.mxu0 0.0
        %2423 = vmatpush1.msra.mxu0 0.0
        %2424 = vmatprep.subr.mxu0 0.0
        %2425 = vmatpush1.msra.mxu0 0.0
        %2426 = vmatprep.subr.mxu0 0.0
        %2427 = vmatpush1.msra.mxu0 0.0
        %2428 = vmatprep.subr.mxu0 0.0
        %2429 = vmatpush1.msra.mxu0 0.0
        %2430 = vmatprep.subr.mxu0 0.0
        %2431 = vmatpush1.msra.mxu0 0.0
        %2432 = vmatprep.subr.mxu0 0.0
        %2433 = vmatpush1.msra.mxu0 0.0
        %2434 = vmatprep.subr.mxu0 0.0
        %2435 = vmatpush1.msra.mxu0 0.0
        %2436 = vmatprep.mubr.f32.mxu0 0.0
        %2437 = vmatmul.mubr.f32.gmra.mrb[0].mxu0 %v2367
        %v2438 = vpop.f32.mrb[0].mxu0
        %v2439 = vadd.f32 0.0, %v2438
        %v2440 = vpop.f32.mrb[0].mxu0
        %2441 = vmatprep.mubr.f32.mxu0 0.0
        %2442 = vmatmul.mubr.f32.gmra.mrb[0].mxu0 %v2370
        %v2443 = vpop.f32.mrb[0].mxu0
        %v2444 = vadd.f32 0.0, %v2443
        %v2445 = vpop.f32.mrb[0].mxu0
        %2446 = vdwg.mxu0
        %v2447 = vadd.f32 %v2032, %v2439
        %v2448 = vadd.f32 %v2033, %v2444
        %v2449 = vadd.f32 %v650, %v2447
        %v2450 = vadd.f32 %v651, %v2448
        %v2451 = vld [vmem:[%s617] sm:$0x1]
        %v2453 = vlaneseq
        %v2454 = vshrl.u32 %v2453, 7
        %v2455 = vsub.s32 0, %v2454
        %v2456 = vrot.slane %v2451, %v2455
        %v2458 = vadd.f32 %v2449, %v2456
        %v2459 = vadd.f32 %v2450, %v2456
        %v2460 = vld [vmem:[%s620] sm:$0x1]
        %v2461 = vld [vmem:[%s623] sm:$0x1]
        %v2462 = vsel %vm654, %v2458, 0.0
        %2463 = vadd.xlane.f32.xlu0 %v2462
        %v2464 = vpop.xlane.xlu0 %2463
        %v2465 = vsel %vm654, %v2459, 0.0
        %2466 = vadd.xlane.f32.xlu0 %v2465
        %v2467 = vpop.xlane.xlu0 %2466
        %v2468 = vmul.f32 %v2464, %v661
        %v2469 = vmul.f32 %v2467, %v661
        %v2470 = vsub.f32 %v2458, %v2468
        %v2471 = vsub.f32 %v2459, %v2469
        %v2472 = vmul.f32 %v2470, %v2470
        %v2473 = vmul.f32 %v2471, %v2471
        %v2474 = vsel %vm654, %v2472, 0.0
        %2475 = vadd.xlane.f32.xlu0 %v2474
        %v2476 = vpop.xlane.xlu0 %2475
        %v2477 = vsel %vm654, %v2473, 0.0
        %2478 = vadd.xlane.f32.xlu0 %v2477
        %v2479 = vpop.xlane.xlu0 %2478
        %v2480 = vmul.f32 %v2476, %v661
        %v2481 = vmul.f32 %v2479, %v661
        %v2482 = vadd.f32 %v2480, 1e-05
        %v2483 = vadd.f32 %v2481, 1e-05
        %v2484 = vrsqrt.pop %v2482
        %v2485 = vrsqrt.pop %v2483
        %v2486 = vmul.f32 %v2470, %v2484
        %v2487 = vmul.f32 %v2471, %v2485
        %v2489 = vlaneseq
        %v2490 = vshrl.u32 %v2489, 7
        %v2491 = vsub.s32 0, %v2490
        %v2492 = vrot.slane %v2460, %v2491
        %v2494 = vmul.f32 %v2486, %v2492
        %v2495 = vmul.f32 %v2487, %v2492
        %v2497 = vlaneseq
        %v2498 = vshrl.u32 %v2497, 7
        %v2499 = vsub.s32 0, %v2498
        %v2500 = vrot.slane %v2461, %v2499
        %v2502 = vadd.f32 %v2494, %v2500
        %v2503 = vadd.f32 %v2495, %v2500
        %v2504 = vld [vmem:[%s628] sm:$0xff]
        %v2505 = vld [vmem:[%s628 + $0x8] sm:$0xff]
        %v2506 = vld [vmem:[%s628 + $0x10] sm:$0xff]
        %v2507 = vld [vmem:[%s628 + $0x18] sm:$0xff]
        %v2508 = vld [vmem:[%s631] sm:$0x1]
        %v2510 = vlaneseq
        %v2511 = vshrl.u32 %v2510, 7
        %v2512 = vsub.s32 0, %v2511
        %v2513 = vrot.slane %v2508, %v2512
        %v2516 = vsel %vm654, %v2502, 0
        %v2519 = vsel %vm654, %v2503, 0
        %2521 = vmatprep.subr.mxu0 0.0
        %2522 = vmatpush1.msra.mxu0 %v2504
        %2523 = vmatprep.subr.mxu0 0.0
        %2524 = vmatpush1.msra.mxu0 %v2505
        %2525 = vmatprep.subr.mxu0 0.0
        %2526 = vmatpush1.msra.mxu0 %v2506
        %2527 = vmatprep.subr.mxu0 0.0
        %2528 = vmatpush1.msra.mxu0 %v2507
        %2529 = vmatprep.subr.mxu0 0.0
        %2530 = vmatpush1.msra.mxu0 0.0
        %2531 = vmatprep.subr.mxu0 0.0
        %2532 = vmatpush1.msra.mxu0 0.0
        %2533 = vmatprep.subr.mxu0 0.0
        %2534 = vmatpush1.msra.mxu0 0.0
        %2535 = vmatprep.subr.mxu0 0.0
        %2536 = vmatpush1.msra.mxu0 0.0
        %2537 = vmatprep.subr.mxu0 0.0
        %2538 = vmatpush1.msra.mxu0 0.0
        %2539 = vmatprep.subr.mxu0 0.0
        %2540 = vmatpush1.msra.mxu0 0.0
        %2541 = vmatprep.subr.mxu0 0.0
        %2542 = vmatpush1.msra.mxu0 0.0
        %2543 = vmatprep.subr.mxu0 0.0
        %2544 = vmatpush1.msra.mxu0 0.0
        %2545 = vmatprep.subr.mxu0 0.0
        %2546 = vmatpush1.msra.mxu0 0.0
        %2547 = vmatprep.subr.mxu0 0.0
        %2548 = vmatpush1.msra.mxu0 0.0
        %2549 = vmatprep.subr.mxu0 0.0
        %2550 = vmatpush1.msra.mxu0 0.0
        %2551 = vmatprep.subr.mxu0 0.0
        %2552 = vmatpush1.msra.mxu0 0.0
        %2553 = vmatprep.subr.mxu0 0.0
        %2554 = vmatpush1.msra.mxu0 0.0
        %2555 = vmatprep.subr.mxu0 0.0
        %2556 = vmatpush1.msra.mxu0 0.0
        %2557 = vmatprep.subr.mxu0 0.0
        %2558 = vmatpush1.msra.mxu0 0.0
        %2559 = vmatprep.subr.mxu0 0.0
        %2560 = vmatpush1.msra.mxu0 0.0
        %2561 = vmatprep.subr.mxu0 0.0
        %2562 = vmatpush1.msra.mxu0 0.0
        %2563 = vmatprep.subr.mxu0 0.0
        %2564 = vmatpush1.msra.mxu0 0.0
        %2565 = vmatprep.subr.mxu0 0.0
        %2566 = vmatpush1.msra.mxu0 0.0
        %2567 = vmatprep.subr.mxu0 0.0
        %2568 = vmatpush1.msra.mxu0 0.0
        %2569 = vmatprep.subr.mxu0 0.0
        %2570 = vmatpush1.msra.mxu0 0.0
        %2571 = vmatprep.subr.mxu0 0.0
        %2572 = vmatpush1.msra.mxu0 0.0
        %2573 = vmatprep.subr.mxu0 0.0
        %2574 = vmatpush1.msra.mxu0 0.0
        %2575 = vmatprep.subr.mxu0 0.0
        %2576 = vmatpush1.msra.mxu0 0.0
        %2577 = vmatprep.subr.mxu0 0.0
        %2578 = vmatpush1.msra.mxu0 0.0
        %2579 = vmatprep.subr.mxu0 0.0
        %2580 = vmatpush1.msra.mxu0 0.0
        %2581 = vmatprep.subr.mxu0 0.0
        %2582 = vmatpush1.msra.mxu0 0.0
        %2583 = vmatprep.subr.mxu0 0.0
        %2584 = vmatpush1.msra.mxu0 0.0
        %2585 = vmatprep.mubr.f32.mxu0 0.0
        %2586 = vmatmul.mubr.f32.gmra.mrb[0].mxu0 %v2516
        %v2587 = vpop.f32.mrb[0].mxu0
        %v2588 = vadd.f32 %v2513, %v2587
        %v2589 = vpop.f32.mrb[0].mxu0
        %2590 = vmatprep.mubr.f32.mxu0 0.0
        %2591 = vmatmul.mubr.f32.gmra.mrb[0].mxu0 %v2519
        %v2592 = vpop.f32.mrb[0].mxu0
        %v2593 = vadd.f32 %v2513, %v2592
        %v2594 = vpop.f32.mrb[0].mxu0
        %2595 = vdwg.mxu0
        %vm2596 = vcmp.gt.f32.partialorder %v2588, 0.0
        %vm2597 = vcmp.gt.f32.partialorder %v2593, 0.0
        %v2598 = vmul.f32 %v2588, 0.01
        %v2599 = vmul.f32 %v2593, 0.01
        %v2600 = vsel %vm2596, %v2588, %v2598
        %v2601 = vsel %vm2597, %v2593, %v2599
        %v2602 = vld [vmem:[%s636] sm:$0xff]
        %v2603 = vld [vmem:[%s636 + $0x8] sm:$0xff]
        %v2604 = vld [vmem:[%s636 + $0x10] sm:$0xff]
        %v2605 = vld [vmem:[%s636 + $0x18] sm:$0xff]
        %v2606 = vld [vmem:[%s636 + $0x20] sm:$0xff]
        %v2607 = vld [vmem:[%s636 + $0x28] sm:$0xff]
        %v2608 = vld [vmem:[%s636 + $0x30] sm:$0xff]
        %v2609 = vld [vmem:[%s636 + $0x38] sm:$0xff]
        %vm2610 = vcmask 523264
        %v2612 = vsel %vm2610, %v2600, 0
        %v2615 = vsel %vm2610, %v2601, 0
        %2617 = vmatprep.subr.mxu0 0.0
        %2618 = vmatpush1.msra.mxu0 %v2602
        %2619 = vmatprep.subr.mxu0 0.0
        %2620 = vmatpush1.msra.mxu0 %v2603
        %2621 = vmatprep.subr.mxu0 0.0
        %2622 = vmatpush1.msra.mxu0 %v2604
        %2623 = vmatprep.subr.mxu0 0.0
        %2624 = vmatpush1.msra.mxu0 %v2605
        %2625 = vmatprep.subr.mxu0 0.0
        %2626 = vmatpush1.msra.mxu0 %v2606
        %2627 = vmatprep.subr.mxu0 0.0
        %2628 = vmatpush1.msra.mxu0 %v2607
        %2629 = vmatprep.subr.mxu0 0.0
        %2630 = vmatpush1.msra.mxu0 %v2608
        %2631 = vmatprep.subr.mxu0 0.0
        %2632 = vmatpush1.msra.mxu0 %v2609
        %2633 = vmatprep.subr.mxu0 0.0
        %2634 = vmatpush1.msra.mxu0 0.0
        %2635 = vmatprep.subr.mxu0 0.0
        %2636 = vmatpush1.msra.mxu0 0.0
        %2637 = vmatprep.subr.mxu0 0.0
        %2638 = vmatpush1.msra.mxu0 0.0
        %2639 = vmatprep.subr.mxu0 0.0
        %2640 = vmatpush1.msra.mxu0 0.0
        %2641 = vmatprep.subr.mxu0 0.0
        %2642 = vmatpush1.msra.mxu0 0.0
        %2643 = vmatprep.subr.mxu0 0.0
        %2644 = vmatpush1.msra.mxu0 0.0
        %2645 = vmatprep.subr.mxu0 0.0
        %2646 = vmatpush1.msra.mxu0 0.0
        %2647 = vmatprep.subr.mxu0 0.0
        %2648 = vmatpush1.msra.mxu0 0.0
        %2649 = vmatprep.subr.mxu0 0.0
        %2650 = vmatpush1.msra.mxu0 0.0
        %2651 = vmatprep.subr.mxu0 0.0
        %2652 = vmatpush1.msra.mxu0 0.0
        %2653 = vmatprep.subr.mxu0 0.0
        %2654 = vmatpush1.msra.mxu0 0.0
        %2655 = vmatprep.subr.mxu0 0.0
        %2656 = vmatpush1.msra.mxu0 0.0
        %2657 = vmatprep.subr.mxu0 0.0
        %2658 = vmatpush1.msra.mxu0 0.0
        %2659 = vmatprep.subr.mxu0 0.0
        %2660 = vmatpush1.msra.mxu0 0.0
        %2661 = vmatprep.subr.mxu0 0.0
        %2662 = vmatpush1.msra.mxu0 0.0
        %2663 = vmatprep.subr.mxu0 0.0
        %2664 = vmatpush1.msra.mxu0 0.0
        %2665 = vmatprep.subr.mxu0 0.0
        %2666 = vmatpush1.msra.mxu0 0.0
        %2667 = vmatprep.subr.mxu0 0.0
        %2668 = vmatpush1.msra.mxu0 0.0
        %2669 = vmatprep.subr.mxu0 0.0
        %2670 = vmatpush1.msra.mxu0 0.0
        %2671 = vmatprep.subr.mxu0 0.0
        %2672 = vmatpush1.msra.mxu0 0.0
        %2673 = vmatprep.subr.mxu0 0.0
        %2674 = vmatpush1.msra.mxu0 0.0
        %2675 = vmatprep.subr.mxu0 0.0
        %2676 = vmatpush1.msra.mxu0 0.0
        %2677 = vmatprep.subr.mxu0 0.0
        %2678 = vmatpush1.msra.mxu0 0.0
        %2679 = vmatprep.subr.mxu0 0.0
        %2680 = vmatpush1.msra.mxu0 0.0
        %2681 = vmatprep.mubr.f32.mxu0 0.0
        %2682 = vmatmul.mubr.f32.gmra.mrb[0].mxu0 %v2612
        %v2683 = vpop.f32.mrb[0].mxu0
        %v2684 = vadd.f32 0.0, %v2683
        %v2685 = vpop.f32.mrb[0].mxu0
        %2686 = vmatprep.mubr.f32.mxu0 0.0
        %2687 = vmatmul.mubr.f32.gmra.mrb[0].mxu0 %v2615
        %v2688 = vpop.f32.mrb[0].mxu0
        %v2689 = vadd.f32 0.0, %v2688
        %v2690 = vpop.f32.mrb[0].mxu0
        %2691 = vdwg.mxu0
        %v2692 = vadd.f32 %v2458, %v2684
        %v2693 = vadd.f32 %v2459, %v2689
        %v2694 = vld [vmem:[%s639] sm:$0x1]
        %v2696 = vlaneseq
        %v2697 = vshrl.u32 %v2696, 7
        %v2698 = vsub.s32 0, %v2697
        %v2699 = vrot.slane %v2694, %v2698
        %v2701 = vadd.f32 %v2692, %v2699
        %v2702 = vadd.f32 %v2693, %v2699
        %2703 = vst.msk [vmem:[#allocation2] sm:$0xff] %vm654, %v2701
        %2704 = vst.msk [vmem:[#allocation2 + $0x8] sm:$0xff] %vm654, %v2702
        %p2705 = scmp.eq.s32.totalorder %s31, 1
        // Predicated region
        $region81: #{tpu_custom_call.1} parent=71 // pred_check
          %p2706 = pneg %p2705
        $region82: #{tpu_custom_call.1} parent=71 // pred_check_branch
          %2708 = sbr.rel (%p2706) target = $region84
        $region83: #{tpu_custom_call.1} parent=71 // pred_region
          %2709 = vst.msk [vmem:[#allocation6] sm:$0xff] %vm654, %v2701
          %2710 = vst.msk [vmem:[#allocation6 + $0x8] sm:$0xff] %vm654, %v2702
        $region84: #{tpu_custom_call.1} parent=71 // pred_fallthru
          _
        // Predicated region
        $region85: #{tpu_custom_call.1} parent=71 // pred_check
          %p2711 = pneg %p394
        $region86: #{tpu_custom_call.1} parent=71 // pred_check_branch
          %2713 = sbr.rel (%p2711) target = $region88
        $region87: #{tpu_custom_call.1} parent=71 // pred_region
          %s2714 = smul.u32 2, %s30
          %s2716 = ssub.s32 256, 256
          %2717 = vsyncadd [#allocation5], %s2716
          %s2718 = smul.addr %s2714, 128
          %s2719 = scalar_lea.hbm %s13, %s2718
          %s2720 = sshll.u32 [#allocation6], 4
          %s2721 = int_to_ptr.vmem [resolvable:$true] %s2720
          %2726 = dma.vmem_to_hbm [thread:$0]  %s2721, 256, %s2719, [#allocation5], 128, 128, 8
        $region88: #{tpu_custom_call.1} parent=71 // pred_fallthru
          _
        // Predicated region
        $region89: #{tpu_custom_call.1} parent=71 // pred_check
          %p2727 = pneg %p394
        $region90: #{tpu_custom_call.1} parent=71 // pred_check_branch
          %2729 = sbr.rel (%p2727) target = $region92
        $region91: #{tpu_custom_call.1} parent=71 // pred_region
          %2730 = dma.done [#allocation5], 256
        $region92: #{tpu_custom_call.1} parent=71 // pred_fallthru
          _
      $region72: #{tpu_custom_call.1} parent=5 // pred_fallthru
        _
      %p2731 = scmp.le.s32.totalorder 2, %s21
      // Predicated region
      $region93: #{tpu_custom_call.1} parent=5 // pred_check
        %p2732 = pneg %p2731
      $region94: #{tpu_custom_call.1} parent=5 // pred_check_branch
        %2734 = sbr.rel (%p2732) target = $region96
      $region95: #{tpu_custom_call.1} parent=5 // pred_region
        %s2735 = ssub.s32 %s21, 2
      $region96: #{tpu_custom_call.1} parent=5 // pred_fallthru
        _
    $region6: #{tpu_custom_call.1} parent=1 // loop_footer
      %s25 = sadd.s32 1, %s21
    $region7: #{tpu_custom_call.1} parent=1 // loop_footer_branch
      %20 = sbr.rel target = $region3
    $region8: #{tpu_custom_call.1} parent=1 // loop_exit
      _
    %2736 = vsyncpa [#allocation4], 1
    %s2737 = scalar_lea.sflag [#allocation4], 1
    %2738 = vsyncpa %s2737, 1
    %2739 = vsyncpa [#allocation5], 1
    %s2740 = scalar_lea.sflag [#allocation5], 1
    %2741 = vsyncpa %s2740, 1

</llo_original>
